<compile_context>
chip_gen: v5e
topology: v5e:2x2
jax: 0.10.0
libtpu: 0.0.40
codegen_flags: <defaults>
</compile_context>

<pallas_src>
import numpy as np
import jax
import jax.numpy as jnp
from jax import lax
from jax.experimental import pallas as pl
from jax.experimental.pallas import tpu as pltpu


COMPUTE_DTYPE = jnp.bfloat16          # matmul operand / intermediate dtype
VMEM_LIMIT_BYTES = 32 * 1024 * 1024   # safe scoped limit on v5e/v6e/v7x
_LANE = 128
_SUBLANE = 8


def _round_up(x, m):
    return ((x + m - 1) // m) * m


def _geom(h, w):
    """Static slab geometry of one feature-map scale (all Python ints)."""
    hp, wp = h + 2, w + 2                        # 1-pixel zero border (pad=1 conv)
    t_out = _round_up(hp * wp, _LANE)            # lane-dense output slab length
    ps = _round_up(wp + 1, _LANE)                # side halo: every 3x3 tap window
    return dict(h=h, w=w, hp=hp, wp=wp,          # becomes a static in-bounds slice
                t_out=t_out, ps=ps, t_in=t_out + 2 * ps)


# ------------------------------ Pallas kernel -------------------------------

def _conv3x3_slab(x_slab, w_taps, g, *, bias=None, mask=None, fuse=(),
                  relu=False, out_dtype=jnp.float32):
    """3x3-window matmul over a side-padded lane slab.

    x_slab : (N, Cin, t_in)  bf16; the (hp, wp) zero-padded grid of one image
             lives at lanes [ps, ps + hp*wp), zeros elsewhere.
    w_taps : (9, Cout, Cin)  per-tap weights (tap index k = kh*3 + kw), bf16.
    bias   : optional (Cout, 1) f32;  mask: optional (1, t_out) f32 interior mask;
    fuse   : extra (N, Cout, t_out) slabs added after bias/ReLU (final 3-way sum).
    Output : (N, Cout, t_out); lane q = result at padded-grid position q.
    """
    n, cin, t_in = x_slab.shape
    _, cout, cin_w = w_taps.shape
    assert cin_w == cin and t_in == g["t_in"]
    wp, ps, t_out = g["wp"], g["ps"], g["t_out"]
    # Tap k of output lane q reads input lane (ps + q + (kh-1)*wp + (kw-1)).
    starts = tuple(ps + (kh - 1) * wp + (kw - 1)
                   for kh in range(3) for kw in range(3))
    has_bias = bias is not None
    has_mask = mask is not None
    n_fuse = len(fuse)

    def kernel(*refs):
        i = 0
        x_ref = refs[i]; i += 1
        w_ref = refs[i]; i += 1
        b_ref = None
        if has_bias:
            b_ref = refs[i]; i += 1
        m_ref = None
        if has_mask:
            m_ref = refs[i]; i += 1
        f_refs = refs[i:i + n_fuse]; i += n_fuse
        o_ref = refs[i]

        acc = None
        for k, s0 in enumerate(starts):
            xk = x_ref[:, pl.ds(s0, t_out)]            # (Cin, t_out) shifted window
            d = jnp.dot(w_ref[k], xk, preferred_element_type=jnp.float32)
            acc = d if acc is None else acc + d
        if has_bias:
            acc = acc + b_ref[...]
        if relu:
            acc = jnp.maximum(acc, 0.0)
        if has_mask:
            acc = acc * m_ref[...]                     # zero the pad positions
        for f_ref in f_refs:
            acc = acc + f_ref[...].astype(jnp.float32)
        o_ref[...] = acc.astype(o_ref.dtype)

    in_specs = [pl.BlockSpec((None, cin, t_in), lambda b: (b, 0, 0)),
                pl.BlockSpec((9, cout, cin), lambda b: (0, 0, 0))]
    args = [x_slab, w_taps]
    if has_bias:
        in_specs.append(pl.BlockSpec((cout, 1), lambda b: (0, 0)))
        args.append(bias)
    if has_mask:
        in_specs.append(pl.BlockSpec((1, t_out), lambda b: (0, 0)))
        args.append(mask)
    for f in fuse:
        in_specs.append(pl.BlockSpec((None, cout, t_out), lambda b: (b, 0, 0)))
        args.append(f)

    return pl.pallas_call(
        kernel,
        grid=(n,),
        in_specs=in_specs,
        out_specs=pl.BlockSpec((None, cout, t_out), lambda b: (b, 0, 0)),
        out_shape=jax.ShapeDtypeStruct((n, cout, t_out), out_dtype),
        compiler_params=pltpu.CompilerParams(
            dimension_semantics=("parallel",),
            vmem_limit_bytes=VMEM_LIMIT_BYTES),
    )(*args)


# ------------------------------ JAX wrappers --------------------------------

def _to_slab(x, g, cin_pad):
    """(N, C, H, W) -> (N, cin_pad, t_in) bf16 zero-padded slab with side halo."""
    n, c, h, w = x.shape
    x = x.astype(COMPUTE_DTYPE)
    if cin_pad > c:
        x = jnp.pad(x, ((0, 0), (0, cin_pad - c), (0, 0), (0, 0)))
    xp = jnp.pad(x, ((0, 0), (0, 0), (1, 1), (1, 1)))
    xs = xp.reshape(n, cin_pad, g["hp"] * g["wp"])
    left = g["ps"]
    right = g["t_in"] - g["ps"] - g["hp"] * g["wp"]
    return jnp.pad(xs, ((0, 0), (0, 0), (left, right)))


def _add_halo(y_slab, g):
    """(N, C, t_out) conv output slab -> (N, C, t_in) with zero side halo."""
    left = g["ps"]
    right = g["t_in"] - g["ps"] - g["t_out"]
    return jnp.pad(y_slab, ((0, 0), (0, 0), (left, right)))


def _interior_mask(g):
    """(1, t_out) f32: 1 at valid image pixels of the padded grid, else 0."""
    q = np.arange(g["t_out"])
    r, c = q // g["wp"], q % g["wp"]
    m = (r >= 1) & (r <= g["h"]) & (c >= 1) & (c <= g["w"])
    return jnp.asarray(m.reshape(1, -1).astype(np.float32))


def _shuffle_embed(ph_slab, stride, g_lo, g_hi, cout):
    """Pixel-shuffle deconv phases and embed at the interior of the hi-res slab."""
    n = ph_slab.shape[0]
    s = stride
    h, w = g_lo["h"], g_lo["w"]
    assert h * s == g_hi["h"] and w * s == g_hi["w"]
    v = ph_slab[:, :, : g_lo["hp"] * g_lo["wp"]]
    v = v.reshape(n, s, s, cout, g_lo["hp"], g_lo["wp"])[:, :, :, :, 1:1 + h, 1:1 + w]
    up = jnp.transpose(v, (0, 3, 4, 1, 5, 2)).reshape(n, cout, h * s, w * s)
    up = jnp.pad(up, ((0, 0), (0, 0), (1, g_hi["hp"] - h * s - 1),
                      (1, g_hi["wp"] - w * s - 1)))
    up = up.reshape(n, cout, g_hi["hp"] * g_hi["wp"])
    return jnp.pad(up, ((0, 0), (0, 0), (0, g_hi["t_out"] - g_hi["hp"] * g_hi["wp"])))


def refine_block3_1(x1, x2, x3, packed):
    """Forward of Refine_block3_1. Inputs/outputs are NCHW like PyTorch."""
    n, c1, H, W = x1.shape
    _, c2, h2, w2 = x2.shape
    _, c3, h3, w3 = x3.shape
    g1, g2, g3 = _geom(H, W), _geom(h2, w2), _geom(h3, w3)
    out_ch = packed["w1"].shape[1]

    x1s = _to_slab(x1, g1, _round_up(c1, _SUBLANE))
    x2s = _to_slab(x2, g2, _round_up(c2, _SUBLANE))
    x3s = _to_slab(x3, g3, _round_up(c3, _SUBLANE))

    # adap_conv 2/3: conv+bias+ReLU with sigmoid(a) folded into W/b; the kernel
    # zeroes the pad positions so the result IS the 1-zero-padded y slab the
    # transposed conv needs.  bf16 intermediates.
    y2s = _conv3x3_slab(x2s, packed["w2"], g2, bias=packed["b2"],
                        mask=_interior_mask(g2), relu=True, out_dtype=COMPUTE_DTYPE)
    y3s = _conv3x3_slab(x3s, packed["w3"], g3, bias=packed["b3"],
                        mask=_interior_mask(g3), relu=True, out_dtype=COMPUTE_DTYPE)

    # Transposed convs (stride 2 / 4) as sub-pixel phase matmuls over ypad.
    ph2 = _conv3x3_slab(_add_halo(y2s, g2), packed["wt2"], g2, out_dtype=COMPUTE_DTYPE)
    ph3 = _conv3x3_slab(_add_halo(y3s, g3), packed["wt3"], g3, out_dtype=COMPUTE_DTYPE)

    up2 = _shuffle_embed(ph2, 2, g2, g1, out_ch)
    up3 = _shuffle_embed(ph3, 4, g3, g1, out_ch)

    # adap_conv 1 + fused 3-way sum (y1 + up2 + up3) in one kernel, f32 out.
    fused = _conv3x3_slab(x1s, packed["w1"], g1, bias=packed["b1"],
                          fuse=(up2, up3), relu=True, out_dtype=jnp.float32)
    out = fused[:, :, : g1["hp"] * g1["wp"]]
    out = out.reshape(n, out_ch, g1["hp"], g1["wp"])[:, :, 1:1 + H, 1:1 + W]
    return out


# ------------------- parameter packing (numpy, outside jit) ------------------

def _fold_adap_weight(w, b, a, cin_pad):
    """Fold sigmoid(a) into conv weight/bias and reorganise to (9, Cout, Cin)."""
    w = np.asarray(w, np.float32)
    b = np.asarray(b, np.float32)
    s = 1.0 / (1.0 + np.exp(-float(np.asarray(a))))
    w, b = w * s, b * s
    cout, cin = w.shape[0], w.shape[1]
    taps = np.transpose(w, (2, 3, 0, 1)).reshape(9, cout, cin)
    if cin_pad > cin:
        taps = np.pad(taps, ((0, 0), (0, 0), (0, cin_pad - cin)))
    return (jnp.asarray(taps, COMPUTE_DTYPE),
            jnp.asarray(b.reshape(cout, 1), jnp.float32))


def _subpixel_taps(wd, stride, padding):
    """conv_transpose2d weight (Cin, Cout, K, K), K==2*s, pad==s//2 ->
    (9, s*s*Cout, Cin) tap weights: each output phase is a 3x3 cross-correlation
    over the 1-zero-padded low-res input."""
    wd = np.asarray(wd, np.float32)
    cin, cout, K, _ = wd.shape
    s, p = stride, padding
    assert K == 2 * s and p == s // 2, "sub-pixel path assumes K == 2*s, pad == s//2"
    taps = np.zeros((9, s * s * cout, cin), np.float32)
    for uh in range(3):
        for uw in range(3):
            k = uh * 3 + uw
            for ph in range(s):
                kh = (1 - uh) * s + p + ph
                if not 0 <= kh < K:
                    continue
                for pw in range(s):
                    kw = (1 - uw) * s + p + pw
                    if not 0 <= kw < K:
                        continue
                    r0 = (ph * s + pw) * cout
                    taps[k, r0:r0 + cout, :] = wd[:, :, kh, kw].T
    return jnp.asarray(taps, COMPUTE_DTYPE)


def pack_params(params):
    packed = {}
    for i in (1, 2, 3):
        w = np.asarray(params[f"w{i}"])
        cin_pad = _round_up(w.shape[1], _SUBLANE)
        taps, bias = _fold_adap_weight(w, params[f"b{i}"], params[f"a{i}"], cin_pad)
        packed[f"w{i}"], packed[f"b{i}"] = taps, bias
    packed["wt2"] = _subpixel_taps(params["deconv1"], 2, 1)
    packed["wt3"] = _subpixel_taps(params["deconv2"], 4, 2)
    return packed


# -------------------- deterministic parameter construction -------------------

def _upsample_filt(size):
    factor = (size + 1) // 2
    center = factor - 1 if size % 2 == 1 else factor - 0.5
    og = np.ogrid[:size, :size]
    return ((1 - abs(og[0] - center) / factor) *
            (1 - abs(og[1] - center) / factor)).astype(np.float32)


def bilinear_upsample_weights(factor, channels):
    K = 2 * factor - factor % 2
    w = np.zeros((channels, channels, K, K), np.float32)
    filt = _upsample_filt(K)
    for i in range(channels):
        w[i, i] = filt
    return jnp.asarray(w)


# --------------------------------- reference ---------------------------------

def _ref_forward(x1, x2, x3, p):
    def adap(x, w, b, a):
        y = lax.conv_general_dilated(
            x, w, (1, 1), [(1, 1), (1, 1)],
            dimension_numbers=("NCHW", "OIHW", "NCHW"),
            precision=lax.Precision.HIGHEST)
        y = jnp.maximum(y + b.reshape(1, -1, 1, 1), 0.0)
        return y * jax.nn.sigmoid(a)

    def convT(y, wd, s, pad):
        K = wd.shape[-1]
        w = jnp.transpose(wd[:, :, ::-1, ::-1], (1, 0, 2, 3))   # OIHW, flipped
        q = K - 1 - pad
        return lax.conv_general_dilated(
            y, w, (1, 1), [(q, q), (q, q)], lhs_dilation=(s, s),
            dimension_numbers=("NCHW", "OIHW", "NCHW"),
            precision=lax.Precision.HIGHEST)

    y1 = adap(x1, p["w1"], p["b1"], p["a1"])
    y2 = adap(x2, p["w2"], p["b2"], p["a2"])
    y3 = adap(x3, p["w3"], p["b3"], p["a3"])
    return y1 + convT(y2, p["deconv1"], 2, 1) + convT(y3, p["deconv2"], 4, 2)


# ----------------------------------- main ------------------------------------

if __name__ == "__main__":
    key = jax.random.PRNGKey(0)
    ks = jax.random.split(key, 9)
    in_ch, out_ch = (4, 6, 8), 8
    N, H, W = 2, 16, 16

    params = {
        "w1": 0.1 * jax.random.normal(ks[0], (out_ch, in_ch[0], 3, 3), jnp.float32),
        "b1": 0.1 * jax.random.normal(ks[1], (out_ch,), jnp.float32),
        "a1": jnp.float32(0.0),   # nn.Parameter(torch.Tensor([0.0]))
        "w2": 0.1 * jax.random.normal(ks[2], (out_ch, in_ch[1], 3, 3), jnp.float32),
        "b2": 0.1 * jax.random.normal(ks[3], (out_ch,), jnp.float32),
        "a2": jnp.float32(0.0),
        "w3": 0.1 * jax.random.normal(ks[4], (out_ch, in_ch[2], 3, 3), jnp.float32),
        "b3": 0.1 * jax.random.normal(ks[5], (out_ch,), jnp.float32),
        "a3": jnp.float32(0.0),
        "deconv1": bilinear_upsample_weights(2, out_ch),   # (C, C, 4, 4)
        "deconv2": bilinear_upsample_weights(4, out_ch),   # (C, C, 8, 8)
    }

    x1 = jax.random.normal(ks[6], (N, in_ch[0], H, W), jnp.float32)
    x2 = jax.random.normal(ks[7], (N, in_ch[1], H // 2, W // 2), jnp.float32)
    x3 = jax.random.normal(ks[8], (N, in_ch[2], H // 4, W // 4), jnp.float32)

    packed = pack_params(params)                 # numpy weight prep, outside jit
    fwd = jax.jit(refine_block3_1)
    out = jax.block_until_ready(fwd(x1, x2, x3, packed))

    ref = _ref_forward(x1, x2, x3, params)
    # bf16 operands + bf16 intermediate storage -> slightly looser tolerance.
    np.testing.assert_allclose(np.asarray(out), np.asarray(ref),
                               rtol=2e-2, atol=2e-2)
    print("KERNEL_OK")
</pallas_src>

<mosaic_0001>
module attributes {stable_mosaic.version = 11 : i64} {
  func.func @kernel(%arg0: i32, %arg1: memref<1x8x384xbf16, #tpu.memory_space<vmem>>, %arg2: memref<9x128x8xbf16, #tpu.memory_space<vmem>>, %arg3: memref<1x128x128xbf16, #tpu.memory_space<vmem>>) attributes {dimension_semantics = [#tpu.dimension_semantics<parallel>], iteration_bounds = array<i64: 2>, scalar_prefetch = 0 : i64, scratch_operands = 0 : i64, tpu.core_type = #tpu.core_type<tc>, window_params = [{transform_indices = @transform_0, window_bounds = array<i64: 1, 8, 384>}, {pipeline_mode = #tpu.pipeline_mode<synchronous>, transform_indices = @transform_1, window_bounds = array<i64: 9, 128, 8>}, {transform_indices = @transform_2, window_bounds = array<i64: 1, 128, 128>}]} {
    %c0 = arith.constant 0 : index
    %c0_0 = arith.constant 0 : index
    %c121 = arith.constant 121 : index
    %0 = vector.load %arg1[%c0, %c0_0, %c121] : memref<1x8x384xbf16, #tpu.memory_space<vmem>>, vector<1x8x128xbf16>
    %1 = vector.shape_cast %0 : vector<1x8x128xbf16> to vector<8x128xbf16>
    %c0_1 = arith.constant 0 : index
    %c0_2 = arith.constant 0 : index
    %c0_3 = arith.constant 0 : index
    %2 = vector.load %arg2[%c0_1, %c0_2, %c0_3] : memref<9x128x8xbf16, #tpu.memory_space<vmem>>, vector<1x128x8xbf16>
    %3 = vector.shape_cast %2 : vector<1x128x8xbf16> to vector<128x8xbf16>
    %cst = arith.constant dense<0.000000e+00> : vector<128x128xf32>
    %4 = tpu.matmul %3, %1, %cst {dimension_numbers = #tpu.dot_dimension_numbers<[1], [0], [0], [1], [0, 0, 1, 1], [], []>} : vector<128x8xbf16>, vector<8x128xbf16>, vector<128x128xf32> -> vector<128x128xf32>
    %c0_4 = arith.constant 0 : index
    %c0_5 = arith.constant 0 : index
    %c122 = arith.constant 122 : index
    %5 = vector.load %arg1[%c0_4, %c0_5, %c122] : memref<1x8x384xbf16, #tpu.memory_space<vmem>>, vector<1x8x128xbf16>
    %6 = vector.shape_cast %5 : vector<1x8x128xbf16> to vector<8x128xbf16>
    %c1 = arith.constant 1 : index
    %c0_6 = arith.constant 0 : index
    %c0_7 = arith.constant 0 : index
    %7 = vector.load %arg2[%c1, %c0_6, %c0_7] : memref<9x128x8xbf16, #tpu.memory_space<vmem>>, vector<1x128x8xbf16>
    %8 = vector.shape_cast %7 : vector<1x128x8xbf16> to vector<128x8xbf16>
    %cst_8 = arith.constant dense<0.000000e+00> : vector<128x128xf32>
    %9 = tpu.matmul %8, %6, %cst_8 {dimension_numbers = #tpu.dot_dimension_numbers<[1], [0], [0], [1], [0, 0, 1, 1], [], []>} : vector<128x8xbf16>, vector<8x128xbf16>, vector<128x128xf32> -> vector<128x128xf32>
    %10 = arith.addf %4, %9 : vector<128x128xf32>
    %c0_9 = arith.constant 0 : index
    %c0_10 = arith.constant 0 : index
    %c123 = arith.constant 123 : index
    %11 = vector.load %arg1[%c0_9, %c0_10, %c123] : memref<1x8x384xbf16, #tpu.memory_space<vmem>>, vector<1x8x128xbf16>
    %12 = vector.shape_cast %11 : vector<1x8x128xbf16> to vector<8x128xbf16>
    %c2 = arith.constant 2 : index
    %c0_11 = arith.constant 0 : index
    %c0_12 = arith.constant 0 : index
    %13 = vector.load %arg2[%c2, %c0_11, %c0_12] : memref<9x128x8xbf16, #tpu.memory_space<vmem>>, vector<1x128x8xbf16>
    %14 = vector.shape_cast %13 : vector<1x128x8xbf16> to vector<128x8xbf16>
    %cst_13 = arith.constant dense<0.000000e+00> : vector<128x128xf32>
    %15 = tpu.matmul %14, %12, %cst_13 {dimension_numbers = #tpu.dot_dimension_numbers<[1], [0], [0], [1], [0, 0, 1, 1], [], []>} : vector<128x8xbf16>, vector<8x128xbf16>, vector<128x128xf32> -> vector<128x128xf32>
    %16 = arith.addf %10, %15 : vector<128x128xf32>
    %c0_14 = arith.constant 0 : index
    %c0_15 = arith.constant 0 : index
    %c127 = arith.constant 127 : index
    %17 = vector.load %arg1[%c0_14, %c0_15, %c127] : memref<1x8x384xbf16, #tpu.memory_space<vmem>>, vector<1x8x128xbf16>
    %18 = vector.shape_cast %17 : vector<1x8x128xbf16> to vector<8x128xbf16>
    %c3 = arith.constant 3 : index
    %c0_16 = arith.constant 0 : index
    %c0_17 = arith.constant 0 : index
    %19 = vector.load %arg2[%c3, %c0_16, %c0_17] : memref<9x128x8xbf16, #tpu.memory_space<vmem>>, vector<1x128x8xbf16>
    %20 = vector.shape_cast %19 : vector<1x128x8xbf16> to vector<128x8xbf16>
    %cst_18 = arith.constant dense<0.000000e+00> : vector<128x128xf32>
    %21 = tpu.matmul %20, %18, %cst_18 {dimension_numbers = #tpu.dot_dimension_numbers<[1], [0], [0], [1], [0, 0, 1, 1], [], []>} : vector<128x8xbf16>, vector<8x128xbf16>, vector<128x128xf32> -> vector<128x128xf32>
    %22 = arith.addf %16, %21 : vector<128x128xf32>
    %c0_19 = arith.constant 0 : index
    %c0_20 = arith.constant 0 : index
    %c128 = arith.constant 128 : index
    %23 = vector.load %arg1[%c0_19, %c0_20, %c128] : memref<1x8x384xbf16, #tpu.memory_space<vmem>>, vector<1x8x128xbf16>
    %24 = vector.shape_cast %23 : vector<1x8x128xbf16> to vector<8x128xbf16>
    %c4 = arith.constant 4 : index
    %c0_21 = arith.constant 0 : index
    %c0_22 = arith.constant 0 : index
    %25 = vector.load %arg2[%c4, %c0_21, %c0_22] : memref<9x128x8xbf16, #tpu.memory_space<vmem>>, vector<1x128x8xbf16>
    %26 = vector.shape_cast %25 : vector<1x128x8xbf16> to vector<128x8xbf16>
    %cst_23 = arith.constant dense<0.000000e+00> : vector<128x128xf32>
    %27 = tpu.matmul %26, %24, %cst_23 {dimension_numbers = #tpu.dot_dimension_numbers<[1], [0], [0], [1], [0, 0, 1, 1], [], []>} : vector<128x8xbf16>, vector<8x128xbf16>, vector<128x128xf32> -> vector<128x128xf32>
    %28 = arith.addf %22, %27 : vector<128x128xf32>
    %c0_24 = arith.constant 0 : index
    %c0_25 = arith.constant 0 : index
    %c129 = arith.constant 129 : index
    %29 = vector.load %arg1[%c0_24, %c0_25, %c129] : memref<1x8x384xbf16, #tpu.memory_space<vmem>>, vector<1x8x128xbf16>
    %30 = vector.shape_cast %29 : vector<1x8x128xbf16> to vector<8x128xbf16>
    %c5 = arith.constant 5 : index
    %c0_26 = arith.constant 0 : index
    %c0_27 = arith.constant 0 : index
    %31 = vector.load %arg2[%c5, %c0_26, %c0_27] : memref<9x128x8xbf16, #tpu.memory_space<vmem>>, vector<1x128x8xbf16>
    %32 = vector.shape_cast %31 : vector<1x128x8xbf16> to vector<128x8xbf16>
    %cst_28 = arith.constant dense<0.000000e+00> : vector<128x128xf32>
    %33 = tpu.matmul %32, %30, %cst_28 {dimension_numbers = #tpu.dot_dimension_numbers<[1], [0], [0], [1], [0, 0, 1, 1], [], []>} : vector<128x8xbf16>, vector<8x128xbf16>, vector<128x128xf32> -> vector<128x128xf32>
    %34 = arith.addf %28, %33 : vector<128x128xf32>
    %c0_29 = arith.constant 0 : index
    %c0_30 = arith.constant 0 : index
    %c133 = arith.constant 133 : index
    %35 = vector.load %arg1[%c0_29, %c0_30, %c133] : memref<1x8x384xbf16, #tpu.memory_space<vmem>>, vector<1x8x128xbf16>
    %36 = vector.shape_cast %35 : vector<1x8x128xbf16> to vector<8x128xbf16>
    %c6 = arith.constant 6 : index
    %c0_31 = arith.constant 0 : index
    %c0_32 = arith.constant 0 : index
    %37 = vector.load %arg2[%c6, %c0_31, %c0_32] : memref<9x128x8xbf16, #tpu.memory_space<vmem>>, vector<1x128x8xbf16>
    %38 = vector.shape_cast %37 : vector<1x128x8xbf16> to vector<128x8xbf16>
    %cst_33 = arith.constant dense<0.000000e+00> : vector<128x128xf32>
    %39 = tpu.matmul %38, %36, %cst_33 {dimension_numbers = #tpu.dot_dimension_numbers<[1], [0], [0], [1], [0, 0, 1, 1], [], []>} : vector<128x8xbf16>, vector<8x128xbf16>, vector<128x128xf32> -> vector<128x128xf32>
    %40 = arith.addf %34, %39 : vector<128x128xf32>
    %c0_34 = arith.constant 0 : index
    %c0_35 = arith.constant 0 : index
    %c134 = arith.constant 134 : index
    %41 = vector.load %arg1[%c0_34, %c0_35, %c134] : memref<1x8x384xbf16, #tpu.memory_space<vmem>>, vector<1x8x128xbf16>
    %42 = vector.shape_cast %41 : vector<1x8x128xbf16> to vector<8x128xbf16>
    %c7 = arith.constant 7 : index
    %c0_36 = arith.constant 0 : index
    %c0_37 = arith.constant 0 : index
    %43 = vector.load %arg2[%c7, %c0_36, %c0_37] : memref<9x128x8xbf16, #tpu.memory_space<vmem>>, vector<1x128x8xbf16>
    %44 = vector.shape_cast %43 : vector<1x128x8xbf16> to vector<128x8xbf16>
    %cst_38 = arith.constant dense<0.000000e+00> : vector<128x128xf32>
    %45 = tpu.matmul %44, %42, %cst_38 {dimension_numbers = #tpu.dot_dimension_numbers<[1], [0], [0], [1], [0, 0, 1, 1], [], []>} : vector<128x8xbf16>, vector<8x128xbf16>, vector<128x128xf32> -> vector<128x128xf32>
    %46 = arith.addf %40, %45 : vector<128x128xf32>
    %c0_39 = arith.constant 0 : index
    %c0_40 = arith.constant 0 : index
    %c135 = arith.constant 135 : index
    %47 = vector.load %arg1[%c0_39, %c0_40, %c135] : memref<1x8x384xbf16, #tpu.memory_space<vmem>>, vector<1x8x128xbf16>
    %48 = vector.shape_cast %47 : vector<1x8x128xbf16> to vector<8x128xbf16>
    %c8 = arith.constant 8 : index
    %c0_41 = arith.constant 0 : index
    %c0_42 = arith.constant 0 : index
    %49 = vector.load %arg2[%c8, %c0_41, %c0_42] : memref<9x128x8xbf16, #tpu.memory_space<vmem>>, vector<1x128x8xbf16>
    %50 = vector.shape_cast %49 : vector<1x128x8xbf16> to vector<128x8xbf16>
    %cst_43 = arith.constant dense<0.000000e+00> : vector<128x128xf32>
    %51 = tpu.matmul %50, %48, %cst_43 {dimension_numbers = #tpu.dot_dimension_numbers<[1], [0], [0], [1], [0, 0, 1, 1], [], []>} : vector<128x8xbf16>, vector<8x128xbf16>, vector<128x128xf32> -> vector<128x128xf32>
    %52 = arith.addf %46, %51 : vector<128x128xf32>
    %53 = arith.truncf %52 : vector<128x128xf32> to vector<128x128xbf16>
    %c0_44 = arith.constant 0 : index
    %c0_45 = arith.constant 0 : index
    %c0_46 = arith.constant 0 : index
    %54 = vector.load %arg3[%c0_44, %c0_45, %c0_46] : memref<1x128x128xbf16, #tpu.memory_space<vmem>>, vector<1x128x128xbf16>
    %55 = vector.shape_cast %54 : vector<1x128x128xbf16> to vector<128x128xbf16>
    %56 = vector.shape_cast %53 : vector<128x128xbf16> to vector<1x128x128xbf16>
    tpu.vector_store %arg3[%c0_44, %c0_45, %c0_46], %56 {strides = array<i32>} : memref<1x128x128xbf16, #tpu.memory_space<vmem>>, vector<1x128x128xbf16>,
    return
  }
  func.func @transform_0(%arg0: i32) -> (i32, i32, i32) {
    %c0_i32 = arith.constant 0 : i32
    %c0_i32_0 = arith.constant 0 : i32
    %c0_i32_1 = arith.constant 0 : i32
    return %arg0, %c0_i32, %c0_i32_0 : i32, i32, i32
  }
  func.func @transform_1(%arg0: i32) -> (i32, i32, i32) {
    %c0_i32 = arith.constant 0 : i32
    %c0_i32_0 = arith.constant 0 : i32
    %c0_i32_1 = arith.constant 0 : i32
    %c0_i32_2 = arith.constant 0 : i32
    return %c0_i32, %c0_i32_0, %c0_i32_1 : i32, i32, i32
  }
  func.func @transform_2(%arg0: i32) -> (i32, i32, i32) {
    %c0_i32 = arith.constant 0 : i32
    %c0_i32_0 = arith.constant 0 : i32
    %c0_i32_1 = arith.constant 0 : i32
    return %arg0, %c0_i32, %c0_i32_0 : i32, i32, i32
  }
}

module attributes {stable_mosaic.version = 11 : i64} {
  func.func @kernel(%arg0: i32, %arg1: memref<1x8x384xbf16, #tpu.memory_space<vmem>>, %arg2: memref<9x8x8xbf16, #tpu.memory_space<vmem>>, %arg3: memref<8x1xf32, #tpu.memory_space<vmem>>, %arg4: memref<1x128xf32, #tpu.memory_space<vmem>>, %arg5: memref<1x8x128xbf16, #tpu.memory_space<vmem>>) attributes {dimension_semantics = [#tpu.dimension_semantics<parallel>], iteration_bounds = array<i64: 2>, scalar_prefetch = 0 : i64, scratch_operands = 0 : i64, tpu.core_type = #tpu.core_type<tc>, window_params = [{transform_indices = @transform_0, window_bounds = array<i64: 1, 8, 384>}, {pipeline_mode = #tpu.pipeline_mode<synchronous>, transform_indices = @transform_1, window_bounds = array<i64: 9, 8, 8>}, {pipeline_mode = #tpu.pipeline_mode<synchronous>, transform_indices = @transform_2, window_bounds = array<i64: 8, 1>}, {pipeline_mode = #tpu.pipeline_mode<synchronous>, transform_indices = @transform_3, window_bounds = array<i64: 1, 128>}, {transform_indices = @transform_4, window_bounds = array<i64: 1, 8, 128>}]} {
    %c0 = arith.constant 0 : index
    %c0_0 = arith.constant 0 : index
    %c121 = arith.constant 121 : index
    %0 = vector.load %arg1[%c0, %c0_0, %c121] : memref<1x8x384xbf16, #tpu.memory_space<vmem>>, vector<1x8x128xbf16>
    %1 = vector.shape_cast %0 : vector<1x8x128xbf16> to vector<8x128xbf16>
    %c0_1 = arith.constant 0 : index
    %c0_2 = arith.constant 0 : index
    %c0_3 = arith.constant 0 : index
    %2 = vector.load %arg2[%c0_1, %c0_2, %c0_3] : memref<9x8x8xbf16, #tpu.memory_space<vmem>>, vector<1x8x8xbf16>
    %3 = vector.shape_cast %2 : vector<1x8x8xbf16> to vector<8x8xbf16>
    %cst = arith.constant dense<0.000000e+00> : vector<8x128xf32>
    %4 = tpu.matmul %3, %1, %cst {dimension_numbers = #tpu.dot_dimension_numbers<[1], [0], [0], [1], [0, 0, 1, 1], [], []>} : vector<8x8xbf16>, vector<8x128xbf16>, vector<8x128xf32> -> vector<8x128xf32>
    %c0_4 = arith.constant 0 : index
    %c0_5 = arith.constant 0 : index
    %c122 = arith.constant 122 : index
    %5 = vector.load %arg1[%c0_4, %c0_5, %c122] : memref<1x8x384xbf16, #tpu.memory_space<vmem>>, vector<1x8x128xbf16>
    %6 = vector.shape_cast %5 : vector<1x8x128xbf16> to vector<8x128xbf16>
    %c1 = arith.constant 1 : index
    %c0_6 = arith.constant 0 : index
    %c0_7 = arith.constant 0 : index
    %7 = vector.load %arg2[%c1, %c0_6, %c0_7] : memref<9x8x8xbf16, #tpu.memory_space<vmem>>, vector<1x8x8xbf16>
    %8 = vector.shape_cast %7 : vector<1x8x8xbf16> to vector<8x8xbf16>
    %cst_8 = arith.constant dense<0.000000e+00> : vector<8x128xf32>
    %9 = tpu.matmul %8, %6, %cst_8 {dimension_numbers = #tpu.dot_dimension_numbers<[1], [0], [0], [1], [0, 0, 1, 1], [], []>} : vector<8x8xbf16>, vector<8x128xbf16>, vector<8x128xf32> -> vector<8x128xf32>
    %10 = arith.addf %4, %9 : vector<8x128xf32>
    %c0_9 = arith.constant 0 : index
    %c0_10 = arith.constant 0 : index
    %c123 = arith.constant 123 : index
    %11 = vector.load %arg1[%c0_9, %c0_10, %c123] : memref<1x8x384xbf16, #tpu.memory_space<vmem>>, vector<1x8x128xbf16>
    %12 = vector.shape_cast %11 : vector<1x8x128xbf16> to vector<8x128xbf16>
    %c2 = arith.constant 2 : index
    %c0_11 = arith.constant 0 : index
    %c0_12 = arith.constant 0 : index
    %13 = vector.load %arg2[%c2, %c0_11, %c0_12] : memref<9x8x8xbf16, #tpu.memory_space<vmem>>, vector<1x8x8xbf16>
    %14 = vector.shape_cast %13 : vector<1x8x8xbf16> to vector<8x8xbf16>
    %cst_13 = arith.constant dense<0.000000e+00> : vector<8x128xf32>
    %15 = tpu.matmul %14, %12, %cst_13 {dimension_numbers = #tpu.dot_dimension_numbers<[1], [0], [0], [1], [0, 0, 1, 1], [], []>} : vector<8x8xbf16>, vector<8x128xbf16>, vector<8x128xf32> -> vector<8x128xf32>
    %16 = arith.addf %10, %15 : vector<8x128xf32>
    %c0_14 = arith.constant 0 : index
    %c0_15 = arith.constant 0 : index
    %c127 = arith.constant 127 : index
    %17 = vector.load %arg1[%c0_14, %c0_15, %c127] : memref<1x8x384xbf16, #tpu.memory_space<vmem>>, vector<1x8x128xbf16>
    %18 = vector.shape_cast %17 : vector<1x8x128xbf16> to vector<8x128xbf16>
    %c3 = arith.constant 3 : index
    %c0_16 = arith.constant 0 : index
    %c0_17 = arith.constant 0 : index
    %19 = vector.load %arg2[%c3, %c0_16, %c0_17] : memref<9x8x8xbf16, #tpu.memory_space<vmem>>, vector<1x8x8xbf16>
    %20 = vector.shape_cast %19 : vector<1x8x8xbf16> to vector<8x8xbf16>
    %cst_18 = arith.constant dense<0.000000e+00> : vector<8x128xf32>
    %21 = tpu.matmul %20, %18, %cst_18 {dimension_numbers = #tpu.dot_dimension_numbers<[1], [0], [0], [1], [0, 0, 1, 1], [], []>} : vector<8x8xbf16>, vector<8x128xbf16>, vector<8x128xf32> -> vector<8x128xf32>
    %22 = arith.addf %16, %21 : vector<8x128xf32>
    %c0_19 = arith.constant 0 : index
    %c0_20 = arith.constant 0 : index
    %c128 = arith.constant 128 : index
    %23 = vector.load %arg1[%c0_19, %c0_20, %c128] : memref<1x8x384xbf16, #tpu.memory_space<vmem>>, vector<1x8x128xbf16>
    %24 = vector.shape_cast %23 : vector<1x8x128xbf16> to vector<8x128xbf16>
    %c4 = arith.constant 4 : index
    %c0_21 = arith.constant 0 : index
    %c0_22 = arith.constant 0 : index
    %25 = vector.load %arg2[%c4, %c0_21, %c0_22] : memref<9x8x8xbf16, #tpu.memory_space<vmem>>, vector<1x8x8xbf16>
    %26 = vector.shape_cast %25 : vector<1x8x8xbf16> to vector<8x8xbf16>
    %cst_23 = arith.constant dense<0.000000e+00> : vector<8x128xf32>
    %27 = tpu.matmul %26, %24, %cst_23 {dimension_numbers = #tpu.dot_dimension_numbers<[1], [0], [0], [1], [0, 0, 1, 1], [], []>} : vector<8x8xbf16>, vector<8x128xbf16>, vector<8x128xf32> -> vector<8x128xf32>
    %28 = arith.addf %22, %27 : vector<8x128xf32>
    %c0_24 = arith.constant 0 : index
    %c0_25 = arith.constant 0 : index
    %c129 = arith.constant 129 : index
    %29 = vector.load %arg1[%c0_24, %c0_25, %c129] : memref<1x8x384xbf16, #tpu.memory_space<vmem>>, vector<1x8x128xbf16>
    %30 = vector.shape_cast %29 : vector<1x8x128xbf16> to vector<8x128xbf16>
    %c5 = arith.constant 5 : index
    %c0_26 = arith.constant 0 : index
    %c0_27 = arith.constant 0 : index
    %31 = vector.load %arg2[%c5, %c0_26, %c0_27] : memref<9x8x8xbf16, #tpu.memory_space<vmem>>, vector<1x8x8xbf16>
    %32 = vector.shape_cast %31 : vector<1x8x8xbf16> to vector<8x8xbf16>
    %cst_28 = arith.constant dense<0.000000e+00> : vector<8x128xf32>
    %33 = tpu.matmul %32, %30, %cst_28 {dimension_numbers = #tpu.dot_dimension_numbers<[1], [0], [0], [1], [0, 0, 1, 1], [], []>} : vector<8x8xbf16>, vector<8x128xbf16>, vector<8x128xf32> -> vector<8x128xf32>
    %34 = arith.addf %28, %33 : vector<8x128xf32>
    %c0_29 = arith.constant 0 : index
    %c0_30 = arith.constant 0 : index
    %c133 = arith.constant 133 : index
    %35 = vector.load %arg1[%c0_29, %c0_30, %c133] : memref<1x8x384xbf16, #tpu.memory_space<vmem>>, vector<1x8x128xbf16>
    %36 = vector.shape_cast %35 : vector<1x8x128xbf16> to vector<8x128xbf16>
    %c6 = arith.constant 6 : index
    %c0_31 = arith.constant 0 : index
    %c0_32 = arith.constant 0 : index
    %37 = vector.load %arg2[%c6, %c0_31, %c0_32] : memref<9x8x8xbf16, #tpu.memory_space<vmem>>, vector<1x8x8xbf16>
    %38 = vector.shape_cast %37 : vector<1x8x8xbf16> to vector<8x8xbf16>
    %cst_33 = arith.constant dense<0.000000e+00> : vector<8x128xf32>
    %39 = tpu.matmul %38, %36, %cst_33 {dimension_numbers = #tpu.dot_dimension_numbers<[1], [0], [0], [1], [0, 0, 1, 1], [], []>} : vector<8x8xbf16>, vector<8x128xbf16>, vector<8x128xf32> -> vector<8x128xf32>
    %40 = arith.addf %34, %39 : vector<8x128xf32>
    %c0_34 = arith.constant 0 : index
    %c0_35 = arith.constant 0 : index
    %c134 = arith.constant 134 : index
    %41 = vector.load %arg1[%c0_34, %c0_35, %c134] : memref<1x8x384xbf16, #tpu.memory_space<vmem>>, vector<1x8x128xbf16>
    %42 = vector.shape_cast %41 : vector<1x8x128xbf16> to vector<8x128xbf16>
    %c7 = arith.constant 7 : index
    %c0_36 = arith.constant 0 : index
    %c0_37 = arith.constant 0 : index
    %43 = vector.load %arg2[%c7, %c0_36, %c0_37] : memref<9x8x8xbf16, #tpu.memory_space<vmem>>, vector<1x8x8xbf16>
    %44 = vector.shape_cast %43 : vector<1x8x8xbf16> to vector<8x8xbf16>
    %cst_38 = arith.constant dense<0.000000e+00> : vector<8x128xf32>
    %45 = tpu.matmul %44, %42, %cst_38 {dimension_numbers = #tpu.dot_dimension_numbers<[1], [0], [0], [1], [0, 0, 1, 1], [], []>} : vector<8x8xbf16>, vector<8x128xbf16>, vector<8x128xf32> -> vector<8x128xf32>
    %46 = arith.addf %40, %45 : vector<8x128xf32>
    %c0_39 = arith.constant 0 : index
    %c0_40 = arith.constant 0 : index
    %c135 = arith.constant 135 : index
    %47 = vector.load %arg1[%c0_39, %c0_40, %c135] : memref<1x8x384xbf16, #tpu.memory_space<vmem>>, vector<1x8x128xbf16>
    %48 = vector.shape_cast %47 : vector<1x8x128xbf16> to vector<8x128xbf16>
    %c8 = arith.constant 8 : index
    %c0_41 = arith.constant 0 : index
    %c0_42 = arith.constant 0 : index
    %49 = vector.load %arg2[%c8, %c0_41, %c0_42] : memref<9x8x8xbf16, #tpu.memory_space<vmem>>, vector<1x8x8xbf16>
    %50 = vector.shape_cast %49 : vector<1x8x8xbf16> to vector<8x8xbf16>
    %cst_43 = arith.constant dense<0.000000e+00> : vector<8x128xf32>
    %51 = tpu.matmul %50, %48, %cst_43 {dimension_numbers = #tpu.dot_dimension_numbers<[1], [0], [0], [1], [0, 0, 1, 1], [], []>} : vector<8x8xbf16>, vector<8x128xbf16>, vector<8x128xf32> -> vector<8x128xf32>
    %52 = arith.addf %46, %51 : vector<8x128xf32>
    %c0_44 = arith.constant 0 : index
    %c0_45 = arith.constant 0 : index
    %53 = vector.load %arg3[%c0_44, %c0_45] : memref<8x1xf32, #tpu.memory_space<vmem>>, vector<8x1xf32>
    %54 = vector.broadcast %53 : vector<8x1xf32> to vector<8x128xf32>
    %55 = arith.addf %52, %54 : vector<8x128xf32>
    %cst_46 = arith.constant 0.000000e+00 : f32
    %56 = vector.broadcast %cst_46 : f32 to vector<8x128xf32>
    %57 = arith.maximumf %55, %56 : vector<8x128xf32>
    %c0_47 = arith.constant 0 : index
    %c0_48 = arith.constant 0 : index
    %58 = vector.load %arg4[%c0_47, %c0_48] : memref<1x128xf32, #tpu.memory_space<vmem>>, vector<1x128xf32>
    %59 = vector.broadcast %58 : vector<1x128xf32> to vector<8x128xf32>
    %60 = arith.mulf %57, %59 : vector<8x128xf32>
    %61 = arith.truncf %60 : vector<8x128xf32> to vector<8x128xbf16>
    %c0_49 = arith.constant 0 : index
    %c0_50 = arith.constant 0 : index
    %c0_51 = arith.constant 0 : index
    %62 = vector.load %arg5[%c0_49, %c0_50, %c0_51] : memref<1x8x128xbf16, #tpu.memory_space<vmem>>, vector<1x8x128xbf16>
    %63 = vector.shape_cast %62 : vector<1x8x128xbf16> to vector<8x128xbf16>
    %64 = vector.shape_cast %61 : vector<8x128xbf16> to vector<1x8x128xbf16>
    tpu.vector_store %arg5[%c0_49, %c0_50, %c0_51], %64 {strides = array<i32>} : memref<1x8x128xbf16, #tpu.memory_space<vmem>>, vector<1x8x128xbf16>,
    return
  }
  func.func @transform_0(%arg0: i32) -> (i32, i32, i32) {
    %c0_i32 = arith.constant 0 : i32
    %c0_i32_0 = arith.constant 0 : i32
    %c0_i32_1 = arith.constant 0 : i32
    return %arg0, %c0_i32, %c0_i32_0 : i32, i32, i32
  }
  func.func @transform_1(%arg0: i32) -> (i32, i32, i32) {
    %c0_i32 = arith.constant 0 : i32
    %c0_i32_0 = arith.constant 0 : i32
    %c0_i32_1 = arith.constant 0 : i32
    %c0_i32_2 = arith.constant 0 : i32
    return %c0_i32, %c0_i32_0, %c0_i32_1 : i32, i32, i32
  }
  func.func @transform_2(%arg0: i32) -> (i32, i32) {
    %c0_i32 = arith.constant 0 : i32
    %c0_i32_0 = arith.constant 0 : i32
    %c0_i32_1 = arith.constant 0 : i32
    return %c0_i32, %c0_i32_0 : i32, i32
  }
  func.func @transform_3(%arg0: i32) -> (i32, i32) {
    %c0_i32 = arith.constant 0 : i32
    %c0_i32_0 = arith.constant 0 : i32
    %c0_i32_1 = arith.constant 0 : i32
    return %c0_i32, %c0_i32_0 : i32, i32
  }
  func.func @transform_4(%arg0: i32) -> (i32, i32, i32) {
    %c0_i32 = arith.constant 0 : i32
    %c0_i32_0 = arith.constant 0 : i32
    %c0_i32_1 = arith.constant 0 : i32
    return %arg0, %c0_i32, %c0_i32_0 : i32, i32, i32
  }
}

module attributes {stable_mosaic.version = 11 : i64} {
  func.func @kernel(%arg0: i32, %arg1: memref<1x8x384xbf16, #tpu.memory_space<vmem>>, %arg2: memref<9x32x8xbf16, #tpu.memory_space<vmem>>, %arg3: memref<1x32x128xbf16, #tpu.memory_space<vmem>>) attributes {dimension_semantics = [#tpu.dimension_semantics<parallel>], iteration_bounds = array<i64: 2>, scalar_prefetch = 0 : i64, scratch_operands = 0 : i64, tpu.core_type = #tpu.core_type<tc>, window_params = [{transform_indices = @transform_0, window_bounds = array<i64: 1, 8, 384>}, {pipeline_mode = #tpu.pipeline_mode<synchronous>, transform_indices = @transform_1, window_bounds = array<i64: 9, 32, 8>}, {transform_indices = @transform_2, window_bounds = array<i64: 1, 32, 128>}]} {
    %c0 = arith.constant 0 : index
    %c0_0 = arith.constant 0 : index
    %c117 = arith.constant 117 : index
    %0 = vector.load %arg1[%c0, %c0_0, %c117] : memref<1x8x384xbf16, #tpu.memory_space<vmem>>, vector<1x8x128xbf16>
    %1 = vector.shape_cast %0 : vector<1x8x128xbf16> to vector<8x128xbf16>
    %c0_1 = arith.constant 0 : index
    %c0_2 = arith.constant 0 : index
    %c0_3 = arith.constant 0 : index
    %2 = vector.load %arg2[%c0_1, %c0_2, %c0_3] : memref<9x32x8xbf16, #tpu.memory_space<vmem>>, vector<1x32x8xbf16>
    %3 = vector.shape_cast %2 : vector<1x32x8xbf16> to vector<32x8xbf16>
    %cst = arith.constant dense<0.000000e+00> : vector<32x128xf32>
    %4 = tpu.matmul %3, %1, %cst {dimension_numbers = #tpu.dot_dimension_numbers<[1], [0], [0], [1], [0, 0, 1, 1], [], []>} : vector<32x8xbf16>, vector<8x128xbf16>, vector<32x128xf32> -> vector<32x128xf32>
    %c0_4 = arith.constant 0 : index
    %c0_5 = arith.constant 0 : index
    %c118 = arith.constant 118 : index
    %5 = vector.load %arg1[%c0_4, %c0_5, %c118] : memref<1x8x384xbf16, #tpu.memory_space<vmem>>, vector<1x8x128xbf16>
    %6 = vector.shape_cast %5 : vector<1x8x128xbf16> to vector<8x128xbf16>
    %c1 = arith.constant 1 : index
    %c0_6 = arith.constant 0 : index
    %c0_7 = arith.constant 0 : index
    %7 = vector.load %arg2[%c1, %c0_6, %c0_7] : memref<9x32x8xbf16, #tpu.memory_space<vmem>>, vector<1x32x8xbf16>
    %8 = vector.shape_cast %7 : vector<1x32x8xbf16> to vector<32x8xbf16>
    %cst_8 = arith.constant dense<0.000000e+00> : vector<32x128xf32>
    %9 = tpu.matmul %8, %6, %cst_8 {dimension_numbers = #tpu.dot_dimension_numbers<[1], [0], [0], [1], [0, 0, 1, 1], [], []>} : vector<32x8xbf16>, vector<8x128xbf16>, vector<32x128xf32> -> vector<32x128xf32>
    %10 = arith.addf %4, %9 : vector<32x128xf32>
    %c0_9 = arith.constant 0 : index
    %c0_10 = arith.constant 0 : index
    %c119 = arith.constant 119 : index
    %11 = vector.load %arg1[%c0_9, %c0_10, %c119] : memref<1x8x384xbf16, #tpu.memory_space<vmem>>, vector<1x8x128xbf16>
    %12 = vector.shape_cast %11 : vector<1x8x128xbf16> to vector<8x128xbf16>
    %c2 = arith.constant 2 : index
    %c0_11 = arith.constant 0 : index
    %c0_12 = arith.constant 0 : index
    %13 = vector.load %arg2[%c2, %c0_11, %c0_12] : memref<9x32x8xbf16, #tpu.memory_space<vmem>>, vector<1x32x8xbf16>
    %14 = vector.shape_cast %13 : vector<1x32x8xbf16> to vector<32x8xbf16>
    %cst_13 = arith.constant dense<0.000000e+00> : vector<32x128xf32>
    %15 = tpu.matmul %14, %12, %cst_13 {dimension_numbers = #tpu.dot_dimension_numbers<[1], [0], [0], [1], [0, 0, 1, 1], [], []>} : vector<32x8xbf16>, vector<8x128xbf16>, vector<32x128xf32> -> vector<32x128xf32>
    %16 = arith.addf %10, %15 : vector<32x128xf32>
    %c0_14 = arith.constant 0 : index
    %c0_15 = arith.constant 0 : index
    %c127 = arith.constant 127 : index
    %17 = vector.load %arg1[%c0_14, %c0_15, %c127] : memref<1x8x384xbf16, #tpu.memory_space<vmem>>, vector<1x8x128xbf16>
    %18 = vector.shape_cast %17 : vector<1x8x128xbf16> to vector<8x128xbf16>
    %c3 = arith.constant 3 : index
    %c0_16 = arith.constant 0 : index
    %c0_17 = arith.constant 0 : index
    %19 = vector.load %arg2[%c3, %c0_16, %c0_17] : memref<9x32x8xbf16, #tpu.memory_space<vmem>>, vector<1x32x8xbf16>
    %20 = vector.shape_cast %19 : vector<1x32x8xbf16> to vector<32x8xbf16>
    %cst_18 = arith.constant dense<0.000000e+00> : vector<32x128xf32>
    %21 = tpu.matmul %20, %18, %cst_18 {dimension_numbers = #tpu.dot_dimension_numbers<[1], [0], [0], [1], [0, 0, 1, 1], [], []>} : vector<32x8xbf16>, vector<8x128xbf16>, vector<32x128xf32> -> vector<32x128xf32>
    %22 = arith.addf %16, %21 : vector<32x128xf32>
    %c0_19 = arith.constant 0 : index
    %c0_20 = arith.constant 0 : index
    %c128 = arith.constant 128 : index
    %23 = vector.load %arg1[%c0_19, %c0_20, %c128] : memref<1x8x384xbf16, #tpu.memory_space<vmem>>, vector<1x8x128xbf16>
    %24 = vector.shape_cast %23 : vector<1x8x128xbf16> to vector<8x128xbf16>
    %c4 = arith.constant 4 : index
    %c0_21 = arith.constant 0 : index
    %c0_22 = arith.constant 0 : index
    %25 = vector.load %arg2[%c4, %c0_21, %c0_22] : memref<9x32x8xbf16, #tpu.memory_space<vmem>>, vector<1x32x8xbf16>
    %26 = vector.shape_cast %25 : vector<1x32x8xbf16> to vector<32x8xbf16>
    %cst_23 = arith.constant dense<0.000000e+00> : vector<32x128xf32>
    %27 = tpu.matmul %26, %24, %cst_23 {dimension_numbers = #tpu.dot_dimension_numbers<[1], [0], [0], [1], [0, 0, 1, 1], [], []>} : vector<32x8xbf16>, vector<8x128xbf16>, vector<32x128xf32> -> vector<32x128xf32>
    %28 = arith.addf %22, %27 : vector<32x128xf32>
    %c0_24 = arith.constant 0 : index
    %c0_25 = arith.constant 0 : index
    %c129 = arith.constant 129 : index
    %29 = vector.load %arg1[%c0_24, %c0_25, %c129] : memref<1x8x384xbf16, #tpu.memory_space<vmem>>, vector<1x8x128xbf16>
    %30 = vector.shape_cast %29 : vector<1x8x128xbf16> to vector<8x128xbf16>
    %c5 = arith.constant 5 : index
    %c0_26 = arith.constant 0 : index
    %c0_27 = arith.constant 0 : index
    %31 = vector.load %arg2[%c5, %c0_26, %c0_27] : memref<9x32x8xbf16, #tpu.memory_space<vmem>>, vector<1x32x8xbf16>
    %32 = vector.shape_cast %31 : vector<1x32x8xbf16> to vector<32x8xbf16>
    %cst_28 = arith.constant dense<0.000000e+00> : vector<32x128xf32>
    %33 = tpu.matmul %32, %30, %cst_28 {dimension_numbers = #tpu.dot_dimension_numbers<[1], [0], [0], [1], [0, 0, 1, 1], [], []>} : vector<32x8xbf16>, vector<8x128xbf16>, vector<32x128xf32> -> vector<32x128xf32>
    %34 = arith.addf %28, %33 : vector<32x128xf32>
    %c0_29 = arith.constant 0 : index
    %c0_30 = arith.constant 0 : index
    %c137 = arith.constant 137 : index
    %35 = vector.load %arg1[%c0_29, %c0_30, %c137] : memref<1x8x384xbf16, #tpu.memory_space<vmem>>, vector<1x8x128xbf16>
    %36 = vector.shape_cast %35 : vector<1x8x128xbf16> to vector<8x128xbf16>
    %c6 = arith.constant 6 : index
    %c0_31 = arith.constant 0 : index
    %c0_32 = arith.constant 0 : index
    %37 = vector.load %arg2[%c6, %c0_31, %c0_32] : memref<9x32x8xbf16, #tpu.memory_space<vmem>>, vector<1x32x8xbf16>
    %38 = vector.shape_cast %37 : vector<1x32x8xbf16> to vector<32x8xbf16>
    %cst_33 = arith.constant dense<0.000000e+00> : vector<32x128xf32>
    %39 = tpu.matmul %38, %36, %cst_33 {dimension_numbers = #tpu.dot_dimension_numbers<[1], [0], [0], [1], [0, 0, 1, 1], [], []>} : vector<32x8xbf16>, vector<8x128xbf16>, vector<32x128xf32> -> vector<32x128xf32>
    %40 = arith.addf %34, %39 : vector<32x128xf32>
    %c0_34 = arith.constant 0 : index
    %c0_35 = arith.constant 0 : index
    %c138 = arith.constant 138 : index
    %41 = vector.load %arg1[%c0_34, %c0_35, %c138] : memref<1x8x384xbf16, #tpu.memory_space<vmem>>, vector<1x8x128xbf16>
    %42 = vector.shape_cast %41 : vector<1x8x128xbf16> to vector<8x128xbf16>
    %c7 = arith.constant 7 : index
    %c0_36 = arith.constant 0 : index
    %c0_37 = arith.constant 0 : index
    %43 = vector.load %arg2[%c7, %c0_36, %c0_37] : memref<9x32x8xbf16, #tpu.memory_space<vmem>>, vector<1x32x8xbf16>
    %44 = vector.shape_cast %43 : vector<1x32x8xbf16> to vector<32x8xbf16>
    %cst_38 = arith.constant dense<0.000000e+00> : vector<32x128xf32>
    %45 = tpu.matmul %44, %42, %cst_38 {dimension_numbers = #tpu.dot_dimension_numbers<[1], [0], [0], [1], [0, 0, 1, 1], [], []>} : vector<32x8xbf16>, vector<8x128xbf16>, vector<32x128xf32> -> vector<32x128xf32>
    %46 = arith.addf %40, %45 : vector<32x128xf32>
    %c0_39 = arith.constant 0 : index
    %c0_40 = arith.constant 0 : index
    %c139 = arith.constant 139 : index
    %47 = vector.load %arg1[%c0_39, %c0_40, %c139] : memref<1x8x384xbf16, #tpu.memory_space<vmem>>, vector<1x8x128xbf16>
    %48 = vector.shape_cast %47 : vector<1x8x128xbf16> to vector<8x128xbf16>
    %c8 = arith.constant 8 : index
    %c0_41 = arith.constant 0 : index
    %c0_42 = arith.constant 0 : index
    %49 = vector.load %arg2[%c8, %c0_41, %c0_42] : memref<9x32x8xbf16, #tpu.memory_space<vmem>>, vector<1x32x8xbf16>
    %50 = vector.shape_cast %49 : vector<1x32x8xbf16> to vector<32x8xbf16>
    %cst_43 = arith.constant dense<0.000000e+00> : vector<32x128xf32>
    %51 = tpu.matmul %50, %48, %cst_43 {dimension_numbers = #tpu.dot_dimension_numbers<[1], [0], [0], [1], [0, 0, 1, 1], [], []>} : vector<32x8xbf16>, vector<8x128xbf16>, vector<32x128xf32> -> vector<32x128xf32>
    %52 = arith.addf %46, %51 : vector<32x128xf32>
    %53 = arith.truncf %52 : vector<32x128xf32> to vector<32x128xbf16>
    %c0_44 = arith.constant 0 : index
    %c0_45 = arith.constant 0 : index
    %c0_46 = arith.constant 0 : index
    %54 = vector.load %arg3[%c0_44, %c0_45, %c0_46] : memref<1x32x128xbf16, #tpu.memory_space<vmem>>, vector<1x32x128xbf16>
    %55 = vector.shape_cast %54 : vector<1x32x128xbf16> to vector<32x128xbf16>
    %56 = vector.shape_cast %53 : vector<32x128xbf16> to vector<1x32x128xbf16>
    tpu.vector_store %arg3[%c0_44, %c0_45, %c0_46], %56 {strides = array<i32>} : memref<1x32x128xbf16, #tpu.memory_space<vmem>>, vector<1x32x128xbf16>,
    return
  }
  func.func @transform_0(%arg0: i32) -> (i32, i32, i32) {
    %c0_i32 = arith.constant 0 : i32
    %c0_i32_0 = arith.constant 0 : i32
    %c0_i32_1 = arith.constant 0 : i32
    return %arg0, %c0_i32, %c0_i32_0 : i32, i32, i32
  }
  func.func @transform_1(%arg0: i32) -> (i32, i32, i32) {
    %c0_i32 = arith.constant 0 : i32
    %c0_i32_0 = arith.constant 0 : i32
    %c0_i32_1 = arith.constant 0 : i32
    %c0_i32_2 = arith.constant 0 : i32
    return %c0_i32, %c0_i32_0, %c0_i32_1 : i32, i32, i32
  }
  func.func @transform_2(%arg0: i32) -> (i32, i32, i32) {
    %c0_i32 = arith.constant 0 : i32
    %c0_i32_0 = arith.constant 0 : i32
    %c0_i32_1 = arith.constant 0 : i32
    return %arg0, %c0_i32, %c0_i32_0 : i32, i32, i32
  }
}

module attributes {stable_mosaic.version = 11 : i64} {
  func.func @kernel(%arg0: i32, %arg1: memref<1x8x384xbf16, #tpu.memory_space<vmem>>, %arg2: memref<9x8x8xbf16, #tpu.memory_space<vmem>>, %arg3: memref<8x1xf32, #tpu.memory_space<vmem>>, %arg4: memref<1x128xf32, #tpu.memory_space<vmem>>, %arg5: memref<1x8x128xbf16, #tpu.memory_space<vmem>>) attributes {dimension_semantics = [#tpu.dimension_semantics<parallel>], iteration_bounds = array<i64: 2>, scalar_prefetch = 0 : i64, scratch_operands = 0 : i64, tpu.core_type = #tpu.core_type<tc>, window_params = [{transform_indices = @transform_0, window_bounds = array<i64: 1, 8, 384>}, {pipeline_mode = #tpu.pipeline_mode<synchronous>, transform_indices = @transform_1, window_bounds = array<i64: 9, 8, 8>}, {pipeline_mode = #tpu.pipeline_mode<synchronous>, transform_indices = @transform_2, window_bounds = array<i64: 8, 1>}, {pipeline_mode = #tpu.pipeline_mode<synchronous>, transform_indices = @transform_3, window_bounds = array<i64: 1, 128>}, {transform_indices = @transform_4, window_bounds = array<i64: 1, 8, 128>}]} {
    %c0 = arith.constant 0 : index
    %c0_0 = arith.constant 0 : index
    %c117 = arith.constant 117 : index
    %0 = vector.load %arg1[%c0, %c0_0, %c117] : memref<1x8x384xbf16, #tpu.memory_space<vmem>>, vector<1x8x128xbf16>
    %1 = vector.shape_cast %0 : vector<1x8x128xbf16> to vector<8x128xbf16>
    %c0_1 = arith.constant 0 : index
    %c0_2 = arith.constant 0 : index
    %c0_3 = arith.constant 0 : index
    %2 = vector.load %arg2[%c0_1, %c0_2, %c0_3] : memref<9x8x8xbf16, #tpu.memory_space<vmem>>, vector<1x8x8xbf16>
    %3 = vector.shape_cast %2 : vector<1x8x8xbf16> to vector<8x8xbf16>
    %cst = arith.constant dense<0.000000e+00> : vector<8x128xf32>
    %4 = tpu.matmul %3, %1, %cst {dimension_numbers = #tpu.dot_dimension_numbers<[1], [0], [0], [1], [0, 0, 1, 1], [], []>} : vector<8x8xbf16>, vector<8x128xbf16>, vector<8x128xf32> -> vector<8x128xf32>
    %c0_4 = arith.constant 0 : index
    %c0_5 = arith.constant 0 : index
    %c118 = arith.constant 118 : index
    %5 = vector.load %arg1[%c0_4, %c0_5, %c118] : memref<1x8x384xbf16, #tpu.memory_space<vmem>>, vector<1x8x128xbf16>
    %6 = vector.shape_cast %5 : vector<1x8x128xbf16> to vector<8x128xbf16>
    %c1 = arith.constant 1 : index
    %c0_6 = arith.constant 0 : index
    %c0_7 = arith.constant 0 : index
    %7 = vector.load %arg2[%c1, %c0_6, %c0_7] : memref<9x8x8xbf16, #tpu.memory_space<vmem>>, vector<1x8x8xbf16>
    %8 = vector.shape_cast %7 : vector<1x8x8xbf16> to vector<8x8xbf16>
    %cst_8 = arith.constant dense<0.000000e+00> : vector<8x128xf32>
    %9 = tpu.matmul %8, %6, %cst_8 {dimension_numbers = #tpu.dot_dimension_numbers<[1], [0], [0], [1], [0, 0, 1, 1], [], []>} : vector<8x8xbf16>, vector<8x128xbf16>, vector<8x128xf32> -> vector<8x128xf32>
    %10 = arith.addf %4, %9 : vector<8x128xf32>
    %c0_9 = arith.constant 0 : index
    %c0_10 = arith.constant 0 : index
    %c119 = arith.constant 119 : index
    %11 = vector.load %arg1[%c0_9, %c0_10, %c119] : memref<1x8x384xbf16, #tpu.memory_space<vmem>>, vector<1x8x128xbf16>
    %12 = vector.shape_cast %11 : vector<1x8x128xbf16> to vector<8x128xbf16>
    %c2 = arith.constant 2 : index
    %c0_11 = arith.constant 0 : index
    %c0_12 = arith.constant 0 : index
    %13 = vector.load %arg2[%c2, %c0_11, %c0_12] : memref<9x8x8xbf16, #tpu.memory_space<vmem>>, vector<1x8x8xbf16>
    %14 = vector.shape_cast %13 : vector<1x8x8xbf16> to vector<8x8xbf16>
    %cst_13 = arith.constant dense<0.000000e+00> : vector<8x128xf32>
    %15 = tpu.matmul %14, %12, %cst_13 {dimension_numbers = #tpu.dot_dimension_numbers<[1], [0], [0], [1], [0, 0, 1, 1], [], []>} : vector<8x8xbf16>, vector<8x128xbf16>, vector<8x128xf32> -> vector<8x128xf32>
    %16 = arith.addf %10, %15 : vector<8x128xf32>
    %c0_14 = arith.constant 0 : index
    %c0_15 = arith.constant 0 : index
    %c127 = arith.constant 127 : index
    %17 = vector.load %arg1[%c0_14, %c0_15, %c127] : memref<1x8x384xbf16, #tpu.memory_space<vmem>>, vector<1x8x128xbf16>
    %18 = vector.shape_cast %17 : vector<1x8x128xbf16> to vector<8x128xbf16>
    %c3 = arith.constant 3 : index
    %c0_16 = arith.constant 0 : index
    %c0_17 = arith.constant 0 : index
    %19 = vector.load %arg2[%c3, %c0_16, %c0_17] : memref<9x8x8xbf16, #tpu.memory_space<vmem>>, vector<1x8x8xbf16>
    %20 = vector.shape_cast %19 : vector<1x8x8xbf16> to vector<8x8xbf16>
    %cst_18 = arith.constant dense<0.000000e+00> : vector<8x128xf32>
    %21 = tpu.matmul %20, %18, %cst_18 {dimension_numbers = #tpu.dot_dimension_numbers<[1], [0], [0], [1], [0, 0, 1, 1], [], []>} : vector<8x8xbf16>, vector<8x128xbf16>, vector<8x128xf32> -> vector<8x128xf32>
    %22 = arith.addf %16, %21 : vector<8x128xf32>
    %c0_19 = arith.constant 0 : index
    %c0_20 = arith.constant 0 : index
    %c128 = arith.constant 128 : index
    %23 = vector.load %arg1[%c0_19, %c0_20, %c128] : memref<1x8x384xbf16, #tpu.memory_space<vmem>>, vector<1x8x128xbf16>
    %24 = vector.shape_cast %23 : vector<1x8x128xbf16> to vector<8x128xbf16>
    %c4 = arith.constant 4 : index
    %c0_21 = arith.constant 0 : index
    %c0_22 = arith.constant 0 : index
    %25 = vector.load %arg2[%c4, %c0_21, %c0_22] : memref<9x8x8xbf16, #tpu.memory_space<vmem>>, vector<1x8x8xbf16>
    %26 = vector.shape_cast %25 : vector<1x8x8xbf16> to vector<8x8xbf16>
    %cst_23 = arith.constant dense<0.000000e+00> : vector<8x128xf32>
    %27 = tpu.matmul %26, %24, %cst_23 {dimension_numbers = #tpu.dot_dimension_numbers<[1], [0], [0], [1], [0, 0, 1, 1], [], []>} : vector<8x8xbf16>, vector<8x128xbf16>, vector<8x128xf32> -> vector<8x128xf32>
    %28 = arith.addf %22, %27 : vector<8x128xf32>
    %c0_24 = arith.constant 0 : index
    %c0_25 = arith.constant 0 : index
    %c129 = arith.constant 129 : index
    %29 = vector.load %arg1[%c0_24, %c0_25, %c129] : memref<1x8x384xbf16, #tpu.memory_space<vmem>>, vector<1x8x128xbf16>
    %30 = vector.shape_cast %29 : vector<1x8x128xbf16> to vector<8x128xbf16>
    %c5 = arith.constant 5 : index
    %c0_26 = arith.constant 0 : index
    %c0_27 = arith.constant 0 : index
    %31 = vector.load %arg2[%c5, %c0_26, %c0_27] : memref<9x8x8xbf16, #tpu.memory_space<vmem>>, vector<1x8x8xbf16>
    %32 = vector.shape_cast %31 : vector<1x8x8xbf16> to vector<8x8xbf16>
    %cst_28 = arith.constant dense<0.000000e+00> : vector<8x128xf32>
    %33 = tpu.matmul %32, %30, %cst_28 {dimension_numbers = #tpu.dot_dimension_numbers<[1], [0], [0], [1], [0, 0, 1, 1], [], []>} : vector<8x8xbf16>, vector<8x128xbf16>, vector<8x128xf32> -> vector<8x128xf32>
    %34 = arith.addf %28, %33 : vector<8x128xf32>
    %c0_29 = arith.constant 0 : index
    %c0_30 = arith.constant 0 : index
    %c137 = arith.constant 137 : index
    %35 = vector.load %arg1[%c0_29, %c0_30, %c137] : memref<1x8x384xbf16, #tpu.memory_space<vmem>>, vector<1x8x128xbf16>
    %36 = vector.shape_cast %35 : vector<1x8x128xbf16> to vector<8x128xbf16>
    %c6 = arith.constant 6 : index
    %c0_31 = arith.constant 0 : index
    %c0_32 = arith.constant 0 : index
    %37 = vector.load %arg2[%c6, %c0_31, %c0_32] : memref<9x8x8xbf16, #tpu.memory_space<vmem>>, vector<1x8x8xbf16>
    %38 = vector.shape_cast %37 : vector<1x8x8xbf16> to vector<8x8xbf16>
    %cst_33 = arith.constant dense<0.000000e+00> : vector<8x128xf32>
    %39 = tpu.matmul %38, %36, %cst_33 {dimension_numbers = #tpu.dot_dimension_numbers<[1], [0], [0], [1], [0, 0, 1, 1], [], []>} : vector<8x8xbf16>, vector<8x128xbf16>, vector<8x128xf32> -> vector<8x128xf32>
    %40 = arith.addf %34, %39 : vector<8x128xf32>
    %c0_34 = arith.constant 0 : index
    %c0_35 = arith.constant 0 : index
    %c138 = arith.constant 138 : index
    %41 = vector.load %arg1[%c0_34, %c0_35, %c138] : memref<1x8x384xbf16, #tpu.memory_space<vmem>>, vector<1x8x128xbf16>
    %42 = vector.shape_cast %41 : vector<1x8x128xbf16> to vector<8x128xbf16>
    %c7 = arith.constant 7 : index
    %c0_36 = arith.constant 0 : index
    %c0_37 = arith.constant 0 : index
    %43 = vector.load %arg2[%c7, %c0_36, %c0_37] : memref<9x8x8xbf16, #tpu.memory_space<vmem>>, vector<1x8x8xbf16>
    %44 = vector.shape_cast %43 : vector<1x8x8xbf16> to vector<8x8xbf16>
    %cst_38 = arith.constant dense<0.000000e+00> : vector<8x128xf32>
    %45 = tpu.matmul %44, %42, %cst_38 {dimension_numbers = #tpu.dot_dimension_numbers<[1], [0], [0], [1], [0, 0, 1, 1], [], []>} : vector<8x8xbf16>, vector<8x128xbf16>, vector<8x128xf32> -> vector<8x128xf32>
    %46 = arith.addf %40, %45 : vector<8x128xf32>
    %c0_39 = arith.constant 0 : index
    %c0_40 = arith.constant 0 : index
    %c139 = arith.constant 139 : index
    %47 = vector.load %arg1[%c0_39, %c0_40, %c139] : memref<1x8x384xbf16, #tpu.memory_space<vmem>>, vector<1x8x128xbf16>
    %48 = vector.shape_cast %47 : vector<1x8x128xbf16> to vector<8x128xbf16>
    %c8 = arith.constant 8 : index
    %c0_41 = arith.constant 0 : index
    %c0_42 = arith.constant 0 : index
    %49 = vector.load %arg2[%c8, %c0_41, %c0_42] : memref<9x8x8xbf16, #tpu.memory_space<vmem>>, vector<1x8x8xbf16>
    %50 = vector.shape_cast %49 : vector<1x8x8xbf16> to vector<8x8xbf16>
    %cst_43 = arith.constant dense<0.000000e+00> : vector<8x128xf32>
    %51 = tpu.matmul %50, %48, %cst_43 {dimension_numbers = #tpu.dot_dimension_numbers<[1], [0], [0], [1], [0, 0, 1, 1], [], []>} : vector<8x8xbf16>, vector<8x128xbf16>, vector<8x128xf32> -> vector<8x128xf32>
    %52 = arith.addf %46, %51 : vector<8x128xf32>
    %c0_44 = arith.constant 0 : index
    %c0_45 = arith.constant 0 : index
    %53 = vector.load %arg3[%c0_44, %c0_45] : memref<8x1xf32, #tpu.memory_space<vmem>>, vector<8x1xf32>
    %54 = vector.broadcast %53 : vector<8x1xf32> to vector<8x128xf32>
    %55 = arith.addf %52, %54 : vector<8x128xf32>
    %cst_46 = arith.constant 0.000000e+00 : f32
    %56 = vector.broadcast %cst_46 : f32 to vector<8x128xf32>
    %57 = arith.maximumf %55, %56 : vector<8x128xf32>
    %c0_47 = arith.constant 0 : index
    %c0_48 = arith.constant 0 : index
    %58 = vector.load %arg4[%c0_47, %c0_48] : memref<1x128xf32, #tpu.memory_space<vmem>>, vector<1x128xf32>
    %59 = vector.broadcast %58 : vector<1x128xf32> to vector<8x128xf32>
    %60 = arith.mulf %57, %59 : vector<8x128xf32>
    %61 = arith.truncf %60 : vector<8x128xf32> to vector<8x128xbf16>
    %c0_49 = arith.constant 0 : index
    %c0_50 = arith.constant 0 : index
    %c0_51 = arith.constant 0 : index
    %62 = vector.load %arg5[%c0_49, %c0_50, %c0_51] : memref<1x8x128xbf16, #tpu.memory_space<vmem>>, vector<1x8x128xbf16>
    %63 = vector.shape_cast %62 : vector<1x8x128xbf16> to vector<8x128xbf16>
    %64 = vector.shape_cast %61 : vector<8x128xbf16> to vector<1x8x128xbf16>
    tpu.vector_store %arg5[%c0_49, %c0_50, %c0_51], %64 {strides = array<i32>} : memref<1x8x128xbf16, #tpu.memory_space<vmem>>, vector<1x8x128xbf16>,
    return
  }
  func.func @transform_0(%arg0: i32) -> (i32, i32, i32) {
    %c0_i32 = arith.constant 0 : i32
    %c0_i32_0 = arith.constant 0 : i32
    %c0_i32_1 = arith.constant 0 : i32
    return %arg0, %c0_i32, %c0_i32_0 : i32, i32, i32
  }
  func.func @transform_1(%arg0: i32) -> (i32, i32, i32) {
    %c0_i32 = arith.constant 0 : i32
    %c0_i32_0 = arith.constant 0 : i32
    %c0_i32_1 = arith.constant 0 : i32
    %c0_i32_2 = arith.constant 0 : i32
    return %c0_i32, %c0_i32_0, %c0_i32_1 : i32, i32, i32
  }
  func.func @transform_2(%arg0: i32) -> (i32, i32) {
    %c0_i32 = arith.constant 0 : i32
    %c0_i32_0 = arith.constant 0 : i32
    %c0_i32_1 = arith.constant 0 : i32
    return %c0_i32, %c0_i32_0 : i32, i32
  }
  func.func @transform_3(%arg0: i32) -> (i32, i32) {
    %c0_i32 = arith.constant 0 : i32
    %c0_i32_0 = arith.constant 0 : i32
    %c0_i32_1 = arith.constant 0 : i32
    return %c0_i32, %c0_i32_0 : i32, i32
  }
  func.func @transform_4(%arg0: i32) -> (i32, i32, i32) {
    %c0_i32 = arith.constant 0 : i32
    %c0_i32_0 = arith.constant 0 : i32
    %c0_i32_1 = arith.constant 0 : i32
    return %arg0, %c0_i32, %c0_i32_0 : i32, i32, i32
  }
}

module attributes {stable_mosaic.version = 11 : i64} {
  func.func @kernel(%arg0: i32, %arg1: memref<1x8x640xbf16, #tpu.memory_space<vmem>>, %arg2: memref<9x8x8xbf16, #tpu.memory_space<vmem>>, %arg3: memref<8x1xf32, #tpu.memory_space<vmem>>, %arg4: memref<1x8x384xbf16, #tpu.memory_space<vmem>>, %arg5: memref<1x8x384xbf16, #tpu.memory_space<vmem>>, %arg6: memref<1x8x384xf32, #tpu.memory_space<vmem>>) attributes {dimension_semantics = [#tpu.dimension_semantics<parallel>], iteration_bounds = array<i64: 2>, scalar_prefetch = 0 : i64, scratch_operands = 0 : i64, tpu.core_type = #tpu.core_type<tc>, window_params = [{transform_indices = @transform_0, window_bounds = array<i64: 1, 8, 640>}, {pipeline_mode = #tpu.pipeline_mode<synchronous>, transform_indices = @transform_1, window_bounds = array<i64: 9, 8, 8>}, {pipeline_mode = #tpu.pipeline_mode<synchronous>, transform_indices = @transform_2, window_bounds = array<i64: 8, 1>}, {transform_indices = @transform_3, window_bounds = array<i64: 1, 8, 384>}, {transform_indices = @transform_4, window_bounds = array<i64: 1, 8, 384>}, {transform_indices = @transform_5, window_bounds = array<i64: 1, 8, 384>}]} {
    %c0 = arith.constant 0 : index
    %c0_0 = arith.constant 0 : index
    %c109 = arith.constant 109 : index
    %0 = vector.load %arg1[%c0, %c0_0, %c109] : memref<1x8x640xbf16, #tpu.memory_space<vmem>>, vector<1x8x384xbf16>
    %1 = vector.shape_cast %0 : vector<1x8x384xbf16> to vector<8x384xbf16>
    %c0_1 = arith.constant 0 : index
    %c0_2 = arith.constant 0 : index
    %c0_3 = arith.constant 0 : index
    %2 = vector.load %arg2[%c0_1, %c0_2, %c0_3] : memref<9x8x8xbf16, #tpu.memory_space<vmem>>, vector<1x8x8xbf16>
    %3 = vector.shape_cast %2 : vector<1x8x8xbf16> to vector<8x8xbf16>
    %cst = arith.constant dense<0.000000e+00> : vector<8x384xf32>
    %4 = tpu.matmul %3, %1, %cst {dimension_numbers = #tpu.dot_dimension_numbers<[1], [0], [0], [1], [0, 0, 1, 1], [], []>} : vector<8x8xbf16>, vector<8x384xbf16>, vector<8x384xf32> -> vector<8x384xf32>
    %c0_4 = arith.constant 0 : index
    %c0_5 = arith.constant 0 : index
    %c110 = arith.constant 110 : index
    %5 = vector.load %arg1[%c0_4, %c0_5, %c110] : memref<1x8x640xbf16, #tpu.memory_space<vmem>>, vector<1x8x384xbf16>
    %6 = vector.shape_cast %5 : vector<1x8x384xbf16> to vector<8x384xbf16>
    %c1 = arith.constant 1 : index
    %c0_6 = arith.constant 0 : index
    %c0_7 = arith.constant 0 : index
    %7 = vector.load %arg2[%c1, %c0_6, %c0_7] : memref<9x8x8xbf16, #tpu.memory_space<vmem>>, vector<1x8x8xbf16>
    %8 = vector.shape_cast %7 : vector<1x8x8xbf16> to vector<8x8xbf16>
    %cst_8 = arith.constant dense<0.000000e+00> : vector<8x384xf32>
    %9 = tpu.matmul %8, %6, %cst_8 {dimension_numbers = #tpu.dot_dimension_numbers<[1], [0], [0], [1], [0, 0, 1, 1], [], []>} : vector<8x8xbf16>, vector<8x384xbf16>, vector<8x384xf32> -> vector<8x384xf32>
    %10 = arith.addf %4, %9 : vector<8x384xf32>
    %c0_9 = arith.constant 0 : index
    %c0_10 = arith.constant 0 : index
    %c111 = arith.constant 111 : index
    %11 = vector.load %arg1[%c0_9, %c0_10, %c111] : memref<1x8x640xbf16, #tpu.memory_space<vmem>>, vector<1x8x384xbf16>
    %12 = vector.shape_cast %11 : vector<1x8x384xbf16> to vector<8x384xbf16>
    %c2 = arith.constant 2 : index
    %c0_11 = arith.constant 0 : index
    %c0_12 = arith.constant 0 : index
    %13 = vector.load %arg2[%c2, %c0_11, %c0_12] : memref<9x8x8xbf16, #tpu.memory_space<vmem>>, vector<1x8x8xbf16>
    %14 = vector.shape_cast %13 : vector<1x8x8xbf16> to vector<8x8xbf16>
    %cst_13 = arith.constant dense<0.000000e+00> : vector<8x384xf32>
    %15 = tpu.matmul %14, %12, %cst_13 {dimension_numbers = #tpu.dot_dimension_numbers<[1], [0], [0], [1], [0, 0, 1, 1], [], []>} : vector<8x8xbf16>, vector<8x384xbf16>, vector<8x384xf32> -> vector<8x384xf32>
    %16 = arith.addf %10, %15 : vector<8x384xf32>
    %c0_14 = arith.constant 0 : index
    %c0_15 = arith.constant 0 : index
    %c127 = arith.constant 127 : index
    %17 = vector.load %arg1[%c0_14, %c0_15, %c127] : memref<1x8x640xbf16, #tpu.memory_space<vmem>>, vector<1x8x384xbf16>
    %18 = vector.shape_cast %17 : vector<1x8x384xbf16> to vector<8x384xbf16>
    %c3 = arith.constant 3 : index
    %c0_16 = arith.constant 0 : index
    %c0_17 = arith.constant 0 : index
    %19 = vector.load %arg2[%c3, %c0_16, %c0_17] : memref<9x8x8xbf16, #tpu.memory_space<vmem>>, vector<1x8x8xbf16>
    %20 = vector.shape_cast %19 : vector<1x8x8xbf16> to vector<8x8xbf16>
    %cst_18 = arith.constant dense<0.000000e+00> : vector<8x384xf32>
    %21 = tpu.matmul %20, %18, %cst_18 {dimension_numbers = #tpu.dot_dimension_numbers<[1], [0], [0], [1], [0, 0, 1, 1], [], []>} : vector<8x8xbf16>, vector<8x384xbf16>, vector<8x384xf32> -> vector<8x384xf32>
    %22 = arith.addf %16, %21 : vector<8x384xf32>
    %c0_19 = arith.constant 0 : index
    %c0_20 = arith.constant 0 : index
    %c128 = arith.constant 128 : index
    %23 = vector.load %arg1[%c0_19, %c0_20, %c128] : memref<1x8x640xbf16, #tpu.memory_space<vmem>>, vector<1x8x384xbf16>
    %24 = vector.shape_cast %23 : vector<1x8x384xbf16> to vector<8x384xbf16>
    %c4 = arith.constant 4 : index
    %c0_21 = arith.constant 0 : index
    %c0_22 = arith.constant 0 : index
    %25 = vector.load %arg2[%c4, %c0_21, %c0_22] : memref<9x8x8xbf16, #tpu.memory_space<vmem>>, vector<1x8x8xbf16>
    %26 = vector.shape_cast %25 : vector<1x8x8xbf16> to vector<8x8xbf16>
    %cst_23 = arith.constant dense<0.000000e+00> : vector<8x384xf32>
    %27 = tpu.matmul %26, %24, %cst_23 {dimension_numbers = #tpu.dot_dimension_numbers<[1], [0], [0], [1], [0, 0, 1, 1], [], []>} : vector<8x8xbf16>, vector<8x384xbf16>, vector<8x384xf32> -> vector<8x384xf32>
    %28 = arith.addf %22, %27 : vector<8x384xf32>
    %c0_24 = arith.constant 0 : index
    %c0_25 = arith.constant 0 : index
    %c129 = arith.constant 129 : index
    %29 = vector.load %arg1[%c0_24, %c0_25, %c129] : memref<1x8x640xbf16, #tpu.memory_space<vmem>>, vector<1x8x384xbf16>
    %30 = vector.shape_cast %29 : vector<1x8x384xbf16> to vector<8x384xbf16>
    %c5 = arith.constant 5 : index
    %c0_26 = arith.constant 0 : index
    %c0_27 = arith.constant 0 : index
    %31 = vector.load %arg2[%c5, %c0_26, %c0_27] : memref<9x8x8xbf16, #tpu.memory_space<vmem>>, vector<1x8x8xbf16>
    %32 = vector.shape_cast %31 : vector<1x8x8xbf16> to vector<8x8xbf16>
    %cst_28 = arith.constant dense<0.000000e+00> : vector<8x384xf32>
    %33 = tpu.matmul %32, %30, %cst_28 {dimension_numbers = #tpu.dot_dimension_numbers<[1], [0], [0], [1], [0, 0, 1, 1], [], []>} : vector<8x8xbf16>, vector<8x384xbf16>, vector<8x384xf32> -> vector<8x384xf32>
    %34 = arith.addf %28, %33 : vector<8x384xf32>
    %c0_29 = arith.constant 0 : index
    %c0_30 = arith.constant 0 : index
    %c145 = arith.constant 145 : index
    %35 = vector.load %arg1[%c0_29, %c0_30, %c145] : memref<1x8x640xbf16, #tpu.memory_space<vmem>>, vector<1x8x384xbf16>
    %36 = vector.shape_cast %35 : vector<1x8x384xbf16> to vector<8x384xbf16>
    %c6 = arith.constant 6 : index
    %c0_31 = arith.constant 0 : index
    %c0_32 = arith.constant 0 : index
    %37 = vector.load %arg2[%c6, %c0_31, %c0_32] : memref<9x8x8xbf16, #tpu.memory_space<vmem>>, vector<1x8x8xbf16>
    %38 = vector.shape_cast %37 : vector<1x8x8xbf16> to vector<8x8xbf16>
    %cst_33 = arith.constant dense<0.000000e+00> : vector<8x384xf32>
    %39 = tpu.matmul %38, %36, %cst_33 {dimension_numbers = #tpu.dot_dimension_numbers<[1], [0], [0], [1], [0, 0, 1, 1], [], []>} : vector<8x8xbf16>, vector<8x384xbf16>, vector<8x384xf32> -> vector<8x384xf32>
    %40 = arith.addf %34, %39 : vector<8x384xf32>
    %c0_34 = arith.constant 0 : index
    %c0_35 = arith.constant 0 : index
    %c146 = arith.constant 146 : index
    %41 = vector.load %arg1[%c0_34, %c0_35, %c146] : memref<1x8x640xbf16, #tpu.memory_space<vmem>>, vector<1x8x384xbf16>
    %42 = vector.shape_cast %41 : vector<1x8x384xbf16> to vector<8x384xbf16>
    %c7 = arith.constant 7 : index
    %c0_36 = arith.constant 0 : index
    %c0_37 = arith.constant 0 : index
    %43 = vector.load %arg2[%c7, %c0_36, %c0_37] : memref<9x8x8xbf16, #tpu.memory_space<vmem>>, vector<1x8x8xbf16>
    %44 = vector.shape_cast %43 : vector<1x8x8xbf16> to vector<8x8xbf16>
    %cst_38 = arith.constant dense<0.000000e+00> : vector<8x384xf32>
    %45 = tpu.matmul %44, %42, %cst_38 {dimension_numbers = #tpu.dot_dimension_numbers<[1], [0], [0], [1], [0, 0, 1, 1], [], []>} : vector<8x8xbf16>, vector<8x384xbf16>, vector<8x384xf32> -> vector<8x384xf32>
    %46 = arith.addf %40, %45 : vector<8x384xf32>
    %c0_39 = arith.constant 0 : index
    %c0_40 = arith.constant 0 : index
    %c147 = arith.constant 147 : index
    %47 = vector.load %arg1[%c0_39, %c0_40, %c147] : memref<1x8x640xbf16, #tpu.memory_space<vmem>>, vector<1x8x384xbf16>
    %48 = vector.shape_cast %47 : vector<1x8x384xbf16> to vector<8x384xbf16>
    %c8 = arith.constant 8 : index
    %c0_41 = arith.constant 0 : index
    %c0_42 = arith.constant 0 : index
    %49 = vector.load %arg2[%c8, %c0_41, %c0_42] : memref<9x8x8xbf16, #tpu.memory_space<vmem>>, vector<1x8x8xbf16>
    %50 = vector.shape_cast %49 : vector<1x8x8xbf16> to vector<8x8xbf16>
    %cst_43 = arith.constant dense<0.000000e+00> : vector<8x384xf32>
    %51 = tpu.matmul %50, %48, %cst_43 {dimension_numbers = #tpu.dot_dimension_numbers<[1], [0], [0], [1], [0, 0, 1, 1], [], []>} : vector<8x8xbf16>, vector<8x384xbf16>, vector<8x384xf32> -> vector<8x384xf32>
    %52 = arith.addf %46, %51 : vector<8x384xf32>
    %c0_44 = arith.constant 0 : index
    %c0_45 = arith.constant 0 : index
    %53 = vector.load %arg3[%c0_44, %c0_45] : memref<8x1xf32, #tpu.memory_space<vmem>>, vector<8x1xf32>
    %54 = vector.broadcast %53 : vector<8x1xf32> to vector<8x384xf32>
    %55 = arith.addf %52, %54 : vector<8x384xf32>
    %cst_46 = arith.constant 0.000000e+00 : f32
    %56 = vector.broadcast %cst_46 : f32 to vector<8x384xf32>
    %57 = arith.maximumf %55, %56 : vector<8x384xf32>
    %c0_47 = arith.constant 0 : index
    %c0_48 = arith.constant 0 : index
    %c0_49 = arith.constant 0 : index
    %58 = vector.load %arg4[%c0_47, %c0_48, %c0_49] : memref<1x8x384xbf16, #tpu.memory_space<vmem>>, vector<1x8x384xbf16>
    %59 = vector.shape_cast %58 : vector<1x8x384xbf16> to vector<8x384xbf16>
    %60 = arith.extf %59 : vector<8x384xbf16> to vector<8x384xf32>
    %61 = arith.addf %57, %60 : vector<8x384xf32>
    %c0_50 = arith.constant 0 : index
    %c0_51 = arith.constant 0 : index
    %c0_52 = arith.constant 0 : index
    %62 = vector.load %arg5[%c0_50, %c0_51, %c0_52] : memref<1x8x384xbf16, #tpu.memory_space<vmem>>, vector<1x8x384xbf16>
    %63 = vector.shape_cast %62 : vector<1x8x384xbf16> to vector<8x384xbf16>
    %64 = arith.extf %63 : vector<8x384xbf16> to vector<8x384xf32>
    %65 = arith.addf %61, %64 : vector<8x384xf32>
    %c0_53 = arith.constant 0 : index
    %c0_54 = arith.constant 0 : index
    %c0_55 = arith.constant 0 : index
    %66 = vector.load %arg6[%c0_53, %c0_54, %c0_55] : memref<1x8x384xf32, #tpu.memory_space<vmem>>, vector<1x8x384xf32>
    %67 = vector.shape_cast %66 : vector<1x8x384xf32> to vector<8x384xf32>
    %68 = vector.shape_cast %65 : vector<8x384xf32> to vector<1x8x384xf32>
    tpu.vector_store %arg6[%c0_53, %c0_54, %c0_55], %68 {strides = array<i32>} : memref<1x8x384xf32, #tpu.memory_space<vmem>>, vector<1x8x384xf32>,
    return
  }
  func.func @transform_0(%arg0: i32) -> (i32, i32, i32) {
    %c0_i32 = arith.constant 0 : i32
    %c0_i32_0 = arith.constant 0 : i32
    %c0_i32_1 = arith.constant 0 : i32
    return %arg0, %c0_i32, %c0_i32_0 : i32, i32, i32
  }
  func.func @transform_1(%arg0: i32) -> (i32, i32, i32) {
    %c0_i32 = arith.constant 0 : i32
    %c0_i32_0 = arith.constant 0 : i32
    %c0_i32_1 = arith.constant 0 : i32
    %c0_i32_2 = arith.constant 0 : i32
    return %c0_i32, %c0_i32_0, %c0_i32_1 : i32, i32, i32
  }
  func.func @transform_2(%arg0: i32) -> (i32, i32) {
    %c0_i32 = arith.constant 0 : i32
    %c0_i32_0 = arith.constant 0 : i32
    %c0_i32_1 = arith.constant 0 : i32
    return %c0_i32, %c0_i32_0 : i32, i32
  }
  func.func @transform_3(%arg0: i32) -> (i32, i32, i32) {
    %c0_i32 = arith.constant 0 : i32
    %c0_i32_0 = arith.constant 0 : i32
    %c0_i32_1 = arith.constant 0 : i32
    return %arg0, %c0_i32, %c0_i32_0 : i32, i32, i32
  }
  func.func @transform_4(%arg0: i32) -> (i32, i32, i32) {
    %c0_i32 = arith.constant 0 : i32
    %c0_i32_0 = arith.constant 0 : i32
    %c0_i32_1 = arith.constant 0 : i32
    return %arg0, %c0_i32, %c0_i32_0 : i32, i32, i32
  }
  func.func @transform_5(%arg0: i32) -> (i32, i32, i32) {
    %c0_i32 = arith.constant 0 : i32
    %c0_i32_0 = arith.constant 0 : i32
    %c0_i32_1 = arith.constant 0 : i32
    return %arg0, %c0_i32, %c0_i32_0 : i32, i32, i32
  }
}

</mosaic_0001>

<llo_original>
// kernel: refine_block3_1.6
$region0: #{refine_block3_1.6}
  #allocation0 [shape = 'u32[]', space=smem, size = 0x4, offset = 0x4, fixed_abs, tag = 'smem constant byte address 0x4 - core index']
  #allocation1 [shape = 'u32[72,128]{1,0:T(1,128)}', space=vmem, size = 0x9000, scoped, tag = 'internal scratch']
  %s0 = inlined_call_operand.vmem [shape: bf16[2,8,384], index: 0, kind: input, shape index: {}]
  %s1 = inlined_call_operand.vmem [shape: bf16[9,8,8], index: 1, kind: input, shape index: {}]
  %s2 = inlined_call_operand.vmem [shape: f32[8,1], index: 2, kind: input, shape index: {}]
  %s3 = inlined_call_operand.vmem [shape: f32[1,128], index: 3, kind: input, shape index: {}]
  %s4 = inlined_call_operand.vmem [shape: bf16[2,8,128], index: 4, kind: output, shape index: {}]
  %s5 = sld [smem:[#allocation0]]
  $region49: #{refine_block3_1.6} parent=0
    _
  %s7 = ssub.s32 1, %s5
  %s8 = scalar_select 0, %s7, %s5
  loop: start=0, step=1, limit=4
  $region2: #{refine_block3_1.6} parent=0 // loop_pre_header
    _
  $region3: #{refine_block3_1.6} parent=0 // loop_header
    %s10 = sphi 0, %s14
    %p11 = scmp.ge.s32.totalorder %s10, 4
    %s20 = sphi 0, %s22
    %s23 = sphi 0, %s20
    %s24 = sphi 0, %s23
    %s40 = sphi 0, %s24
    %s44 = sphi 0, %s44
    %s46 = sphi 0, %s44
    %s47 = sphi 0, %s46
    %s61 = sphi 0, %s47
    %s65 = sphi 0, %s65
    %s67 = sphi 0, %s65
    %s68 = sphi 0, %s67
    %s82 = sphi 0, %s68
    %s86 = sphi 0, %s86
    %s88 = sphi 0, %s86
    %s89 = sphi 0, %s88
    %s103 = sphi 0, %s89
    %s109 = sphi 0, %s111
    %s112 = sphi 0, %s109
    %s113 = sphi 0, %s112
    %s129 = sphi 0, %s113
  $region4: #{refine_block3_1.6} parent=0 // loop_header_branch
    %13 = sbr.rel (%p11) target = $region8
  $region5: #{refine_block3_1.6} parent=0 // loop_body
    %s15 = ssub.s32 %s10, 1
    %s16 = ssub.s32 %s10, 2
    %s17 = sadd.s32 %s10, 1
    %s18 = ssub.s32 %s10, %s17
    %p19 = scmp.eq.s32.totalorder %s18, 0
    %s21 = sadd.s32 %s20, 1
    %s22 = scalar_select %p19, %s20, %s21
    %p25 = pneg %p19
    %p26 = scmp.eq.s32.totalorder %s10, 1
    %p27 = por %p25, %p26
    %p28 = scmp.ne.s32.totalorder %s20, %s23
    %p29 = scmp.eq.s32.totalorder %s10, 0
    %p30 = por %p28, %p29
    %p31 = scmp.ne.s32.totalorder %s20, %s23
    %p32 = scmp.eq.s32.totalorder %s15, 1
    %p33 = por %p31, %p32
    %p34 = scmp.ne.s32.totalorder %s23, %s24
    %p35 = scmp.eq.s32.totalorder %s15, 0
    %p36 = por %p34, %p35
    %p37 = scmp.ne.s32.totalorder %s23, %s24
    %p38 = scmp.eq.s32.totalorder %s16, 1
    %p39 = por %p37, %p38
    %p41 = scmp.ne.s32.totalorder %s24, %s40
    %p42 = scmp.eq.s32.totalorder %s16, 0
    %p43 = por %p41, %p42
    %s45 = sadd.s32 %s44, 1
    %p48 = scmp.eq.s32.totalorder %s10, 1
    %p49 = scmp.ne.s32.totalorder %s44, %s46
    %p50 = scmp.eq.s32.totalorder %s10, 0
    %p51 = por %p49, %p50
    %p52 = scmp.ne.s32.totalorder %s44, %s46
    %p53 = scmp.eq.s32.totalorder %s15, 1
    %p54 = por %p52, %p53
    %p55 = scmp.ne.s32.totalorder %s46, %s47
    %p56 = scmp.eq.s32.totalorder %s15, 0
    %p57 = por %p55, %p56
    %p58 = scmp.ne.s32.totalorder %s46, %s47
    %p59 = scmp.eq.s32.totalorder %s16, 1
    %p60 = por %p58, %p59
    %p62 = scmp.ne.s32.totalorder %s47, %s61
    %p63 = scmp.eq.s32.totalorder %s16, 0
    %p64 = por %p62, %p63
    %s66 = sadd.s32 %s65, 1
    %p69 = scmp.eq.s32.totalorder %s10, 1
    %p70 = scmp.ne.s32.totalorder %s65, %s67
    %p71 = scmp.eq.s32.totalorder %s10, 0
    %p72 = por %p70, %p71
    %p73 = scmp.ne.s32.totalorder %s65, %s67
    %p74 = scmp.eq.s32.totalorder %s15, 1
    %p75 = por %p73, %p74
    %p76 = scmp.ne.s32.totalorder %s67, %s68
    %p77 = scmp.eq.s32.totalorder %s15, 0
    %p78 = por %p76, %p77
    %p79 = scmp.ne.s32.totalorder %s67, %s68
    %p80 = scmp.eq.s32.totalorder %s16, 1
    %p81 = por %p79, %p80
    %p83 = scmp.ne.s32.totalorder %s68, %s82
    %p84 = scmp.eq.s32.totalorder %s16, 0
    %p85 = por %p83, %p84
    %s87 = sadd.s32 %s86, 1
    %p90 = scmp.eq.s32.totalorder %s10, 1
    %p91 = scmp.ne.s32.totalorder %s86, %s88
    %p92 = scmp.eq.s32.totalorder %s10, 0
    %p93 = por %p91, %p92
    %p94 = scmp.ne.s32.totalorder %s86, %s88
    %p95 = scmp.eq.s32.totalorder %s15, 1
    %p96 = por %p94, %p95
    %p97 = scmp.ne.s32.totalorder %s88, %s89
    %p98 = scmp.eq.s32.totalorder %s15, 0
    %p99 = por %p97, %p98
    %p100 = scmp.ne.s32.totalorder %s88, %s89
    %p101 = scmp.eq.s32.totalorder %s16, 1
    %p102 = por %p100, %p101
    %p104 = scmp.ne.s32.totalorder %s89, %s103
    %p105 = scmp.eq.s32.totalorder %s16, 0
    %p106 = por %p104, %p105
    %s107 = ssub.s32 %s10, %s17
    %p108 = scmp.eq.s32.totalorder %s107, 0
    %s110 = sadd.s32 %s109, 1
    %s111 = scalar_select %p108, %s109, %s110
    %p114 = pneg %p108
    %p115 = scmp.eq.s32.totalorder %s10, 1
    %p116 = por %p114, %p115
    %p117 = scmp.ne.s32.totalorder %s109, %s112
    %p118 = scmp.eq.s32.totalorder %s10, 0
    %p119 = por %p117, %p118
    %p120 = scmp.ne.s32.totalorder %s109, %s112
    %p121 = scmp.eq.s32.totalorder %s15, 1
    %p122 = por %p120, %p121
    %p123 = scmp.ne.s32.totalorder %s112, %s113
    %p124 = scmp.eq.s32.totalorder %s15, 0
    %p125 = por %p123, %p124
    %p126 = scmp.ne.s32.totalorder %s112, %s113
    %p127 = scmp.eq.s32.totalorder %s16, 1
    %p128 = por %p126, %p127
    %p130 = scmp.ne.s32.totalorder %s113, %s129
    %p131 = scmp.eq.s32.totalorder %s16, 0
    %p132 = por %p130, %p131
    %p133 = scmp.le.s32.totalorder 1, %s10
    %p134 = scmp.lt.s32.totalorder %s10, 3
    %p135 = pnand %p133, %p134
    %p136 = pneg %p135
    // Predicated region
    $region9: #{refine_block3_1.6} parent=5 // pred_check
      _
    $region10: #{refine_block3_1.6} parent=5 // pred_check_branch
      %138 = sbr.rel (%p135) target = $region12
    $region11: #{refine_block3_1.6} parent=5 // pred_region
      %s139 = ssub.s32 %s10, 1
      // Predicated region
      $region13: #{refine_block3_1.6} parent=11 // pred_check
        %p140 = pneg %p57
      $region14: #{refine_block3_1.6} parent=11 // pred_check_branch
        %142 = sbr.rel (%p140) target = $region16
      $region15: #{refine_block3_1.6} parent=11 // pred_region
        _
      $region16: #{refine_block3_1.6} parent=11 // pred_fallthru
        _
      // Predicated region
      $region17: #{refine_block3_1.6} parent=11 // pred_check
        %p143 = pneg %p78
      $region18: #{refine_block3_1.6} parent=11 // pred_check_branch
        %145 = sbr.rel (%p143) target = $region20
      $region19: #{refine_block3_1.6} parent=11 // pred_region
        _
      $region20: #{refine_block3_1.6} parent=11 // pred_fallthru
        _
      // Predicated region
      $region21: #{refine_block3_1.6} parent=11 // pred_check
        %p146 = pneg %p99
      $region22: #{refine_block3_1.6} parent=11 // pred_check_branch
        %148 = sbr.rel (%p146) target = $region24
      $region23: #{refine_block3_1.6} parent=11 // pred_region
        _
      $region24: #{refine_block3_1.6} parent=11 // pred_fallthru
        _
    $region12: #{refine_block3_1.6} parent=5 // pred_fallthru
      _
    %p149 = scmp.lt.s32.totalorder %s10, 2
    // Predicated region
    $region25: #{refine_block3_1.6} parent=5 // pred_check
      %p150 = pneg %p149
    $region26: #{refine_block3_1.6} parent=5 // pred_check_branch
      %152 = sbr.rel (%p150) target = $region28
    $region27: #{refine_block3_1.6} parent=5 // pred_region
      // Predicated region
      $region29: #{refine_block3_1.6} parent=27 // pred_check
        %p153 = pneg %p30
      $region30: #{refine_block3_1.6} parent=27 // pred_check_branch
        %155 = sbr.rel (%p153) target = $region32
      $region31: #{refine_block3_1.6} parent=27 // pred_region
        %p156 = scmp.lt.s32.totalorder %s10, 1
        %s157 = scalar_select %p156, %s10, 1
        %s158 = smul.addr %s157, 3
        %s159 = smul.addr %s158, 4
        %s160 = scalar_lea.vmem %s0, %s159
      $region32: #{refine_block3_1.6} parent=27 // pred_fallthru
        _
    $region28: #{refine_block3_1.6} parent=5 // pred_fallthru
      _
    %p161 = scmp.le.s32.totalorder 1, %s10
    %p162 = scmp.lt.s32.totalorder %s10, 3
    %p163 = pnand %p161, %p162
    %p164 = pneg %p163
    // Predicated region
    $region33: #{refine_block3_1.6} parent=5 // pred_check
      _
    $region34: #{refine_block3_1.6} parent=5 // pred_check_branch
      %166 = sbr.rel (%p163) target = $region36
    $region35: #{refine_block3_1.6} parent=5 // pred_region
      %s167 = ssub.s32 %s10, 1
      %p168 = scmp.lt.s32.totalorder %s15, 1
      %s169 = scalar_select %p168, %s15, 1
      %s170 = smul.addr %s169, 3
      %s171 = smul.addr %s170, 4
      %s172 = scalar_lea.vmem %s0, %s171
      %p173 = pneg %p36
      %p174 = pneg %p33
      %p175 = pneg %p57
      %p176 = pneg %p54
      %p177 = pneg %p78
      %p178 = pneg %p75
      %p179 = pneg %p99
      %p180 = pneg %p96
      %p181 = pneg %p125
      %p182 = pneg %p122
      %p183 = scmp.lt.s32.totalorder %s15, 1
      %s184 = scalar_select %p183, %s15, 1
      %s185 = smul.addr %s184, 4
      %s186 = scalar_lea.vmem %s4, %s185
      %p187 = scmp.lt.s32.totalorder %s15, 1
      %s188 = scalar_select %p187, %s15, 1
      %s189 = smul.addr %s188, 3
      %s190 = smul.addr %s189, 4
      %s191 = scalar_lea.vmem %s0, %s190
      %p192 = scmp.lt.s32.totalorder %s15, 1
      %s193 = scalar_select %p192, %s15, 1
      %s194 = smul.addr %s193, 4
      %s195 = scalar_lea.vmem %s4, %s194
      %v197 = vld [vmem:[%s191] sm:$0xff]
      %v198 = vld [vmem:[%s1] sm:$0xf]
      %s199 = scalar_lea.vmem %s1, 4
      %v200 = vld [vmem:[%s199] sm:$0xf]
      %v202 = vunpack.c.l.b16 %v197
      %v203 = vunpack.c.h.b16 %v197
      %v204 = vpack.c.b16 %v202, %v202
      %v205 = vpack.c.b16 %v203, %v203
      %206 = vrot.lane.b32.xlu0 %v204, 6
      %v207 = vpop.permute.xlu0 %206
      %208 = vrot.lane.b32.xlu0 %v205, 6
      %v209 = vpop.permute.xlu0 %208
      %vm210 = vcmask 48128
      %v211 = vsel %vm210, %v207, %v209
      %vm212 = vcmask 64512
      %v214 = vsel %vm212, %v200, 0
      %vm216 = vcmask 1043456
      %v218 = vsel %vm216, %v211, 0
      %220 = vmatpush.bf16.msra.mxu0 0
      %221 = vmatpush.bf16.msra.mxu0 0
      %222 = vmatpush.bf16.msra.mxu0 0
      %223 = vmatpush.bf16.msra.mxu0 0
      %224 = vmatpush.bf16.msra.mxu0 0
      %225 = vmatpush.bf16.msra.mxu0 0
      %226 = vmatpush.bf16.msra.mxu0 0
      %227 = vmatpush.bf16.msra.mxu0 %v218
      %228 = vmatmul.bf16.gmra.mxu0 %v214
      %v229 = vpop.f32.mrf.mxu0
      %v230 = vadd.f32 0.0, %v229
      %v231 = vpop.f32.mrf.mxu0
      %232 = vdwg.mxu0
      %233 = vrot.lane.b32.xlu0 %v204, 7
      %v234 = vpop.permute.xlu0 %233
      %235 = vrot.lane.b32.xlu0 %v205, 7
      %v236 = vpop.permute.xlu0 %235
      %vm237 = vcmask 56320
      %v238 = vsel %vm237, %v234, %v236
      %v240 = vsel %vm212, %v198, 0
      %v243 = vsel %vm216, %v238, 0
      %245 = vmatpush.bf16.msra.mxu0 0
      %246 = vmatpush.bf16.msra.mxu0 0
      %247 = vmatpush.bf16.msra.mxu0 0
      %248 = vmatpush.bf16.msra.mxu0 0
      %249 = vmatpush.bf16.msra.mxu0 0
      %250 = vmatpush.bf16.msra.mxu0 0
      %251 = vmatpush.bf16.msra.mxu0 0
      %252 = vmatpush.bf16.msra.mxu0 %v243
      %253 = vmatmul.bf16.gmra.mxu0 %v240
      %v254 = vpop.f32.mrf.mxu0
      %v255 = vadd.f32 %v230, %v254
      %v256 = vpop.f32.mrf.mxu0
      %257 = vdwg.mxu0
      %s258 = scalar_lea.vmem %s1, 8
      %v259 = vld [vmem:[%s258] sm:$0xf]
      %260 = vrot.lane.b32.xlu0 %v204, 5
      %v261 = vpop.permute.xlu0 %260
      %262 = vrot.lane.b32.xlu0 %v205, 5
      %v263 = vpop.permute.xlu0 %262
      %vm264 = vcmask 39936
      %v265 = vsel %vm264, %v261, %v263
      %v267 = vsel %vm212, %v259, 0
      %v270 = vsel %vm216, %v265, 0
      %272 = vmatpush.bf16.msra.mxu0 0
      %273 = vmatpush.bf16.msra.mxu0 0
      %274 = vmatpush.bf16.msra.mxu0 0
      %275 = vmatpush.bf16.msra.mxu0 0
      %276 = vmatpush.bf16.msra.mxu0 0
      %277 = vmatpush.bf16.msra.mxu0 0
      %278 = vmatpush.bf16.msra.mxu0 0
      %279 = vmatpush.bf16.msra.mxu0 %v270
      %280 = vmatmul.bf16.gmra.mxu0 %v267
      %v281 = vpop.f32.mrf.mxu0
      %v282 = vadd.f32 0.0, %v281
      %v283 = vpop.f32.mrf.mxu0
      %284 = vdwg.mxu0
      %v285 = vadd.f32 %v255, %v282
      %s286 = scalar_lea.vmem %s1, 12
      %v287 = vld [vmem:[%s286] sm:$0xf]
      %288 = vrot.lane.b32.xlu0 %v204, 1
      %v289 = vpop.permute.xlu0 %288
      %290 = vrot.lane.b32.xlu0 %v205, 1
      %v291 = vpop.permute.xlu0 %290
      %vm292 = vcmask 7168
      %v293 = vsel %vm292, %v289, %v291
      %v295 = vsel %vm212, %v287, 0
      %v298 = vsel %vm216, %v293, 0
      %300 = vmatpush.bf16.msra.mxu0 0
      %301 = vmatpush.bf16.msra.mxu0 0
      %302 = vmatpush.bf16.msra.mxu0 0
      %303 = vmatpush.bf16.msra.mxu0 0
      %304 = vmatpush.bf16.msra.mxu0 0
      %305 = vmatpush.bf16.msra.mxu0 0
      %306 = vmatpush.bf16.msra.mxu0 0
      %307 = vmatpush.bf16.msra.mxu0 %v298
      %308 = vmatmul.bf16.gmra.mxu0 %v295
      %v309 = vpop.f32.mrf.mxu0
      %v310 = vadd.f32 0.0, %v309
      %v311 = vpop.f32.mrf.mxu0
      %312 = vdwg.mxu0
      %v313 = vadd.f32 %v285, %v310
      %v314 = vld [vmem:[%s191 + $0x4] sm:$0xf]
      %s315 = scalar_lea.vmem %s1, 16
      %v316 = vld [vmem:[%s315] sm:$0xf]
      %v318 = vsel %vm212, %v316, 0
      %v321 = vsel %vm216, %v314, 0
      %323 = vmatpush.bf16.msra.mxu0 0
      %324 = vmatpush.bf16.msra.mxu0 0
      %325 = vmatpush.bf16.msra.mxu0 0
      %326 = vmatpush.bf16.msra.mxu0 0
      %327 = vmatpush.bf16.msra.mxu0 0
      %328 = vmatpush.bf16.msra.mxu0 0
      %329 = vmatpush.bf16.msra.mxu0 0
      %330 = vmatpush.bf16.msra.mxu0 %v321
      %331 = vmatmul.bf16.gmra.mxu0 %v318
      %v332 = vpop.f32.mrf.mxu0
      %v333 = vadd.f32 0.0, %v332
      %v334 = vpop.f32.mrf.mxu0
      %335 = vdwg.mxu0
      %v336 = vadd.f32 %v313, %v333
      %v337 = vld [vmem:[%s191 + $0x4] sm:$0xff]
      %s338 = scalar_lea.vmem %s1, 20
      %v339 = vld [vmem:[%s338] sm:$0xf]
      %v341 = vunpack.c.l.b16 %v337
      %v342 = vunpack.c.h.b16 %v337
      %v343 = vpack.c.b16 %v341, %v341
      %v344 = vpack.c.b16 %v342, %v342
      %345 = vrot.lane.b32.xlu0 %v343, 127
      %v346 = vpop.permute.xlu0 %345
      %347 = vrot.lane.b32.xlu0 %v344, 127
      %v348 = vpop.permute.xlu0 %347
      %vm349 = vcmask 1039360
      %v350 = vsel %vm349, %v346, %v348
      %v352 = vsel %vm212, %v339, 0
      %v355 = vsel %vm216, %v350, 0
      %357 = vmatpush.bf16.msra.mxu0 0
      %358 = vmatpush.bf16.msra.mxu0 0
      %359 = vmatpush.bf16.msra.mxu0 0
      %360 = vmatpush.bf16.msra.mxu0 0
      %361 = vmatpush.bf16.msra.mxu0 0
      %362 = vmatpush.bf16.msra.mxu0 0
      %363 = vmatpush.bf16.msra.mxu0 0
      %364 = vmatpush.bf16.msra.mxu0 %v355
      %365 = vmatmul.bf16.gmra.mxu0 %v352
      %v366 = vpop.f32.mrf.mxu0
      %v367 = vadd.f32 0.0, %v366
      %v368 = vpop.f32.mrf.mxu0
      %369 = vdwg.mxu0
      %v370 = vadd.f32 %v336, %v367
      %s371 = scalar_lea.vmem %s1, 24
      %v372 = vld [vmem:[%s371] sm:$0xf]
      %373 = vrot.lane.b32.xlu0 %v343, 123
      %v374 = vpop.permute.xlu0 %373
      %375 = vrot.lane.b32.xlu0 %v344, 123
      %v376 = vpop.permute.xlu0 %375
      %vm377 = vcmask 1006592
      %v378 = vsel %vm377, %v374, %v376
      %v380 = vsel %vm212, %v372, 0
      %v383 = vsel %vm216, %v378, 0
      %385 = vmatpush.bf16.msra.mxu0 0
      %386 = vmatpush.bf16.msra.mxu0 0
      %387 = vmatpush.bf16.msra.mxu0 0
      %388 = vmatpush.bf16.msra.mxu0 0
      %389 = vmatpush.bf16.msra.mxu0 0
      %390 = vmatpush.bf16.msra.mxu0 0
      %391 = vmatpush.bf16.msra.mxu0 0
      %392 = vmatpush.bf16.msra.mxu0 %v383
      %393 = vmatmul.bf16.gmra.mxu0 %v380
      %v394 = vpop.f32.mrf.mxu0
      %v395 = vadd.f32 0.0, %v394
      %v396 = vpop.f32.mrf.mxu0
      %397 = vdwg.mxu0
      %v398 = vadd.f32 %v370, %v395
      %s399 = scalar_lea.vmem %s1, 28
      %v400 = vld [vmem:[%s399] sm:$0xf]
      %401 = vrot.lane.b32.xlu0 %v343, 122
      %v402 = vpop.permute.xlu0 %401
      %403 = vrot.lane.b32.xlu0 %v344, 122
      %v404 = vpop.permute.xlu0 %403
      %vm405 = vcmask 998400
      %v406 = vsel %vm405, %v402, %v404
      %v408 = vsel %vm212, %v400, 0
      %v411 = vsel %vm216, %v406, 0
      %413 = vmatpush.bf16.msra.mxu0 0
      %414 = vmatpush.bf16.msra.mxu0 0
      %415 = vmatpush.bf16.msra.mxu0 0
      %416 = vmatpush.bf16.msra.mxu0 0
      %417 = vmatpush.bf16.msra.mxu0 0
      %418 = vmatpush.bf16.msra.mxu0 0
      %419 = vmatpush.bf16.msra.mxu0 0
      %420 = vmatpush.bf16.msra.mxu0 %v411
      %421 = vmatmul.bf16.gmra.mxu0 %v408
      %v422 = vpop.f32.mrf.mxu0
      %v423 = vadd.f32 0.0, %v422
      %v424 = vpop.f32.mrf.mxu0
      %425 = vdwg.mxu0
      %v426 = vadd.f32 %v398, %v423
      %s427 = scalar_lea.vmem %s1, 32
      %v428 = vld [vmem:[%s427] sm:$0xf]
      %429 = vrot.lane.b32.xlu0 %v343, 121
      %v430 = vpop.permute.xlu0 %429
      %431 = vrot.lane.b32.xlu0 %v344, 121
      %v432 = vpop.permute.xlu0 %431
      %vm433 = vcmask 990208
      %v434 = vsel %vm433, %v430, %v432
      %v436 = vsel %vm212, %v428, 0
      %v439 = vsel %vm216, %v434, 0
      %441 = vmatpush.bf16.msra.mxu0 0
      %442 = vmatpush.bf16.msra.mxu0 0
      %443 = vmatpush.bf16.msra.mxu0 0
      %444 = vmatpush.bf16.msra.mxu0 0
      %445 = vmatpush.bf16.msra.mxu0 0
      %446 = vmatpush.bf16.msra.mxu0 0
      %447 = vmatpush.bf16.msra.mxu0 0
      %448 = vmatpush.bf16.msra.mxu0 %v439
      %449 = vmatmul.bf16.gmra.mxu0 %v436
      %v450 = vpop.f32.mrf.mxu0
      %v451 = vadd.f32 0.0, %v450
      %v452 = vpop.f32.mrf.mxu0
      %453 = vdwg.mxu0
      %v454 = vadd.f32 %v426, %v451
      %v455 = vld [vmem:[%s2] sm:$0xff]
      %457 = vset.pattern.permute.xlu0 0
      %458 = vperm.xlu0 %457, %v455
      %v459 = vpop.permute.xlu0 %458
      %v461 = vadd.f32 %v454, %v459
      %v462 = vmax.f32 %v461, 0.0
      %v463 = vld [vmem:[%s3] sm:$0x1]
      %v465 = vperm.slane %v463, 0
      %v467 = vmul.f32 %v462, %v465
      %v468 = vpack.c.bf16 %v467, %v467
      %469 = vst [vmem:[%s195] sm:$0xf] %v468
      %p470 = scmp.lt.s32.totalorder %s15, 1
      %s471 = scalar_select %p470, %s15, 1
      %s472 = smul.addr %s471, 4
      %s473 = scalar_lea.vmem %s4, %s472
      // Predicated region
      $region37: #{refine_block3_1.6} parent=35 // pred_check
        %p474 = pneg %p122
      $region38: #{refine_block3_1.6} parent=35 // pred_check_branch
        %476 = sbr.rel (%p474) target = $region40
      $region39: #{refine_block3_1.6} parent=35 // pred_region
        _
      $region40: #{refine_block3_1.6} parent=35 // pred_fallthru
        _
    $region36: #{refine_block3_1.6} parent=5 // pred_fallthru
      _
    %p477 = scmp.le.s32.totalorder 2, %s10
    // Predicated region
    $region41: #{refine_block3_1.6} parent=5 // pred_check
      %p478 = pneg %p477
    $region42: #{refine_block3_1.6} parent=5 // pred_check_branch
      %480 = sbr.rel (%p478) target = $region44
    $region43: #{refine_block3_1.6} parent=5 // pred_region
      %s481 = ssub.s32 %s10, 2
      // Predicated region
      $region45: #{refine_block3_1.6} parent=43 // pred_check
        %p482 = pneg %p128
      $region46: #{refine_block3_1.6} parent=43 // pred_check_branch
        %484 = sbr.rel (%p482) target = $region48
      $region47: #{refine_block3_1.6} parent=43 // pred_region
        %p485 = scmp.lt.s32.totalorder %s16, 1
        %s486 = scalar_select %p485, %s16, 1
        %s487 = smul.addr %s486, 4
        %s488 = scalar_lea.vmem %s4, %s487
      $region48: #{refine_block3_1.6} parent=43 // pred_fallthru
        _
    $region44: #{refine_block3_1.6} parent=5 // pred_fallthru
      _
  $region6: #{refine_block3_1.6} parent=0 // loop_footer
    %s14 = sadd.s32 1, %s10
  $region7: #{refine_block3_1.6} parent=0 // loop_footer_branch
    %9 = sbr.rel target = $region3
  $region8: #{refine_block3_1.6} parent=0 // loop_exit
    _

// kernel: refine_block3_1.8
$region0: #{refine_block3_1.8}
  #allocation0 [shape = 'u32[]', space=smem, size = 0x4, offset = 0x4, fixed_abs, tag = 'smem constant byte address 0x4 - core index']
  #allocation1 [shape = 'u32[72,128]{1,0:T(1,128)}', space=vmem, size = 0x9000, scoped, tag = 'internal scratch']
  %s0 = inlined_call_operand.vmem [shape: bf16[2,8,384], index: 0, kind: input, shape index: {}]
  %s1 = inlined_call_operand.vmem [shape: bf16[9,128,8], index: 1, kind: input, shape index: {}]
  %s2 = inlined_call_operand.vmem [shape: bf16[2,128,128], index: 2, kind: output, shape index: {}]
  %s3 = sld [smem:[#allocation0]]
  $region41: #{refine_block3_1.8} parent=0
    _
  %s5 = ssub.s32 1, %s3
  %s6 = scalar_select 0, %s5, %s3
  loop: start=0, step=1, limit=4
  $region2: #{refine_block3_1.8} parent=0 // loop_pre_header
    _
  $region3: #{refine_block3_1.8} parent=0 // loop_header
    %s8 = sphi 0, %s12
    %p9 = scmp.ge.s32.totalorder %s8, 4
    %s18 = sphi 0, %s20
    %s21 = sphi 0, %s18
    %s22 = sphi 0, %s21
    %s38 = sphi 0, %s22
    %s42 = sphi 0, %s42
    %s44 = sphi 0, %s42
    %s45 = sphi 0, %s44
    %s59 = sphi 0, %s45
    %s65 = sphi 0, %s67
    %s68 = sphi 0, %s65
    %s69 = sphi 0, %s68
    %s85 = sphi 0, %s69
  $region4: #{refine_block3_1.8} parent=0 // loop_header_branch
    %11 = sbr.rel (%p9) target = $region8
  $region5: #{refine_block3_1.8} parent=0 // loop_body
    %s13 = ssub.s32 %s8, 1
    %s14 = ssub.s32 %s8, 2
    %s15 = sadd.s32 %s8, 1
    %s16 = ssub.s32 %s8, %s15
    %p17 = scmp.eq.s32.totalorder %s16, 0
    %s19 = sadd.s32 %s18, 1
    %s20 = scalar_select %p17, %s18, %s19
    %p23 = pneg %p17
    %p24 = scmp.eq.s32.totalorder %s8, 1
    %p25 = por %p23, %p24
    %p26 = scmp.ne.s32.totalorder %s18, %s21
    %p27 = scmp.eq.s32.totalorder %s8, 0
    %p28 = por %p26, %p27
    %p29 = scmp.ne.s32.totalorder %s18, %s21
    %p30 = scmp.eq.s32.totalorder %s13, 1
    %p31 = por %p29, %p30
    %p32 = scmp.ne.s32.totalorder %s21, %s22
    %p33 = scmp.eq.s32.totalorder %s13, 0
    %p34 = por %p32, %p33
    %p35 = scmp.ne.s32.totalorder %s21, %s22
    %p36 = scmp.eq.s32.totalorder %s14, 1
    %p37 = por %p35, %p36
    %p39 = scmp.ne.s32.totalorder %s22, %s38
    %p40 = scmp.eq.s32.totalorder %s14, 0
    %p41 = por %p39, %p40
    %s43 = sadd.s32 %s42, 1
    %p46 = scmp.eq.s32.totalorder %s8, 1
    %p47 = scmp.ne.s32.totalorder %s42, %s44
    %p48 = scmp.eq.s32.totalorder %s8, 0
    %p49 = por %p47, %p48
    %p50 = scmp.ne.s32.totalorder %s42, %s44
    %p51 = scmp.eq.s32.totalorder %s13, 1
    %p52 = por %p50, %p51
    %p53 = scmp.ne.s32.totalorder %s44, %s45
    %p54 = scmp.eq.s32.totalorder %s13, 0
    %p55 = por %p53, %p54
    %p56 = scmp.ne.s32.totalorder %s44, %s45
    %p57 = scmp.eq.s32.totalorder %s14, 1
    %p58 = por %p56, %p57
    %p60 = scmp.ne.s32.totalorder %s45, %s59
    %p61 = scmp.eq.s32.totalorder %s14, 0
    %p62 = por %p60, %p61
    %s63 = ssub.s32 %s8, %s15
    %p64 = scmp.eq.s32.totalorder %s63, 0
    %s66 = sadd.s32 %s65, 1
    %s67 = scalar_select %p64, %s65, %s66
    %p70 = pneg %p64
    %p71 = scmp.eq.s32.totalorder %s8, 1
    %p72 = por %p70, %p71
    %p73 = scmp.ne.s32.totalorder %s65, %s68
    %p74 = scmp.eq.s32.totalorder %s8, 0
    %p75 = por %p73, %p74
    %p76 = scmp.ne.s32.totalorder %s65, %s68
    %p77 = scmp.eq.s32.totalorder %s13, 1
    %p78 = por %p76, %p77
    %p79 = scmp.ne.s32.totalorder %s68, %s69
    %p80 = scmp.eq.s32.totalorder %s13, 0
    %p81 = por %p79, %p80
    %p82 = scmp.ne.s32.totalorder %s68, %s69
    %p83 = scmp.eq.s32.totalorder %s14, 1
    %p84 = por %p82, %p83
    %p86 = scmp.ne.s32.totalorder %s69, %s85
    %p87 = scmp.eq.s32.totalorder %s14, 0
    %p88 = por %p86, %p87
    %p89 = scmp.le.s32.totalorder 1, %s8
    %p90 = scmp.lt.s32.totalorder %s8, 3
    %p91 = pnand %p89, %p90
    %p92 = pneg %p91
    // Predicated region
    $region9: #{refine_block3_1.8} parent=5 // pred_check
      _
    $region10: #{refine_block3_1.8} parent=5 // pred_check_branch
      %94 = sbr.rel (%p91) target = $region12
    $region11: #{refine_block3_1.8} parent=5 // pred_region
      %s95 = ssub.s32 %s8, 1
      // Predicated region
      $region13: #{refine_block3_1.8} parent=11 // pred_check
        %p96 = pneg %p55
      $region14: #{refine_block3_1.8} parent=11 // pred_check_branch
        %98 = sbr.rel (%p96) target = $region16
      $region15: #{refine_block3_1.8} parent=11 // pred_region
        _
      $region16: #{refine_block3_1.8} parent=11 // pred_fallthru
        _
    $region12: #{refine_block3_1.8} parent=5 // pred_fallthru
      _
    %p99 = scmp.lt.s32.totalorder %s8, 2
    // Predicated region
    $region17: #{refine_block3_1.8} parent=5 // pred_check
      %p100 = pneg %p99
    $region18: #{refine_block3_1.8} parent=5 // pred_check_branch
      %102 = sbr.rel (%p100) target = $region20
    $region19: #{refine_block3_1.8} parent=5 // pred_region
      // Predicated region
      $region21: #{refine_block3_1.8} parent=19 // pred_check
        %p103 = pneg %p28
      $region22: #{refine_block3_1.8} parent=19 // pred_check_branch
        %105 = sbr.rel (%p103) target = $region24
      $region23: #{refine_block3_1.8} parent=19 // pred_region
        %p106 = scmp.lt.s32.totalorder %s8, 1
        %s107 = scalar_select %p106, %s8, 1
        %s108 = smul.addr %s107, 3
        %s109 = smul.addr %s108, 4
        %s110 = scalar_lea.vmem %s0, %s109
      $region24: #{refine_block3_1.8} parent=19 // pred_fallthru
        _
    $region20: #{refine_block3_1.8} parent=5 // pred_fallthru
      _
    %p111 = scmp.le.s32.totalorder 1, %s8
    %p112 = scmp.lt.s32.totalorder %s8, 3
    %p113 = pnand %p111, %p112
    %p114 = pneg %p113
    // Predicated region
    $region25: #{refine_block3_1.8} parent=5 // pred_check
      _
    $region26: #{refine_block3_1.8} parent=5 // pred_check_branch
      %116 = sbr.rel (%p113) target = $region28
    $region27: #{refine_block3_1.8} parent=5 // pred_region
      %s117 = ssub.s32 %s8, 1
      %p118 = scmp.lt.s32.totalorder %s13, 1
      %s119 = scalar_select %p118, %s13, 1
      %s120 = smul.addr %s119, 3
      %s121 = smul.addr %s120, 4
      %s122 = scalar_lea.vmem %s0, %s121
      %p123 = pneg %p34
      %p124 = pneg %p31
      %p125 = pneg %p55
      %p126 = pneg %p52
      %p127 = pneg %p81
      %p128 = pneg %p78
      %p129 = scmp.lt.s32.totalorder %s13, 1
      %s130 = scalar_select %p129, %s13, 1
      %s131 = smul.addr %s130, 16
      %s132 = smul.addr %s131, 4
      %s133 = scalar_lea.vmem %s2, %s132
      %p134 = scmp.lt.s32.totalorder %s13, 1
      %s135 = scalar_select %p134, %s13, 1
      %s136 = smul.addr %s135, 3
      %s137 = smul.addr %s136, 4
      %s138 = scalar_lea.vmem %s0, %s137
      %p139 = scmp.lt.s32.totalorder %s13, 1
      %s140 = scalar_select %p139, %s13, 1
      %s141 = smul.addr %s140, 16
      %s142 = smul.addr %s141, 4
      %s143 = scalar_lea.vmem %s2, %s142
      %v145 = vld [vmem:[%s138] sm:$0xff]
      %v146 = vld [vmem:[%s1] sm:$0xf]
      %v147 = vld [vmem:[%s1 + $0x4] sm:$0xf]
      %v148 = vld [vmem:[%s1 + $0x8] sm:$0xf]
      %v149 = vld [vmem:[%s1 + $0xc] sm:$0xf]
      %v150 = vld [vmem:[%s1 + $0x10] sm:$0xf]
      %v151 = vld [vmem:[%s1 + $0x14] sm:$0xf]
      %v152 = vld [vmem:[%s1 + $0x18] sm:$0xf]
      %v153 = vld [vmem:[%s1 + $0x1c] sm:$0xf]
      %v154 = vld [vmem:[%s1 + $0x20] sm:$0xf]
      %v155 = vld [vmem:[%s1 + $0x24] sm:$0xf]
      %v156 = vld [vmem:[%s1 + $0x28] sm:$0xf]
      %v157 = vld [vmem:[%s1 + $0x2c] sm:$0xf]
      %v158 = vld [vmem:[%s1 + $0x30] sm:$0xf]
      %v159 = vld [vmem:[%s1 + $0x34] sm:$0xf]
      %v160 = vld [vmem:[%s1 + $0x38] sm:$0xf]
      %v161 = vld [vmem:[%s1 + $0x3c] sm:$0xf]
      %s162 = scalar_lea.vmem %s1, 64
      %v163 = vld [vmem:[%s162] sm:$0xf]
      %v164 = vld [vmem:[%s162 + $0x4] sm:$0xf]
      %v165 = vld [vmem:[%s162 + $0x8] sm:$0xf]
      %v166 = vld [vmem:[%s162 + $0xc] sm:$0xf]
      %v167 = vld [vmem:[%s162 + $0x10] sm:$0xf]
      %v168 = vld [vmem:[%s162 + $0x14] sm:$0xf]
      %v169 = vld [vmem:[%s162 + $0x18] sm:$0xf]
      %v170 = vld [vmem:[%s162 + $0x1c] sm:$0xf]
      %v171 = vld [vmem:[%s162 + $0x20] sm:$0xf]
      %v172 = vld [vmem:[%s162 + $0x24] sm:$0xf]
      %v173 = vld [vmem:[%s162 + $0x28] sm:$0xf]
      %v174 = vld [vmem:[%s162 + $0x2c] sm:$0xf]
      %v175 = vld [vmem:[%s162 + $0x30] sm:$0xf]
      %v176 = vld [vmem:[%s162 + $0x34] sm:$0xf]
      %v177 = vld [vmem:[%s162 + $0x38] sm:$0xf]
      %v178 = vld [vmem:[%s162 + $0x3c] sm:$0xf]
      %v195 = vunpack.c.l.b16 %v163
      %v196 = vunpack.c.l.b16 %v164
      %v197 = vunpack.c.l.b16 %v165
      %v198 = vunpack.c.l.b16 %v166
      %v199 = vunpack.c.l.b16 %v167
      %v200 = vunpack.c.l.b16 %v168
      %v201 = vunpack.c.l.b16 %v169
      %v202 = vunpack.c.l.b16 %v170
      %v203 = vunpack.c.l.b16 %v171
      %v204 = vunpack.c.l.b16 %v172
      %v205 = vunpack.c.l.b16 %v173
      %v206 = vunpack.c.l.b16 %v174
      %v207 = vunpack.c.l.b16 %v175
      %v208 = vunpack.c.l.b16 %v176
      %v209 = vunpack.c.l.b16 %v177
      %v210 = vunpack.c.l.b16 %v178
      %v211 = vpack.c.b16 %v196, %v195
      %v212 = vpack.c.b16 %v198, %v197
      %v213 = vpack.c.b16 %v200, %v199
      %v214 = vpack.c.b16 %v202, %v201
      %v215 = vpack.c.b16 %v204, %v203
      %v216 = vpack.c.b16 %v206, %v205
      %v217 = vpack.c.b16 %v208, %v207
      %v218 = vpack.c.b16 %v210, %v209
      %v220 = vunpack.c.l.b16 %v145
      %v221 = vunpack.c.h.b16 %v145
      %v222 = vpack.c.b16 %v220, %v220
      %v223 = vpack.c.b16 %v221, %v221
      %224 = vrot.lane.b32.xlu0 %v222, 6
      %v225 = vpop.permute.xlu0 %224
      %226 = vrot.lane.b32.xlu0 %v223, 6
      %v227 = vpop.permute.xlu0 %226
      %vm228 = vcmask 48128
      %v229 = vsel %vm228, %v225, %v227
      %vm230 = vcmask 64512
      %v232 = vsel %vm230, %v211, 0
      %v235 = vsel %vm230, %v212, 0
      %v238 = vsel %vm230, %v213, 0
      %v241 = vsel %vm230, %v214, 0
      %v244 = vsel %vm230, %v215, 0
      %v247 = vsel %vm230, %v216, 0
      %v250 = vsel %vm230, %v217, 0
      %v253 = vsel %vm230, %v218, 0
      %vm255 = vcmask 1043456
      %v257 = vsel %vm255, %v229, 0
      %259 = vmatpush.bf16.msra.mxu0 0
      %260 = vmatpush.bf16.msra.mxu0 0
      %261 = vmatpush.bf16.msra.mxu0 0
      %262 = vmatpush.bf16.msra.mxu0 0
      %263 = vmatpush.bf16.msra.mxu0 0
      %264 = vmatpush.bf16.msra.mxu0 0
      %265 = vmatpush.bf16.msra.mxu0 0
      %266 = vmatpush.bf16.msra.mxu0 %v257
      %267 = vmatmul.bf16.gmra.mxu0 %v232
      %v268 = vpop.f32.mrf.mxu0
      %v269 = vadd.f32 0.0, %v268
      %v270 = vpop.f32.mrf.mxu0
      %v271 = vadd.f32 0.0, %v270
      %272 = vmatmul.bf16.gmra.mxu0 %v235
      %v273 = vpop.f32.mrf.mxu0
      %v274 = vadd.f32 0.0, %v273
      %v275 = vpop.f32.mrf.mxu0
      %v276 = vadd.f32 0.0, %v275
      %277 = vmatmul.bf16.gmra.mxu0 %v238
      %v278 = vpop.f32.mrf.mxu0
      %v279 = vadd.f32 0.0, %v278
      %v280 = vpop.f32.mrf.mxu0
      %v281 = vadd.f32 0.0, %v280
      %282 = vmatmul.bf16.gmra.mxu0 %v241
      %v283 = vpop.f32.mrf.mxu0
      %v284 = vadd.f32 0.0, %v283
      %v285 = vpop.f32.mrf.mxu0
      %v286 = vadd.f32 0.0, %v285
      %287 = vmatmul.bf16.gmra.mxu0 %v244
      %v288 = vpop.f32.mrf.mxu0
      %v289 = vadd.f32 0.0, %v288
      %v290 = vpop.f32.mrf.mxu0
      %v291 = vadd.f32 0.0, %v290
      %292 = vmatmul.bf16.gmra.mxu0 %v247
      %v293 = vpop.f32.mrf.mxu0
      %v294 = vadd.f32 0.0, %v293
      %v295 = vpop.f32.mrf.mxu0
      %v296 = vadd.f32 0.0, %v295
      %297 = vmatmul.bf16.gmra.mxu0 %v250
      %v298 = vpop.f32.mrf.mxu0
      %v299 = vadd.f32 0.0, %v298
      %v300 = vpop.f32.mrf.mxu0
      %v301 = vadd.f32 0.0, %v300
      %302 = vmatmul.bf16.gmra.mxu0 %v253
      %v303 = vpop.f32.mrf.mxu0
      %v304 = vadd.f32 0.0, %v303
      %v305 = vpop.f32.mrf.mxu0
      %v306 = vadd.f32 0.0, %v305
      %307 = vdwg.mxu0
      %v324 = vunpack.c.l.b16 %v146
      %v325 = vunpack.c.l.b16 %v147
      %v326 = vunpack.c.l.b16 %v148
      %v327 = vunpack.c.l.b16 %v149
      %v328 = vunpack.c.l.b16 %v150
      %v329 = vunpack.c.l.b16 %v151
      %v330 = vunpack.c.l.b16 %v152
      %v331 = vunpack.c.l.b16 %v153
      %v332 = vunpack.c.l.b16 %v154
      %v333 = vunpack.c.l.b16 %v155
      %v334 = vunpack.c.l.b16 %v156
      %v335 = vunpack.c.l.b16 %v157
      %v336 = vunpack.c.l.b16 %v158
      %v337 = vunpack.c.l.b16 %v159
      %v338 = vunpack.c.l.b16 %v160
      %v339 = vunpack.c.l.b16 %v161
      %v340 = vpack.c.b16 %v325, %v324
      %v341 = vpack.c.b16 %v327, %v326
      %v342 = vpack.c.b16 %v329, %v328
      %v343 = vpack.c.b16 %v331, %v330
      %v344 = vpack.c.b16 %v333, %v332
      %v345 = vpack.c.b16 %v335, %v334
      %v346 = vpack.c.b16 %v337, %v336
      %v347 = vpack.c.b16 %v339, %v338
      %348 = vrot.lane.b32.xlu0 %v222, 7
      %v349 = vpop.permute.xlu0 %348
      %350 = vrot.lane.b32.xlu0 %v223, 7
      %v351 = vpop.permute.xlu0 %350
      %vm352 = vcmask 56320
      %v353 = vsel %vm352, %v349, %v351
      %v355 = vsel %vm230, %v340, 0
      %v358 = vsel %vm230, %v341, 0
      %v361 = vsel %vm230, %v342, 0
      %v364 = vsel %vm230, %v343, 0
      %v367 = vsel %vm230, %v344, 0
      %v370 = vsel %vm230, %v345, 0
      %v373 = vsel %vm230, %v346, 0
      %v376 = vsel %vm230, %v347, 0
      %v379 = vsel %vm255, %v353, 0
      %381 = vmatpush.bf16.msra.mxu0 0
      %382 = vmatpush.bf16.msra.mxu0 0
      %383 = vmatpush.bf16.msra.mxu0 0
      %384 = vmatpush.bf16.msra.mxu0 0
      %385 = vmatpush.bf16.msra.mxu0 0
      %386 = vmatpush.bf16.msra.mxu0 0
      %387 = vmatpush.bf16.msra.mxu0 0
      %388 = vmatpush.bf16.msra.mxu0 %v379
      %389 = vmatmul.bf16.gmra.mxu0 %v355
      %v390 = vpop.f32.mrf.mxu0
      %v391 = vadd.f32 %v269, %v390
      %v392 = vpop.f32.mrf.mxu0
      %v393 = vadd.f32 %v271, %v392
      %394 = vmatmul.bf16.gmra.mxu0 %v358
      %v395 = vpop.f32.mrf.mxu0
      %v396 = vadd.f32 %v274, %v395
      %v397 = vpop.f32.mrf.mxu0
      %v398 = vadd.f32 %v276, %v397
      %399 = vmatmul.bf16.gmra.mxu0 %v361
      %v400 = vpop.f32.mrf.mxu0
      %v401 = vadd.f32 %v279, %v400
      %v402 = vpop.f32.mrf.mxu0
      %v403 = vadd.f32 %v281, %v402
      %404 = vmatmul.bf16.gmra.mxu0 %v364
      %v405 = vpop.f32.mrf.mxu0
      %v406 = vadd.f32 %v284, %v405
      %v407 = vpop.f32.mrf.mxu0
      %v408 = vadd.f32 %v286, %v407
      %409 = vmatmul.bf16.gmra.mxu0 %v367
      %v410 = vpop.f32.mrf.mxu0
      %v411 = vadd.f32 %v289, %v410
      %v412 = vpop.f32.mrf.mxu0
      %v413 = vadd.f32 %v291, %v412
      %414 = vmatmul.bf16.gmra.mxu0 %v370
      %v415 = vpop.f32.mrf.mxu0
      %v416 = vadd.f32 %v294, %v415
      %v417 = vpop.f32.mrf.mxu0
      %v418 = vadd.f32 %v296, %v417
      %419 = vmatmul.bf16.gmra.mxu0 %v373
      %v420 = vpop.f32.mrf.mxu0
      %v421 = vadd.f32 %v299, %v420
      %v422 = vpop.f32.mrf.mxu0
      %v423 = vadd.f32 %v301, %v422
      %424 = vmatmul.bf16.gmra.mxu0 %v376
      %v425 = vpop.f32.mrf.mxu0
      %v426 = vadd.f32 %v304, %v425
      %v427 = vpop.f32.mrf.mxu0
      %v428 = vadd.f32 %v306, %v427
      %429 = vdwg.mxu0
      %s430 = scalar_lea.vmem %s1, 128
      %v431 = vld [vmem:[%s430] sm:$0xf]
      %v432 = vld [vmem:[%s430 + $0x4] sm:$0xf]
      %v433 = vld [vmem:[%s430 + $0x8] sm:$0xf]
      %v434 = vld [vmem:[%s430 + $0xc] sm:$0xf]
      %v435 = vld [vmem:[%s430 + $0x10] sm:$0xf]
      %v436 = vld [vmem:[%s430 + $0x14] sm:$0xf]
      %v437 = vld [vmem:[%s430 + $0x18] sm:$0xf]
      %v438 = vld [vmem:[%s430 + $0x1c] sm:$0xf]
      %v439 = vld [vmem:[%s430 + $0x20] sm:$0xf]
      %v440 = vld [vmem:[%s430 + $0x24] sm:$0xf]
      %v441 = vld [vmem:[%s430 + $0x28] sm:$0xf]
      %v442 = vld [vmem:[%s430 + $0x2c] sm:$0xf]
      %v443 = vld [vmem:[%s430 + $0x30] sm:$0xf]
      %v444 = vld [vmem:[%s430 + $0x34] sm:$0xf]
      %v445 = vld [vmem:[%s430 + $0x38] sm:$0xf]
      %v446 = vld [vmem:[%s430 + $0x3c] sm:$0xf]
      %v463 = vunpack.c.l.b16 %v431
      %v464 = vunpack.c.l.b16 %v432
      %v465 = vunpack.c.l.b16 %v433
      %v466 = vunpack.c.l.b16 %v434
      %v467 = vunpack.c.l.b16 %v435
      %v468 = vunpack.c.l.b16 %v436
      %v469 = vunpack.c.l.b16 %v437
      %v470 = vunpack.c.l.b16 %v438
      %v471 = vunpack.c.l.b16 %v439
      %v472 = vunpack.c.l.b16 %v440
      %v473 = vunpack.c.l.b16 %v441
      %v474 = vunpack.c.l.b16 %v442
      %v475 = vunpack.c.l.b16 %v443
      %v476 = vunpack.c.l.b16 %v444
      %v477 = vunpack.c.l.b16 %v445
      %v478 = vunpack.c.l.b16 %v446
      %v479 = vpack.c.b16 %v464, %v463
      %v480 = vpack.c.b16 %v466, %v465
      %v481 = vpack.c.b16 %v468, %v467
      %v482 = vpack.c.b16 %v470, %v469
      %v483 = vpack.c.b16 %v472, %v471
      %v484 = vpack.c.b16 %v474, %v473
      %v485 = vpack.c.b16 %v476, %v475
      %v486 = vpack.c.b16 %v478, %v477
      %487 = vrot.lane.b32.xlu0 %v222, 5
      %v488 = vpop.permute.xlu0 %487
      %489 = vrot.lane.b32.xlu0 %v223, 5
      %v490 = vpop.permute.xlu0 %489
      %vm491 = vcmask 39936
      %v492 = vsel %vm491, %v488, %v490
      %v494 = vsel %vm230, %v479, 0
      %v497 = vsel %vm230, %v480, 0
      %v500 = vsel %vm230, %v481, 0
      %v503 = vsel %vm230, %v482, 0
      %v506 = vsel %vm230, %v483, 0
      %v509 = vsel %vm230, %v484, 0
      %v512 = vsel %vm230, %v485, 0
      %v515 = vsel %vm230, %v486, 0
      %v518 = vsel %vm255, %v492, 0
      %520 = vmatpush.bf16.msra.mxu0 0
      %521 = vmatpush.bf16.msra.mxu0 0
      %522 = vmatpush.bf16.msra.mxu0 0
      %523 = vmatpush.bf16.msra.mxu0 0
      %524 = vmatpush.bf16.msra.mxu0 0
      %525 = vmatpush.bf16.msra.mxu0 0
      %526 = vmatpush.bf16.msra.mxu0 0
      %527 = vmatpush.bf16.msra.mxu0 %v518
      %528 = vmatmul.bf16.gmra.mxu0 %v494
      %v529 = vpop.f32.mrf.mxu0
      %v530 = vadd.f32 0.0, %v529
      %v531 = vpop.f32.mrf.mxu0
      %v532 = vadd.f32 0.0, %v531
      %533 = vmatmul.bf16.gmra.mxu0 %v497
      %v534 = vpop.f32.mrf.mxu0
      %v535 = vadd.f32 0.0, %v534
      %v536 = vpop.f32.mrf.mxu0
      %v537 = vadd.f32 0.0, %v536
      %538 = vmatmul.bf16.gmra.mxu0 %v500
      %v539 = vpop.f32.mrf.mxu0
      %v540 = vadd.f32 0.0, %v539
      %v541 = vpop.f32.mrf.mxu0
      %v542 = vadd.f32 0.0, %v541
      %543 = vmatmul.bf16.gmra.mxu0 %v503
      %v544 = vpop.f32.mrf.mxu0
      %v545 = vadd.f32 0.0, %v544
      %v546 = vpop.f32.mrf.mxu0
      %v547 = vadd.f32 0.0, %v546
      %548 = vmatmul.bf16.gmra.mxu0 %v506
      %v549 = vpop.f32.mrf.mxu0
      %v550 = vadd.f32 0.0, %v549
      %v551 = vpop.f32.mrf.mxu0
      %v552 = vadd.f32 0.0, %v551
      %553 = vmatmul.bf16.gmra.mxu0 %v509
      %v554 = vpop.f32.mrf.mxu0
      %v555 = vadd.f32 0.0, %v554
      %v556 = vpop.f32.mrf.mxu0
      %v557 = vadd.f32 0.0, %v556
      %558 = vmatmul.bf16.gmra.mxu0 %v512
      %v559 = vpop.f32.mrf.mxu0
      %v560 = vadd.f32 0.0, %v559
      %v561 = vpop.f32.mrf.mxu0
      %v562 = vadd.f32 0.0, %v561
      %563 = vmatmul.bf16.gmra.mxu0 %v515
      %v564 = vpop.f32.mrf.mxu0
      %v565 = vadd.f32 0.0, %v564
      %v566 = vpop.f32.mrf.mxu0
      %v567 = vadd.f32 0.0, %v566
      %568 = vdwg.mxu0
      %v569 = vadd.f32 %v391, %v530
      %v570 = vadd.f32 %v393, %v532
      %v571 = vadd.f32 %v396, %v535
      %v572 = vadd.f32 %v398, %v537
      %v573 = vadd.f32 %v401, %v540
      %v574 = vadd.f32 %v403, %v542
      %v575 = vadd.f32 %v406, %v545
      %v576 = vadd.f32 %v408, %v547
      %v577 = vadd.f32 %v411, %v550
      %v578 = vadd.f32 %v413, %v552
      %v579 = vadd.f32 %v416, %v555
      %v580 = vadd.f32 %v418, %v557
      %v581 = vadd.f32 %v421, %v560
      %v582 = vadd.f32 %v423, %v562
      %v583 = vadd.f32 %v426, %v565
      %v584 = vadd.f32 %v428, %v567
      %s585 = scalar_lea.vmem %s1, 192
      %v586 = vld [vmem:[%s585] sm:$0xf]
      %v587 = vld [vmem:[%s585 + $0x4] sm:$0xf]
      %v588 = vld [vmem:[%s585 + $0x8] sm:$0xf]
      %v589 = vld [vmem:[%s585 + $0xc] sm:$0xf]
      %v590 = vld [vmem:[%s585 + $0x10] sm:$0xf]
      %v591 = vld [vmem:[%s585 + $0x14] sm:$0xf]
      %v592 = vld [vmem:[%s585 + $0x18] sm:$0xf]
      %v593 = vld [vmem:[%s585 + $0x1c] sm:$0xf]
      %v594 = vld [vmem:[%s585 + $0x20] sm:$0xf]
      %v595 = vld [vmem:[%s585 + $0x24] sm:$0xf]
      %v596 = vld [vmem:[%s585 + $0x28] sm:$0xf]
      %v597 = vld [vmem:[%s585 + $0x2c] sm:$0xf]
      %v598 = vld [vmem:[%s585 + $0x30] sm:$0xf]
      %v599 = vld [vmem:[%s585 + $0x34] sm:$0xf]
      %v600 = vld [vmem:[%s585 + $0x38] sm:$0xf]
      %v601 = vld [vmem:[%s585 + $0x3c] sm:$0xf]
      %v618 = vunpack.c.l.b16 %v586
      %v619 = vunpack.c.l.b16 %v587
      %v620 = vunpack.c.l.b16 %v588
      %v621 = vunpack.c.l.b16 %v589
      %v622 = vunpack.c.l.b16 %v590
      %v623 = vunpack.c.l.b16 %v591
      %v624 = vunpack.c.l.b16 %v592
      %v625 = vunpack.c.l.b16 %v593
      %v626 = vunpack.c.l.b16 %v594
      %v627 = vunpack.c.l.b16 %v595
      %v628 = vunpack.c.l.b16 %v596
      %v629 = vunpack.c.l.b16 %v597
      %v630 = vunpack.c.l.b16 %v598
      %v631 = vunpack.c.l.b16 %v599
      %v632 = vunpack.c.l.b16 %v600
      %v633 = vunpack.c.l.b16 %v601
      %v634 = vpack.c.b16 %v619, %v618
      %v635 = vpack.c.b16 %v621, %v620
      %v636 = vpack.c.b16 %v623, %v622
      %v637 = vpack.c.b16 %v625, %v624
      %v638 = vpack.c.b16 %v627, %v626
      %v639 = vpack.c.b16 %v629, %v628
      %v640 = vpack.c.b16 %v631, %v630
      %v641 = vpack.c.b16 %v633, %v632
      %642 = vrot.lane.b32.xlu0 %v222, 1
      %v643 = vpop.permute.xlu0 %642
      %644 = vrot.lane.b32.xlu0 %v223, 1
      %v645 = vpop.permute.xlu0 %644
      %vm646 = vcmask 7168
      %v647 = vsel %vm646, %v643, %v645
      %v649 = vsel %vm230, %v634, 0
      %v652 = vsel %vm230, %v635, 0
      %v655 = vsel %vm230, %v636, 0
      %v658 = vsel %vm230, %v637, 0
      %v661 = vsel %vm230, %v638, 0
      %v664 = vsel %vm230, %v639, 0
      %v667 = vsel %vm230, %v640, 0
      %v670 = vsel %vm230, %v641, 0
      %v673 = vsel %vm255, %v647, 0
      %675 = vmatpush.bf16.msra.mxu0 0
      %676 = vmatpush.bf16.msra.mxu0 0
      %677 = vmatpush.bf16.msra.mxu0 0
      %678 = vmatpush.bf16.msra.mxu0 0
      %679 = vmatpush.bf16.msra.mxu0 0
      %680 = vmatpush.bf16.msra.mxu0 0
      %681 = vmatpush.bf16.msra.mxu0 0
      %682 = vmatpush.bf16.msra.mxu0 %v673
      %683 = vmatmul.bf16.gmra.mxu0 %v649
      %v684 = vpop.f32.mrf.mxu0
      %v685 = vadd.f32 0.0, %v684
      %v686 = vpop.f32.mrf.mxu0
      %v687 = vadd.f32 0.0, %v686
      %688 = vmatmul.bf16.gmra.mxu0 %v652
      %v689 = vpop.f32.mrf.mxu0
      %v690 = vadd.f32 0.0, %v689
      %v691 = vpop.f32.mrf.mxu0
      %v692 = vadd.f32 0.0, %v691
      %693 = vmatmul.bf16.gmra.mxu0 %v655
      %v694 = vpop.f32.mrf.mxu0
      %v695 = vadd.f32 0.0, %v694
      %v696 = vpop.f32.mrf.mxu0
      %v697 = vadd.f32 0.0, %v696
      %698 = vmatmul.bf16.gmra.mxu0 %v658
      %v699 = vpop.f32.mrf.mxu0
      %v700 = vadd.f32 0.0, %v699
      %v701 = vpop.f32.mrf.mxu0
      %v702 = vadd.f32 0.0, %v701
      %703 = vmatmul.bf16.gmra.mxu0 %v661
      %v704 = vpop.f32.mrf.mxu0
      %v705 = vadd.f32 0.0, %v704
      %v706 = vpop.f32.mrf.mxu0
      %v707 = vadd.f32 0.0, %v706
      %708 = vmatmul.bf16.gmra.mxu0 %v664
      %v709 = vpop.f32.mrf.mxu0
      %v710 = vadd.f32 0.0, %v709
      %v711 = vpop.f32.mrf.mxu0
      %v712 = vadd.f32 0.0, %v711
      %713 = vmatmul.bf16.gmra.mxu0 %v667
      %v714 = vpop.f32.mrf.mxu0
      %v715 = vadd.f32 0.0, %v714
      %v716 = vpop.f32.mrf.mxu0
      %v717 = vadd.f32 0.0, %v716
      %718 = vmatmul.bf16.gmra.mxu0 %v670
      %v719 = vpop.f32.mrf.mxu0
      %v720 = vadd.f32 0.0, %v719
      %v721 = vpop.f32.mrf.mxu0
      %v722 = vadd.f32 0.0, %v721
      %723 = vdwg.mxu0
      %v724 = vadd.f32 %v569, %v685
      %v725 = vadd.f32 %v570, %v687
      %v726 = vadd.f32 %v571, %v690
      %v727 = vadd.f32 %v572, %v692
      %v728 = vadd.f32 %v573, %v695
      %v729 = vadd.f32 %v574, %v697
      %v730 = vadd.f32 %v575, %v700
      %v731 = vadd.f32 %v576, %v702
      %v732 = vadd.f32 %v577, %v705
      %v733 = vadd.f32 %v578, %v707
      %v734 = vadd.f32 %v579, %v710
      %v735 = vadd.f32 %v580, %v712
      %v736 = vadd.f32 %v581, %v715
      %v737 = vadd.f32 %v582, %v717
      %v738 = vadd.f32 %v583, %v720
      %v739 = vadd.f32 %v584, %v722
      %v740 = vld [vmem:[%s138 + $0x4] sm:$0xf]
      %s741 = scalar_lea.vmem %s1, 256
      %v742 = vld [vmem:[%s741] sm:$0xf]
      %v743 = vld [vmem:[%s741 + $0x4] sm:$0xf]
      %v744 = vld [vmem:[%s741 + $0x8] sm:$0xf]
      %v745 = vld [vmem:[%s741 + $0xc] sm:$0xf]
      %v746 = vld [vmem:[%s741 + $0x10] sm:$0xf]
      %v747 = vld [vmem:[%s741 + $0x14] sm:$0xf]
      %v748 = vld [vmem:[%s741 + $0x18] sm:$0xf]
      %v749 = vld [vmem:[%s741 + $0x1c] sm:$0xf]
      %v750 = vld [vmem:[%s741 + $0x20] sm:$0xf]
      %v751 = vld [vmem:[%s741 + $0x24] sm:$0xf]
      %v752 = vld [vmem:[%s741 + $0x28] sm:$0xf]
      %v753 = vld [vmem:[%s741 + $0x2c] sm:$0xf]
      %v754 = vld [vmem:[%s741 + $0x30] sm:$0xf]
      %v755 = vld [vmem:[%s741 + $0x34] sm:$0xf]
      %v756 = vld [vmem:[%s741 + $0x38] sm:$0xf]
      %v757 = vld [vmem:[%s741 + $0x3c] sm:$0xf]
      %v774 = vunpack.c.l.b16 %v742
      %v775 = vunpack.c.l.b16 %v743
      %v776 = vunpack.c.l.b16 %v744
      %v777 = vunpack.c.l.b16 %v745
      %v778 = vunpack.c.l.b16 %v746
      %v779 = vunpack.c.l.b16 %v747
      %v780 = vunpack.c.l.b16 %v748
      %v781 = vunpack.c.l.b16 %v749
      %v782 = vunpack.c.l.b16 %v750
      %v783 = vunpack.c.l.b16 %v751
      %v784 = vunpack.c.l.b16 %v752
      %v785 = vunpack.c.l.b16 %v753
      %v786 = vunpack.c.l.b16 %v754
      %v787 = vunpack.c.l.b16 %v755
      %v788 = vunpack.c.l.b16 %v756
      %v789 = vunpack.c.l.b16 %v757
      %v790 = vpack.c.b16 %v775, %v774
      %v791 = vpack.c.b16 %v777, %v776
      %v792 = vpack.c.b16 %v779, %v778
      %v793 = vpack.c.b16 %v781, %v780
      %v794 = vpack.c.b16 %v783, %v782
      %v795 = vpack.c.b16 %v785, %v784
      %v796 = vpack.c.b16 %v787, %v786
      %v797 = vpack.c.b16 %v789, %v788
      %v799 = vsel %vm230, %v790, 0
      %v802 = vsel %vm230, %v791, 0
      %v805 = vsel %vm230, %v792, 0
      %v808 = vsel %vm230, %v793, 0
      %v811 = vsel %vm230, %v794, 0
      %v814 = vsel %vm230, %v795, 0
      %v817 = vsel %vm230, %v796, 0
      %v820 = vsel %vm230, %v797, 0
      %v823 = vsel %vm255, %v740, 0
      %825 = vmatpush.bf16.msra.mxu0 0
      %826 = vmatpush.bf16.msra.mxu0 0
      %827 = vmatpush.bf16.msra.mxu0 0
      %828 = vmatpush.bf16.msra.mxu0 0
      %829 = vmatpush.bf16.msra.mxu0 0
      %830 = vmatpush.bf16.msra.mxu0 0
      %831 = vmatpush.bf16.msra.mxu0 0
      %832 = vmatpush.bf16.msra.mxu0 %v823
      %833 = vmatmul.bf16.gmra.mxu0 %v799
      %v834 = vpop.f32.mrf.mxu0
      %v835 = vadd.f32 0.0, %v834
      %v836 = vpop.f32.mrf.mxu0
      %v837 = vadd.f32 0.0, %v836
      %838 = vmatmul.bf16.gmra.mxu0 %v802
      %v839 = vpop.f32.mrf.mxu0
      %v840 = vadd.f32 0.0, %v839
      %v841 = vpop.f32.mrf.mxu0
      %v842 = vadd.f32 0.0, %v841
      %843 = vmatmul.bf16.gmra.mxu0 %v805
      %v844 = vpop.f32.mrf.mxu0
      %v845 = vadd.f32 0.0, %v844
      %v846 = vpop.f32.mrf.mxu0
      %v847 = vadd.f32 0.0, %v846
      %848 = vmatmul.bf16.gmra.mxu0 %v808
      %v849 = vpop.f32.mrf.mxu0
      %v850 = vadd.f32 0.0, %v849
      %v851 = vpop.f32.mrf.mxu0
      %v852 = vadd.f32 0.0, %v851
      %853 = vmatmul.bf16.gmra.mxu0 %v811
      %v854 = vpop.f32.mrf.mxu0
      %v855 = vadd.f32 0.0, %v854
      %v856 = vpop.f32.mrf.mxu0
      %v857 = vadd.f32 0.0, %v856
      %858 = vmatmul.bf16.gmra.mxu0 %v814
      %v859 = vpop.f32.mrf.mxu0
      %v860 = vadd.f32 0.0, %v859
      %v861 = vpop.f32.mrf.mxu0
      %v862 = vadd.f32 0.0, %v861
      %863 = vmatmul.bf16.gmra.mxu0 %v817
      %v864 = vpop.f32.mrf.mxu0
      %v865 = vadd.f32 0.0, %v864
      %v866 = vpop.f32.mrf.mxu0
      %v867 = vadd.f32 0.0, %v866
      %868 = vmatmul.bf16.gmra.mxu0 %v820
      %v869 = vpop.f32.mrf.mxu0
      %v870 = vadd.f32 0.0, %v869
      %v871 = vpop.f32.mrf.mxu0
      %v872 = vadd.f32 0.0, %v871
      %873 = vdwg.mxu0
      %v874 = vadd.f32 %v724, %v835
      %v875 = vadd.f32 %v725, %v837
      %v876 = vadd.f32 %v726, %v840
      %v877 = vadd.f32 %v727, %v842
      %v878 = vadd.f32 %v728, %v845
      %v879 = vadd.f32 %v729, %v847
      %v880 = vadd.f32 %v730, %v850
      %v881 = vadd.f32 %v731, %v852
      %v882 = vadd.f32 %v732, %v855
      %v883 = vadd.f32 %v733, %v857
      %v884 = vadd.f32 %v734, %v860
      %v885 = vadd.f32 %v735, %v862
      %v886 = vadd.f32 %v736, %v865
      %v887 = vadd.f32 %v737, %v867
      %v888 = vadd.f32 %v738, %v870
      %v889 = vadd.f32 %v739, %v872
      %v890 = vld [vmem:[%s138 + $0x4] sm:$0xff]
      %s891 = scalar_lea.vmem %s1, 320
      %v892 = vld [vmem:[%s891] sm:$0xf]
      %v893 = vld [vmem:[%s891 + $0x4] sm:$0xf]
      %v894 = vld [vmem:[%s891 + $0x8] sm:$0xf]
      %v895 = vld [vmem:[%s891 + $0xc] sm:$0xf]
      %v896 = vld [vmem:[%s891 + $0x10] sm:$0xf]
      %v897 = vld [vmem:[%s891 + $0x14] sm:$0xf]
      %v898 = vld [vmem:[%s891 + $0x18] sm:$0xf]
      %v899 = vld [vmem:[%s891 + $0x1c] sm:$0xf]
      %v900 = vld [vmem:[%s891 + $0x20] sm:$0xf]
      %v901 = vld [vmem:[%s891 + $0x24] sm:$0xf]
      %v902 = vld [vmem:[%s891 + $0x28] sm:$0xf]
      %v903 = vld [vmem:[%s891 + $0x2c] sm:$0xf]
      %v904 = vld [vmem:[%s891 + $0x30] sm:$0xf]
      %v905 = vld [vmem:[%s891 + $0x34] sm:$0xf]
      %v906 = vld [vmem:[%s891 + $0x38] sm:$0xf]
      %v907 = vld [vmem:[%s891 + $0x3c] sm:$0xf]
      %v924 = vunpack.c.l.b16 %v892
      %v925 = vunpack.c.l.b16 %v893
      %v926 = vunpack.c.l.b16 %v894
      %v927 = vunpack.c.l.b16 %v895
      %v928 = vunpack.c.l.b16 %v896
      %v929 = vunpack.c.l.b16 %v897
      %v930 = vunpack.c.l.b16 %v898
      %v931 = vunpack.c.l.b16 %v899
      %v932 = vunpack.c.l.b16 %v900
      %v933 = vunpack.c.l.b16 %v901
      %v934 = vunpack.c.l.b16 %v902
      %v935 = vunpack.c.l.b16 %v903
      %v936 = vunpack.c.l.b16 %v904
      %v937 = vunpack.c.l.b16 %v905
      %v938 = vunpack.c.l.b16 %v906
      %v939 = vunpack.c.l.b16 %v907
      %v940 = vpack.c.b16 %v925, %v924
      %v941 = vpack.c.b16 %v927, %v926
      %v942 = vpack.c.b16 %v929, %v928
      %v943 = vpack.c.b16 %v931, %v930
      %v944 = vpack.c.b16 %v933, %v932
      %v945 = vpack.c.b16 %v935, %v934
      %v946 = vpack.c.b16 %v937, %v936
      %v947 = vpack.c.b16 %v939, %v938
      %v949 = vunpack.c.l.b16 %v890
      %v950 = vunpack.c.h.b16 %v890
      %v951 = vpack.c.b16 %v949, %v949
      %v952 = vpack.c.b16 %v950, %v950
      %953 = vrot.lane.b32.xlu0 %v951, 127
      %v954 = vpop.permute.xlu0 %953
      %955 = vrot.lane.b32.xlu0 %v952, 127
      %v956 = vpop.permute.xlu0 %955
      %vm957 = vcmask 1039360
      %v958 = vsel %vm957, %v954, %v956
      %v960 = vsel %vm230, %v940, 0
      %v963 = vsel %vm230, %v941, 0
      %v966 = vsel %vm230, %v942, 0
      %v969 = vsel %vm230, %v943, 0
      %v972 = vsel %vm230, %v944, 0
      %v975 = vsel %vm230, %v945, 0
      %v978 = vsel %vm230, %v946, 0
      %v981 = vsel %vm230, %v947, 0
      %v984 = vsel %vm255, %v958, 0
      %986 = vmatpush.bf16.msra.mxu0 0
      %987 = vmatpush.bf16.msra.mxu0 0
      %988 = vmatpush.bf16.msra.mxu0 0
      %989 = vmatpush.bf16.msra.mxu0 0
      %990 = vmatpush.bf16.msra.mxu0 0
      %991 = vmatpush.bf16.msra.mxu0 0
      %992 = vmatpush.bf16.msra.mxu0 0
      %993 = vmatpush.bf16.msra.mxu0 %v984
      %994 = vmatmul.bf16.gmra.mxu0 %v960
      %v995 = vpop.f32.mrf.mxu0
      %v996 = vadd.f32 0.0, %v995
      %v997 = vpop.f32.mrf.mxu0
      %v998 = vadd.f32 0.0, %v997
      %999 = vmatmul.bf16.gmra.mxu0 %v963
      %v1000 = vpop.f32.mrf.mxu0
      %v1001 = vadd.f32 0.0, %v1000
      %v1002 = vpop.f32.mrf.mxu0
      %v1003 = vadd.f32 0.0, %v1002
      %1004 = vmatmul.bf16.gmra.mxu0 %v966
      %v1005 = vpop.f32.mrf.mxu0
      %v1006 = vadd.f32 0.0, %v1005
      %v1007 = vpop.f32.mrf.mxu0
      %v1008 = vadd.f32 0.0, %v1007
      %1009 = vmatmul.bf16.gmra.mxu0 %v969
      %v1010 = vpop.f32.mrf.mxu0
      %v1011 = vadd.f32 0.0, %v1010
      %v1012 = vpop.f32.mrf.mxu0
      %v1013 = vadd.f32 0.0, %v1012
      %1014 = vmatmul.bf16.gmra.mxu0 %v972
      %v1015 = vpop.f32.mrf.mxu0
      %v1016 = vadd.f32 0.0, %v1015
      %v1017 = vpop.f32.mrf.mxu0
      %v1018 = vadd.f32 0.0, %v1017
      %1019 = vmatmul.bf16.gmra.mxu0 %v975
      %v1020 = vpop.f32.mrf.mxu0
      %v1021 = vadd.f32 0.0, %v1020
      %v1022 = vpop.f32.mrf.mxu0
      %v1023 = vadd.f32 0.0, %v1022
      %1024 = vmatmul.bf16.gmra.mxu0 %v978
      %v1025 = vpop.f32.mrf.mxu0
      %v1026 = vadd.f32 0.0, %v1025
      %v1027 = vpop.f32.mrf.mxu0
      %v1028 = vadd.f32 0.0, %v1027
      %1029 = vmatmul.bf16.gmra.mxu0 %v981
      %v1030 = vpop.f32.mrf.mxu0
      %v1031 = vadd.f32 0.0, %v1030
      %v1032 = vpop.f32.mrf.mxu0
      %v1033 = vadd.f32 0.0, %v1032
      %1034 = vdwg.mxu0
      %v1035 = vadd.f32 %v874, %v996
      %v1036 = vadd.f32 %v875, %v998
      %v1037 = vadd.f32 %v876, %v1001
      %v1038 = vadd.f32 %v877, %v1003
      %v1039 = vadd.f32 %v878, %v1006
      %v1040 = vadd.f32 %v879, %v1008
      %v1041 = vadd.f32 %v880, %v1011
      %v1042 = vadd.f32 %v881, %v1013
      %v1043 = vadd.f32 %v882, %v1016
      %v1044 = vadd.f32 %v883, %v1018
      %v1045 = vadd.f32 %v884, %v1021
      %v1046 = vadd.f32 %v885, %v1023
      %v1047 = vadd.f32 %v886, %v1026
      %v1048 = vadd.f32 %v887, %v1028
      %v1049 = vadd.f32 %v888, %v1031
      %v1050 = vadd.f32 %v889, %v1033
      %s1051 = scalar_lea.vmem %s1, 384
      %v1052 = vld [vmem:[%s1051] sm:$0xf]
      %v1053 = vld [vmem:[%s1051 + $0x4] sm:$0xf]
      %v1054 = vld [vmem:[%s1051 + $0x8] sm:$0xf]
      %v1055 = vld [vmem:[%s1051 + $0xc] sm:$0xf]
      %v1056 = vld [vmem:[%s1051 + $0x10] sm:$0xf]
      %v1057 = vld [vmem:[%s1051 + $0x14] sm:$0xf]
      %v1058 = vld [vmem:[%s1051 + $0x18] sm:$0xf]
      %v1059 = vld [vmem:[%s1051 + $0x1c] sm:$0xf]
      %v1060 = vld [vmem:[%s1051 + $0x20] sm:$0xf]
      %v1061 = vld [vmem:[%s1051 + $0x24] sm:$0xf]
      %v1062 = vld [vmem:[%s1051 + $0x28] sm:$0xf]
      %v1063 = vld [vmem:[%s1051 + $0x2c] sm:$0xf]
      %v1064 = vld [vmem:[%s1051 + $0x30] sm:$0xf]
      %v1065 = vld [vmem:[%s1051 + $0x34] sm:$0xf]
      %v1066 = vld [vmem:[%s1051 + $0x38] sm:$0xf]
      %v1067 = vld [vmem:[%s1051 + $0x3c] sm:$0xf]
      %v1084 = vunpack.c.l.b16 %v1052
      %v1085 = vunpack.c.l.b16 %v1053
      %v1086 = vunpack.c.l.b16 %v1054
      %v1087 = vunpack.c.l.b16 %v1055
      %v1088 = vunpack.c.l.b16 %v1056
      %v1089 = vunpack.c.l.b16 %v1057
      %v1090 = vunpack.c.l.b16 %v1058
      %v1091 = vunpack.c.l.b16 %v1059
      %v1092 = vunpack.c.l.b16 %v1060
      %v1093 = vunpack.c.l.b16 %v1061
      %v1094 = vunpack.c.l.b16 %v1062
      %v1095 = vunpack.c.l.b16 %v1063
      %v1096 = vunpack.c.l.b16 %v1064
      %v1097 = vunpack.c.l.b16 %v1065
      %v1098 = vunpack.c.l.b16 %v1066
      %v1099 = vunpack.c.l.b16 %v1067
      %v1100 = vpack.c.b16 %v1085, %v1084
      %v1101 = vpack.c.b16 %v1087, %v1086
      %v1102 = vpack.c.b16 %v1089, %v1088
      %v1103 = vpack.c.b16 %v1091, %v1090
      %v1104 = vpack.c.b16 %v1093, %v1092
      %v1105 = vpack.c.b16 %v1095, %v1094
      %v1106 = vpack.c.b16 %v1097, %v1096
      %v1107 = vpack.c.b16 %v1099, %v1098
      %1108 = vrot.lane.b32.xlu0 %v951, 123
      %v1109 = vpop.permute.xlu0 %1108
      %1110 = vrot.lane.b32.xlu0 %v952, 123
      %v1111 = vpop.permute.xlu0 %1110
      %vm1112 = vcmask 1006592
      %v1113 = vsel %vm1112, %v1109, %v1111
      %v1115 = vsel %vm230, %v1100, 0
      %v1118 = vsel %vm230, %v1101, 0
      %v1121 = vsel %vm230, %v1102, 0
      %v1124 = vsel %vm230, %v1103, 0
      %v1127 = vsel %vm230, %v1104, 0
      %v1130 = vsel %vm230, %v1105, 0
      %v1133 = vsel %vm230, %v1106, 0
      %v1136 = vsel %vm230, %v1107, 0
      %v1139 = vsel %vm255, %v1113, 0
      %1141 = vmatpush.bf16.msra.mxu0 0
      %1142 = vmatpush.bf16.msra.mxu0 0
      %1143 = vmatpush.bf16.msra.mxu0 0
      %1144 = vmatpush.bf16.msra.mxu0 0
      %1145 = vmatpush.bf16.msra.mxu0 0
      %1146 = vmatpush.bf16.msra.mxu0 0
      %1147 = vmatpush.bf16.msra.mxu0 0
      %1148 = vmatpush.bf16.msra.mxu0 %v1139
      %1149 = vmatmul.bf16.gmra.mxu0 %v1115
      %v1150 = vpop.f32.mrf.mxu0
      %v1151 = vadd.f32 0.0, %v1150
      %v1152 = vpop.f32.mrf.mxu0
      %v1153 = vadd.f32 0.0, %v1152
      %1154 = vmatmul.bf16.gmra.mxu0 %v1118
      %v1155 = vpop.f32.mrf.mxu0
      %v1156 = vadd.f32 0.0, %v1155
      %v1157 = vpop.f32.mrf.mxu0
      %v1158 = vadd.f32 0.0, %v1157
      %1159 = vmatmul.bf16.gmra.mxu0 %v1121
      %v1160 = vpop.f32.mrf.mxu0
      %v1161 = vadd.f32 0.0, %v1160
      %v1162 = vpop.f32.mrf.mxu0
      %v1163 = vadd.f32 0.0, %v1162
      %1164 = vmatmul.bf16.gmra.mxu0 %v1124
      %v1165 = vpop.f32.mrf.mxu0
      %v1166 = vadd.f32 0.0, %v1165
      %v1167 = vpop.f32.mrf.mxu0
      %v1168 = vadd.f32 0.0, %v1167
      %1169 = vmatmul.bf16.gmra.mxu0 %v1127
      %v1170 = vpop.f32.mrf.mxu0
      %v1171 = vadd.f32 0.0, %v1170
      %v1172 = vpop.f32.mrf.mxu0
      %v1173 = vadd.f32 0.0, %v1172
      %1174 = vmatmul.bf16.gmra.mxu0 %v1130
      %v1175 = vpop.f32.mrf.mxu0
      %v1176 = vadd.f32 0.0, %v1175
      %v1177 = vpop.f32.mrf.mxu0
      %v1178 = vadd.f32 0.0, %v1177
      %1179 = vmatmul.bf16.gmra.mxu0 %v1133
      %v1180 = vpop.f32.mrf.mxu0
      %v1181 = vadd.f32 0.0, %v1180
      %v1182 = vpop.f32.mrf.mxu0
      %v1183 = vadd.f32 0.0, %v1182
      %1184 = vmatmul.bf16.gmra.mxu0 %v1136
      %v1185 = vpop.f32.mrf.mxu0
      %v1186 = vadd.f32 0.0, %v1185
      %v1187 = vpop.f32.mrf.mxu0
      %v1188 = vadd.f32 0.0, %v1187
      %1189 = vdwg.mxu0
      %v1190 = vadd.f32 %v1035, %v1151
      %v1191 = vadd.f32 %v1036, %v1153
      %v1192 = vadd.f32 %v1037, %v1156
      %v1193 = vadd.f32 %v1038, %v1158
      %v1194 = vadd.f32 %v1039, %v1161
      %v1195 = vadd.f32 %v1040, %v1163
      %v1196 = vadd.f32 %v1041, %v1166
      %v1197 = vadd.f32 %v1042, %v1168
      %v1198 = vadd.f32 %v1043, %v1171
      %v1199 = vadd.f32 %v1044, %v1173
      %v1200 = vadd.f32 %v1045, %v1176
      %v1201 = vadd.f32 %v1046, %v1178
      %v1202 = vadd.f32 %v1047, %v1181
      %v1203 = vadd.f32 %v1048, %v1183
      %v1204 = vadd.f32 %v1049, %v1186
      %v1205 = vadd.f32 %v1050, %v1188
      %s1206 = scalar_lea.vmem %s1, 448
      %v1207 = vld [vmem:[%s1206] sm:$0xf]
      %v1208 = vld [vmem:[%s1206 + $0x4] sm:$0xf]
      %v1209 = vld [vmem:[%s1206 + $0x8] sm:$0xf]
      %v1210 = vld [vmem:[%s1206 + $0xc] sm:$0xf]
      %v1211 = vld [vmem:[%s1206 + $0x10] sm:$0xf]
      %v1212 = vld [vmem:[%s1206 + $0x14] sm:$0xf]
      %v1213 = vld [vmem:[%s1206 + $0x18] sm:$0xf]
      %v1214 = vld [vmem:[%s1206 + $0x1c] sm:$0xf]
      %v1215 = vld [vmem:[%s1206 + $0x20] sm:$0xf]
      %v1216 = vld [vmem:[%s1206 + $0x24] sm:$0xf]
      %v1217 = vld [vmem:[%s1206 + $0x28] sm:$0xf]
      %v1218 = vld [vmem:[%s1206 + $0x2c] sm:$0xf]
      %v1219 = vld [vmem:[%s1206 + $0x30] sm:$0xf]
      %v1220 = vld [vmem:[%s1206 + $0x34] sm:$0xf]
      %v1221 = vld [vmem:[%s1206 + $0x38] sm:$0xf]
      %v1222 = vld [vmem:[%s1206 + $0x3c] sm:$0xf]
      %v1239 = vunpack.c.l.b16 %v1207
      %v1240 = vunpack.c.l.b16 %v1208
      %v1241 = vunpack.c.l.b16 %v1209
      %v1242 = vunpack.c.l.b16 %v1210
      %v1243 = vunpack.c.l.b16 %v1211
      %v1244 = vunpack.c.l.b16 %v1212
      %v1245 = vunpack.c.l.b16 %v1213
      %v1246 = vunpack.c.l.b16 %v1214
      %v1247 = vunpack.c.l.b16 %v1215
      %v1248 = vunpack.c.l.b16 %v1216
      %v1249 = vunpack.c.l.b16 %v1217
      %v1250 = vunpack.c.l.b16 %v1218
      %v1251 = vunpack.c.l.b16 %v1219
      %v1252 = vunpack.c.l.b16 %v1220
      %v1253 = vunpack.c.l.b16 %v1221
      %v1254 = vunpack.c.l.b16 %v1222
      %v1255 = vpack.c.b16 %v1240, %v1239
      %v1256 = vpack.c.b16 %v1242, %v1241
      %v1257 = vpack.c.b16 %v1244, %v1243
      %v1258 = vpack.c.b16 %v1246, %v1245
      %v1259 = vpack.c.b16 %v1248, %v1247
      %v1260 = vpack.c.b16 %v1250, %v1249
      %v1261 = vpack.c.b16 %v1252, %v1251
      %v1262 = vpack.c.b16 %v1254, %v1253
      %1263 = vrot.lane.b32.xlu0 %v951, 122
      %v1264 = vpop.permute.xlu0 %1263
      %1265 = vrot.lane.b32.xlu0 %v952, 122
      %v1266 = vpop.permute.xlu0 %1265
      %vm1267 = vcmask 998400
      %v1268 = vsel %vm1267, %v1264, %v1266
      %v1270 = vsel %vm230, %v1255, 0
      %v1273 = vsel %vm230, %v1256, 0
      %v1276 = vsel %vm230, %v1257, 0
      %v1279 = vsel %vm230, %v1258, 0
      %v1282 = vsel %vm230, %v1259, 0
      %v1285 = vsel %vm230, %v1260, 0
      %v1288 = vsel %vm230, %v1261, 0
      %v1291 = vsel %vm230, %v1262, 0
      %v1294 = vsel %vm255, %v1268, 0
      %1296 = vmatpush.bf16.msra.mxu0 0
      %1297 = vmatpush.bf16.msra.mxu0 0
      %1298 = vmatpush.bf16.msra.mxu0 0
      %1299 = vmatpush.bf16.msra.mxu0 0
      %1300 = vmatpush.bf16.msra.mxu0 0
      %1301 = vmatpush.bf16.msra.mxu0 0
      %1302 = vmatpush.bf16.msra.mxu0 0
      %1303 = vmatpush.bf16.msra.mxu0 %v1294
      %1304 = vmatmul.bf16.gmra.mxu0 %v1270
      %v1305 = vpop.f32.mrf.mxu0
      %v1306 = vadd.f32 0.0, %v1305
      %v1307 = vpop.f32.mrf.mxu0
      %v1308 = vadd.f32 0.0, %v1307
      %1309 = vmatmul.bf16.gmra.mxu0 %v1273
      %v1310 = vpop.f32.mrf.mxu0
      %v1311 = vadd.f32 0.0, %v1310
      %v1312 = vpop.f32.mrf.mxu0
      %v1313 = vadd.f32 0.0, %v1312
      %1314 = vmatmul.bf16.gmra.mxu0 %v1276
      %v1315 = vpop.f32.mrf.mxu0
      %v1316 = vadd.f32 0.0, %v1315
      %v1317 = vpop.f32.mrf.mxu0
      %v1318 = vadd.f32 0.0, %v1317
      %1319 = vmatmul.bf16.gmra.mxu0 %v1279
      %v1320 = vpop.f32.mrf.mxu0
      %v1321 = vadd.f32 0.0, %v1320
      %v1322 = vpop.f32.mrf.mxu0
      %v1323 = vadd.f32 0.0, %v1322
      %1324 = vmatmul.bf16.gmra.mxu0 %v1282
      %v1325 = vpop.f32.mrf.mxu0
      %v1326 = vadd.f32 0.0, %v1325
      %v1327 = vpop.f32.mrf.mxu0
      %v1328 = vadd.f32 0.0, %v1327
      %1329 = vmatmul.bf16.gmra.mxu0 %v1285
      %v1330 = vpop.f32.mrf.mxu0
      %v1331 = vadd.f32 0.0, %v1330
      %v1332 = vpop.f32.mrf.mxu0
      %v1333 = vadd.f32 0.0, %v1332
      %1334 = vmatmul.bf16.gmra.mxu0 %v1288
      %v1335 = vpop.f32.mrf.mxu0
      %v1336 = vadd.f32 0.0, %v1335
      %v1337 = vpop.f32.mrf.mxu0
      %v1338 = vadd.f32 0.0, %v1337
      %1339 = vmatmul.bf16.gmra.mxu0 %v1291
      %v1340 = vpop.f32.mrf.mxu0
      %v1341 = vadd.f32 0.0, %v1340
      %v1342 = vpop.f32.mrf.mxu0
      %v1343 = vadd.f32 0.0, %v1342
      %1344 = vdwg.mxu0
      %v1345 = vadd.f32 %v1190, %v1306
      %v1346 = vadd.f32 %v1191, %v1308
      %v1347 = vadd.f32 %v1192, %v1311
      %v1348 = vadd.f32 %v1193, %v1313
      %v1349 = vadd.f32 %v1194, %v1316
      %v1350 = vadd.f32 %v1195, %v1318
      %v1351 = vadd.f32 %v1196, %v1321
      %v1352 = vadd.f32 %v1197, %v1323
      %v1353 = vadd.f32 %v1198, %v1326
      %v1354 = vadd.f32 %v1199, %v1328
      %v1355 = vadd.f32 %v1200, %v1331
      %v1356 = vadd.f32 %v1201, %v1333
      %v1357 = vadd.f32 %v1202, %v1336
      %v1358 = vadd.f32 %v1203, %v1338
      %v1359 = vadd.f32 %v1204, %v1341
      %v1360 = vadd.f32 %v1205, %v1343
      %s1361 = scalar_lea.vmem %s1, 512
      %v1362 = vld [vmem:[%s1361] sm:$0xf]
      %v1363 = vld [vmem:[%s1361 + $0x4] sm:$0xf]
      %v1364 = vld [vmem:[%s1361 + $0x8] sm:$0xf]
      %v1365 = vld [vmem:[%s1361 + $0xc] sm:$0xf]
      %v1366 = vld [vmem:[%s1361 + $0x10] sm:$0xf]
      %v1367 = vld [vmem:[%s1361 + $0x14] sm:$0xf]
      %v1368 = vld [vmem:[%s1361 + $0x18] sm:$0xf]
      %v1369 = vld [vmem:[%s1361 + $0x1c] sm:$0xf]
      %v1370 = vld [vmem:[%s1361 + $0x20] sm:$0xf]
      %v1371 = vld [vmem:[%s1361 + $0x24] sm:$0xf]
      %v1372 = vld [vmem:[%s1361 + $0x28] sm:$0xf]
      %v1373 = vld [vmem:[%s1361 + $0x2c] sm:$0xf]
      %v1374 = vld [vmem:[%s1361 + $0x30] sm:$0xf]
      %v1375 = vld [vmem:[%s1361 + $0x34] sm:$0xf]
      %v1376 = vld [vmem:[%s1361 + $0x38] sm:$0xf]
      %v1377 = vld [vmem:[%s1361 + $0x3c] sm:$0xf]
      %v1394 = vunpack.c.l.b16 %v1362
      %v1395 = vunpack.c.l.b16 %v1363
      %v1396 = vunpack.c.l.b16 %v1364
      %v1397 = vunpack.c.l.b16 %v1365
      %v1398 = vunpack.c.l.b16 %v1366
      %v1399 = vunpack.c.l.b16 %v1367
      %v1400 = vunpack.c.l.b16 %v1368
      %v1401 = vunpack.c.l.b16 %v1369
      %v1402 = vunpack.c.l.b16 %v1370
      %v1403 = vunpack.c.l.b16 %v1371
      %v1404 = vunpack.c.l.b16 %v1372
      %v1405 = vunpack.c.l.b16 %v1373
      %v1406 = vunpack.c.l.b16 %v1374
      %v1407 = vunpack.c.l.b16 %v1375
      %v1408 = vunpack.c.l.b16 %v1376
      %v1409 = vunpack.c.l.b16 %v1377
      %v1410 = vpack.c.b16 %v1395, %v1394
      %v1411 = vpack.c.b16 %v1397, %v1396
      %v1412 = vpack.c.b16 %v1399, %v1398
      %v1413 = vpack.c.b16 %v1401, %v1400
      %v1414 = vpack.c.b16 %v1403, %v1402
      %v1415 = vpack.c.b16 %v1405, %v1404
      %v1416 = vpack.c.b16 %v1407, %v1406
      %v1417 = vpack.c.b16 %v1409, %v1408
      %1418 = vrot.lane.b32.xlu0 %v951, 121
      %v1419 = vpop.permute.xlu0 %1418
      %1420 = vrot.lane.b32.xlu0 %v952, 121
      %v1421 = vpop.permute.xlu0 %1420
      %vm1422 = vcmask 990208
      %v1423 = vsel %vm1422, %v1419, %v1421
      %v1425 = vsel %vm230, %v1410, 0
      %v1428 = vsel %vm230, %v1411, 0
      %v1431 = vsel %vm230, %v1412, 0
      %v1434 = vsel %vm230, %v1413, 0
      %v1437 = vsel %vm230, %v1414, 0
      %v1440 = vsel %vm230, %v1415, 0
      %v1443 = vsel %vm230, %v1416, 0
      %v1446 = vsel %vm230, %v1417, 0
      %v1449 = vsel %vm255, %v1423, 0
      %1451 = vmatpush.bf16.msra.mxu0 0
      %1452 = vmatpush.bf16.msra.mxu0 0
      %1453 = vmatpush.bf16.msra.mxu0 0
      %1454 = vmatpush.bf16.msra.mxu0 0
      %1455 = vmatpush.bf16.msra.mxu0 0
      %1456 = vmatpush.bf16.msra.mxu0 0
      %1457 = vmatpush.bf16.msra.mxu0 0
      %1458 = vmatpush.bf16.msra.mxu0 %v1449
      %1459 = vmatmul.bf16.gmra.mxu0 %v1425
      %v1460 = vpop.f32.mrf.mxu0
      %v1461 = vadd.f32 0.0, %v1460
      %v1462 = vpop.f32.mrf.mxu0
      %v1463 = vadd.f32 0.0, %v1462
      %1464 = vmatmul.bf16.gmra.mxu0 %v1428
      %v1465 = vpop.f32.mrf.mxu0
      %v1466 = vadd.f32 0.0, %v1465
      %v1467 = vpop.f32.mrf.mxu0
      %v1468 = vadd.f32 0.0, %v1467
      %1469 = vmatmul.bf16.gmra.mxu0 %v1431
      %v1470 = vpop.f32.mrf.mxu0
      %v1471 = vadd.f32 0.0, %v1470
      %v1472 = vpop.f32.mrf.mxu0
      %v1473 = vadd.f32 0.0, %v1472
      %1474 = vmatmul.bf16.gmra.mxu0 %v1434
      %v1475 = vpop.f32.mrf.mxu0
      %v1476 = vadd.f32 0.0, %v1475
      %v1477 = vpop.f32.mrf.mxu0
      %v1478 = vadd.f32 0.0, %v1477
      %1479 = vmatmul.bf16.gmra.mxu0 %v1437
      %v1480 = vpop.f32.mrf.mxu0
      %v1481 = vadd.f32 0.0, %v1480
      %v1482 = vpop.f32.mrf.mxu0
      %v1483 = vadd.f32 0.0, %v1482
      %1484 = vmatmul.bf16.gmra.mxu0 %v1440
      %v1485 = vpop.f32.mrf.mxu0
      %v1486 = vadd.f32 0.0, %v1485
      %v1487 = vpop.f32.mrf.mxu0
      %v1488 = vadd.f32 0.0, %v1487
      %1489 = vmatmul.bf16.gmra.mxu0 %v1443
      %v1490 = vpop.f32.mrf.mxu0
      %v1491 = vadd.f32 0.0, %v1490
      %v1492 = vpop.f32.mrf.mxu0
      %v1493 = vadd.f32 0.0, %v1492
      %1494 = vmatmul.bf16.gmra.mxu0 %v1446
      %v1495 = vpop.f32.mrf.mxu0
      %v1496 = vadd.f32 0.0, %v1495
      %v1497 = vpop.f32.mrf.mxu0
      %v1498 = vadd.f32 0.0, %v1497
      %1499 = vdwg.mxu0
      %v1500 = vadd.f32 %v1345, %v1461
      %v1501 = vadd.f32 %v1346, %v1463
      %v1502 = vadd.f32 %v1347, %v1466
      %v1503 = vadd.f32 %v1348, %v1468
      %v1504 = vadd.f32 %v1349, %v1471
      %v1505 = vadd.f32 %v1350, %v1473
      %v1506 = vadd.f32 %v1351, %v1476
      %v1507 = vadd.f32 %v1352, %v1478
      %v1508 = vadd.f32 %v1353, %v1481
      %v1509 = vadd.f32 %v1354, %v1483
      %v1510 = vadd.f32 %v1355, %v1486
      %v1511 = vadd.f32 %v1356, %v1488
      %v1512 = vadd.f32 %v1357, %v1491
      %v1513 = vadd.f32 %v1358, %v1493
      %v1514 = vadd.f32 %v1359, %v1496
      %v1515 = vadd.f32 %v1360, %v1498
      %v1516 = vpack.c.bf16 %v1500, %v1500
      %v1517 = vpack.c.bf16 %v1501, %v1501
      %v1518 = vpack.c.bf16 %v1502, %v1502
      %v1519 = vpack.c.bf16 %v1503, %v1503
      %v1520 = vpack.c.bf16 %v1504, %v1504
      %v1521 = vpack.c.bf16 %v1505, %v1505
      %v1522 = vpack.c.bf16 %v1506, %v1506
      %v1523 = vpack.c.bf16 %v1507, %v1507
      %v1524 = vpack.c.bf16 %v1508, %v1508
      %v1525 = vpack.c.bf16 %v1509, %v1509
      %v1526 = vpack.c.bf16 %v1510, %v1510
      %v1527 = vpack.c.bf16 %v1511, %v1511
      %v1528 = vpack.c.bf16 %v1512, %v1512
      %v1529 = vpack.c.bf16 %v1513, %v1513
      %v1530 = vpack.c.bf16 %v1514, %v1514
      %v1531 = vpack.c.bf16 %v1515, %v1515
      %1532 = vst [vmem:[%s143] sm:$0xf] %v1516
      %1533 = vst [vmem:[%s143 + $0x4] sm:$0xf] %v1517
      %1534 = vst [vmem:[%s143 + $0x8] sm:$0xf] %v1518
      %1535 = vst [vmem:[%s143 + $0xc] sm:$0xf] %v1519
      %1536 = vst [vmem:[%s143 + $0x10] sm:$0xf] %v1520
      %1537 = vst [vmem:[%s143 + $0x14] sm:$0xf] %v1521
      %1538 = vst [vmem:[%s143 + $0x18] sm:$0xf] %v1522
      %1539 = vst [vmem:[%s143 + $0x1c] sm:$0xf] %v1523
      %1540 = vst [vmem:[%s143 + $0x20] sm:$0xf] %v1524
      %1541 = vst [vmem:[%s143 + $0x24] sm:$0xf] %v1525
      %1542 = vst [vmem:[%s143 + $0x28] sm:$0xf] %v1526
      %1543 = vst [vmem:[%s143 + $0x2c] sm:$0xf] %v1527
      %1544 = vst [vmem:[%s143 + $0x30] sm:$0xf] %v1528
      %1545 = vst [vmem:[%s143 + $0x34] sm:$0xf] %v1529
      %1546 = vst [vmem:[%s143 + $0x38] sm:$0xf] %v1530
      %1547 = vst [vmem:[%s143 + $0x3c] sm:$0xf] %v1531
      %p1548 = scmp.lt.s32.totalorder %s13, 1
      %s1549 = scalar_select %p1548, %s13, 1
      %s1550 = smul.addr %s1549, 16
      %s1551 = smul.addr %s1550, 4
      %s1552 = scalar_lea.vmem %s2, %s1551
      // Predicated region
      $region29: #{refine_block3_1.8} parent=27 // pred_check
        %p1553 = pneg %p78
      $region30: #{refine_block3_1.8} parent=27 // pred_check_branch
        %1555 = sbr.rel (%p1553) target = $region32
      $region31: #{refine_block3_1.8} parent=27 // pred_region
        _
      $region32: #{refine_block3_1.8} parent=27 // pred_fallthru
        _
    $region28: #{refine_block3_1.8} parent=5 // pred_fallthru
      _
    %p1556 = scmp.le.s32.totalorder 2, %s8
    // Predicated region
    $region33: #{refine_block3_1.8} parent=5 // pred_check
      %p1557 = pneg %p1556
    $region34: #{refine_block3_1.8} parent=5 // pred_check_branch
      %1559 = sbr.rel (%p1557) target = $region36
    $region35: #{refine_block3_1.8} parent=5 // pred_region
      %s1560 = ssub.s32 %s8, 2
      // Predicated region
      $region37: #{refine_block3_1.8} parent=35 // pred_check
        %p1561 = pneg %p84
      $region38: #{refine_block3_1.8} parent=35 // pred_check_branch
        %1563 = sbr.rel (%p1561) target = $region40
      $region39: #{refine_block3_1.8} parent=35 // pred_region
        %p1564 = scmp.lt.s32.totalorder %s14, 1
        %s1565 = scalar_select %p1564, %s14, 1
        %s1566 = smul.addr %s1565, 16
        %s1567 = smul.addr %s1566, 4
        %s1568 = scalar_lea.vmem %s2, %s1567
      $region40: #{refine_block3_1.8} parent=35 // pred_fallthru
        _
    $region36: #{refine_block3_1.8} parent=5 // pred_fallthru
      _
  $region6: #{refine_block3_1.8} parent=0 // loop_footer
    %s12 = sadd.s32 1, %s8
  $region7: #{refine_block3_1.8} parent=0 // loop_footer_branch
    %7 = sbr.rel target = $region3
  $region8: #{refine_block3_1.8} parent=0 // loop_exit
    _

// kernel: refine_block3_1.7
$region0: #{refine_block3_1.7}
  #allocation0 [shape = 'u32[]', space=smem, size = 0x4, offset = 0x4, fixed_abs, tag = 'smem constant byte address 0x4 - core index']
  #allocation1 [shape = 'u32[72,128]{1,0:T(1,128)}', space=vmem, size = 0x9000, scoped, tag = 'internal scratch']
  %s0 = inlined_call_operand.vmem [shape: bf16[2,8,384], index: 0, kind: input, shape index: {}]
  %s1 = inlined_call_operand.vmem [shape: bf16[9,32,8], index: 1, kind: input, shape index: {}]
  %s2 = inlined_call_operand.vmem [shape: bf16[2,32,128], index: 2, kind: output, shape index: {}]
  %s3 = sld [smem:[#allocation0]]
  $region41: #{refine_block3_1.7} parent=0
    _
  %s5 = ssub.s32 1, %s3
  %s6 = scalar_select 0, %s5, %s3
  loop: start=0, step=1, limit=4
  $region2: #{refine_block3_1.7} parent=0 // loop_pre_header
    _
  $region3: #{refine_block3_1.7} parent=0 // loop_header
    %s8 = sphi 0, %s12
    %p9 = scmp.ge.s32.totalorder %s8, 4
    %s18 = sphi 0, %s20
    %s21 = sphi 0, %s18
    %s22 = sphi 0, %s21
    %s38 = sphi 0, %s22
    %s42 = sphi 0, %s42
    %s44 = sphi 0, %s42
    %s45 = sphi 0, %s44
    %s59 = sphi 0, %s45
    %s65 = sphi 0, %s67
    %s68 = sphi 0, %s65
    %s69 = sphi 0, %s68
    %s85 = sphi 0, %s69
  $region4: #{refine_block3_1.7} parent=0 // loop_header_branch
    %11 = sbr.rel (%p9) target = $region8
  $region5: #{refine_block3_1.7} parent=0 // loop_body
    %s13 = ssub.s32 %s8, 1
    %s14 = ssub.s32 %s8, 2
    %s15 = sadd.s32 %s8, 1
    %s16 = ssub.s32 %s8, %s15
    %p17 = scmp.eq.s32.totalorder %s16, 0
    %s19 = sadd.s32 %s18, 1
    %s20 = scalar_select %p17, %s18, %s19
    %p23 = pneg %p17
    %p24 = scmp.eq.s32.totalorder %s8, 1
    %p25 = por %p23, %p24
    %p26 = scmp.ne.s32.totalorder %s18, %s21
    %p27 = scmp.eq.s32.totalorder %s8, 0
    %p28 = por %p26, %p27
    %p29 = scmp.ne.s32.totalorder %s18, %s21
    %p30 = scmp.eq.s32.totalorder %s13, 1
    %p31 = por %p29, %p30
    %p32 = scmp.ne.s32.totalorder %s21, %s22
    %p33 = scmp.eq.s32.totalorder %s13, 0
    %p34 = por %p32, %p33
    %p35 = scmp.ne.s32.totalorder %s21, %s22
    %p36 = scmp.eq.s32.totalorder %s14, 1
    %p37 = por %p35, %p36
    %p39 = scmp.ne.s32.totalorder %s22, %s38
    %p40 = scmp.eq.s32.totalorder %s14, 0
    %p41 = por %p39, %p40
    %s43 = sadd.s32 %s42, 1
    %p46 = scmp.eq.s32.totalorder %s8, 1
    %p47 = scmp.ne.s32.totalorder %s42, %s44
    %p48 = scmp.eq.s32.totalorder %s8, 0
    %p49 = por %p47, %p48
    %p50 = scmp.ne.s32.totalorder %s42, %s44
    %p51 = scmp.eq.s32.totalorder %s13, 1
    %p52 = por %p50, %p51
    %p53 = scmp.ne.s32.totalorder %s44, %s45
    %p54 = scmp.eq.s32.totalorder %s13, 0
    %p55 = por %p53, %p54
    %p56 = scmp.ne.s32.totalorder %s44, %s45
    %p57 = scmp.eq.s32.totalorder %s14, 1
    %p58 = por %p56, %p57
    %p60 = scmp.ne.s32.totalorder %s45, %s59
    %p61 = scmp.eq.s32.totalorder %s14, 0
    %p62 = por %p60, %p61
    %s63 = ssub.s32 %s8, %s15
    %p64 = scmp.eq.s32.totalorder %s63, 0
    %s66 = sadd.s32 %s65, 1
    %s67 = scalar_select %p64, %s65, %s66
    %p70 = pneg %p64
    %p71 = scmp.eq.s32.totalorder %s8, 1
    %p72 = por %p70, %p71
    %p73 = scmp.ne.s32.totalorder %s65, %s68
    %p74 = scmp.eq.s32.totalorder %s8, 0
    %p75 = por %p73, %p74
    %p76 = scmp.ne.s32.totalorder %s65, %s68
    %p77 = scmp.eq.s32.totalorder %s13, 1
    %p78 = por %p76, %p77
    %p79 = scmp.ne.s32.totalorder %s68, %s69
    %p80 = scmp.eq.s32.totalorder %s13, 0
    %p81 = por %p79, %p80
    %p82 = scmp.ne.s32.totalorder %s68, %s69
    %p83 = scmp.eq.s32.totalorder %s14, 1
    %p84 = por %p82, %p83
    %p86 = scmp.ne.s32.totalorder %s69, %s85
    %p87 = scmp.eq.s32.totalorder %s14, 0
    %p88 = por %p86, %p87
    %p89 = scmp.le.s32.totalorder 1, %s8
    %p90 = scmp.lt.s32.totalorder %s8, 3
    %p91 = pnand %p89, %p90
    %p92 = pneg %p91
    // Predicated region
    $region9: #{refine_block3_1.7} parent=5 // pred_check
      _
    $region10: #{refine_block3_1.7} parent=5 // pred_check_branch
      %94 = sbr.rel (%p91) target = $region12
    $region11: #{refine_block3_1.7} parent=5 // pred_region
      %s95 = ssub.s32 %s8, 1
      // Predicated region
      $region13: #{refine_block3_1.7} parent=11 // pred_check
        %p96 = pneg %p55
      $region14: #{refine_block3_1.7} parent=11 // pred_check_branch
        %98 = sbr.rel (%p96) target = $region16
      $region15: #{refine_block3_1.7} parent=11 // pred_region
        _
      $region16: #{refine_block3_1.7} parent=11 // pred_fallthru
        _
    $region12: #{refine_block3_1.7} parent=5 // pred_fallthru
      _
    %p99 = scmp.lt.s32.totalorder %s8, 2
    // Predicated region
    $region17: #{refine_block3_1.7} parent=5 // pred_check
      %p100 = pneg %p99
    $region18: #{refine_block3_1.7} parent=5 // pred_check_branch
      %102 = sbr.rel (%p100) target = $region20
    $region19: #{refine_block3_1.7} parent=5 // pred_region
      // Predicated region
      $region21: #{refine_block3_1.7} parent=19 // pred_check
        %p103 = pneg %p28
      $region22: #{refine_block3_1.7} parent=19 // pred_check_branch
        %105 = sbr.rel (%p103) target = $region24
      $region23: #{refine_block3_1.7} parent=19 // pred_region
        %p106 = scmp.lt.s32.totalorder %s8, 1
        %s107 = scalar_select %p106, %s8, 1
        %s108 = smul.addr %s107, 3
        %s109 = smul.addr %s108, 4
        %s110 = scalar_lea.vmem %s0, %s109
      $region24: #{refine_block3_1.7} parent=19 // pred_fallthru
        _
    $region20: #{refine_block3_1.7} parent=5 // pred_fallthru
      _
    %p111 = scmp.le.s32.totalorder 1, %s8
    %p112 = scmp.lt.s32.totalorder %s8, 3
    %p113 = pnand %p111, %p112
    %p114 = pneg %p113
    // Predicated region
    $region25: #{refine_block3_1.7} parent=5 // pred_check
      _
    $region26: #{refine_block3_1.7} parent=5 // pred_check_branch
      %116 = sbr.rel (%p113) target = $region28
    $region27: #{refine_block3_1.7} parent=5 // pred_region
      %s117 = ssub.s32 %s8, 1
      %p118 = scmp.lt.s32.totalorder %s13, 1
      %s119 = scalar_select %p118, %s13, 1
      %s120 = smul.addr %s119, 3
      %s121 = smul.addr %s120, 4
      %s122 = scalar_lea.vmem %s0, %s121
      %p123 = pneg %p34
      %p124 = pneg %p31
      %p125 = pneg %p55
      %p126 = pneg %p52
      %p127 = pneg %p81
      %p128 = pneg %p78
      %p129 = scmp.lt.s32.totalorder %s13, 1
      %s130 = scalar_select %p129, %s13, 1
      %s131 = smul.addr %s130, 4
      %s132 = smul.addr %s131, 4
      %s133 = scalar_lea.vmem %s2, %s132
      %p134 = scmp.lt.s32.totalorder %s13, 1
      %s135 = scalar_select %p134, %s13, 1
      %s136 = smul.addr %s135, 3
      %s137 = smul.addr %s136, 4
      %s138 = scalar_lea.vmem %s0, %s137
      %p139 = scmp.lt.s32.totalorder %s13, 1
      %s140 = scalar_select %p139, %s13, 1
      %s141 = smul.addr %s140, 4
      %s142 = smul.addr %s141, 4
      %s143 = scalar_lea.vmem %s2, %s142
      %v145 = vld [vmem:[%s138] sm:$0xff]
      %v146 = vld [vmem:[%s1] sm:$0xf]
      %v147 = vld [vmem:[%s1 + $0x4] sm:$0xf]
      %v148 = vld [vmem:[%s1 + $0x8] sm:$0xf]
      %v149 = vld [vmem:[%s1 + $0xc] sm:$0xf]
      %s150 = scalar_lea.vmem %s1, 16
      %v151 = vld [vmem:[%s150] sm:$0xf]
      %v152 = vld [vmem:[%s150 + $0x4] sm:$0xf]
      %v153 = vld [vmem:[%s150 + $0x8] sm:$0xf]
      %v154 = vld [vmem:[%s150 + $0xc] sm:$0xf]
      %v159 = vunpack.c.l.b16 %v151
      %v160 = vunpack.c.l.b16 %v152
      %v161 = vunpack.c.l.b16 %v153
      %v162 = vunpack.c.l.b16 %v154
      %v163 = vpack.c.b16 %v160, %v159
      %v164 = vpack.c.b16 %v162, %v161
      %v166 = vunpack.c.l.b16 %v145
      %v167 = vunpack.c.h.b16 %v145
      %v168 = vpack.c.b16 %v166, %v166
      %v169 = vpack.c.b16 %v167, %v167
      %170 = vrot.lane.b32.xlu0 %v168, 10
      %v171 = vpop.permute.xlu0 %170
      %172 = vrot.lane.b32.xlu0 %v169, 10
      %v173 = vpop.permute.xlu0 %172
      %vm174 = vcmask 80896
      %v175 = vsel %vm174, %v171, %v173
      %vm176 = vcmask 64512
      %v178 = vsel %vm176, %v163, 0
      %v181 = vsel %vm176, %v164, 0
      %vm183 = vcmask 1043456
      %v185 = vsel %vm183, %v175, 0
      %187 = vmatpush.bf16.msra.mxu0 0
      %188 = vmatpush.bf16.msra.mxu0 0
      %189 = vmatpush.bf16.msra.mxu0 0
      %190 = vmatpush.bf16.msra.mxu0 0
      %191 = vmatpush.bf16.msra.mxu0 0
      %192 = vmatpush.bf16.msra.mxu0 0
      %193 = vmatpush.bf16.msra.mxu0 0
      %194 = vmatpush.bf16.msra.mxu0 %v185
      %195 = vmatmul.bf16.gmra.mxu0 %v178
      %v196 = vpop.f32.mrf.mxu0
      %v197 = vadd.f32 0.0, %v196
      %v198 = vpop.f32.mrf.mxu0
      %v199 = vadd.f32 0.0, %v198
      %200 = vmatmul.bf16.gmra.mxu0 %v181
      %v201 = vpop.f32.mrf.mxu0
      %v202 = vadd.f32 0.0, %v201
      %v203 = vpop.f32.mrf.mxu0
      %v204 = vadd.f32 0.0, %v203
      %205 = vdwg.mxu0
      %v210 = vunpack.c.l.b16 %v146
      %v211 = vunpack.c.l.b16 %v147
      %v212 = vunpack.c.l.b16 %v148
      %v213 = vunpack.c.l.b16 %v149
      %v214 = vpack.c.b16 %v211, %v210
      %v215 = vpack.c.b16 %v213, %v212
      %216 = vrot.lane.b32.xlu0 %v168, 11
      %v217 = vpop.permute.xlu0 %216
      %218 = vrot.lane.b32.xlu0 %v169, 11
      %v219 = vpop.permute.xlu0 %218
      %vm220 = vcmask 89088
      %v221 = vsel %vm220, %v217, %v219
      %v223 = vsel %vm176, %v214, 0
      %v226 = vsel %vm176, %v215, 0
      %v229 = vsel %vm183, %v221, 0
      %231 = vmatpush.bf16.msra.mxu0 0
      %232 = vmatpush.bf16.msra.mxu0 0
      %233 = vmatpush.bf16.msra.mxu0 0
      %234 = vmatpush.bf16.msra.mxu0 0
      %235 = vmatpush.bf16.msra.mxu0 0
      %236 = vmatpush.bf16.msra.mxu0 0
      %237 = vmatpush.bf16.msra.mxu0 0
      %238 = vmatpush.bf16.msra.mxu0 %v229
      %239 = vmatmul.bf16.gmra.mxu0 %v223
      %v240 = vpop.f32.mrf.mxu0
      %v241 = vadd.f32 %v197, %v240
      %v242 = vpop.f32.mrf.mxu0
      %v243 = vadd.f32 %v199, %v242
      %244 = vmatmul.bf16.gmra.mxu0 %v226
      %v245 = vpop.f32.mrf.mxu0
      %v246 = vadd.f32 %v202, %v245
      %v247 = vpop.f32.mrf.mxu0
      %v248 = vadd.f32 %v204, %v247
      %249 = vdwg.mxu0
      %s250 = scalar_lea.vmem %s1, 32
      %v251 = vld [vmem:[%s250] sm:$0xf]
      %v252 = vld [vmem:[%s250 + $0x4] sm:$0xf]
      %v253 = vld [vmem:[%s250 + $0x8] sm:$0xf]
      %v254 = vld [vmem:[%s250 + $0xc] sm:$0xf]
      %v259 = vunpack.c.l.b16 %v251
      %v260 = vunpack.c.l.b16 %v252
      %v261 = vunpack.c.l.b16 %v253
      %v262 = vunpack.c.l.b16 %v254
      %v263 = vpack.c.b16 %v260, %v259
      %v264 = vpack.c.b16 %v262, %v261
      %265 = vrot.lane.b32.xlu0 %v168, 9
      %v266 = vpop.permute.xlu0 %265
      %267 = vrot.lane.b32.xlu0 %v169, 9
      %v268 = vpop.permute.xlu0 %267
      %vm269 = vcmask 72704
      %v270 = vsel %vm269, %v266, %v268
      %v272 = vsel %vm176, %v263, 0
      %v275 = vsel %vm176, %v264, 0
      %v278 = vsel %vm183, %v270, 0
      %280 = vmatpush.bf16.msra.mxu0 0
      %281 = vmatpush.bf16.msra.mxu0 0
      %282 = vmatpush.bf16.msra.mxu0 0
      %283 = vmatpush.bf16.msra.mxu0 0
      %284 = vmatpush.bf16.msra.mxu0 0
      %285 = vmatpush.bf16.msra.mxu0 0
      %286 = vmatpush.bf16.msra.mxu0 0
      %287 = vmatpush.bf16.msra.mxu0 %v278
      %288 = vmatmul.bf16.gmra.mxu0 %v272
      %v289 = vpop.f32.mrf.mxu0
      %v290 = vadd.f32 0.0, %v289
      %v291 = vpop.f32.mrf.mxu0
      %v292 = vadd.f32 0.0, %v291
      %293 = vmatmul.bf16.gmra.mxu0 %v275
      %v294 = vpop.f32.mrf.mxu0
      %v295 = vadd.f32 0.0, %v294
      %v296 = vpop.f32.mrf.mxu0
      %v297 = vadd.f32 0.0, %v296
      %298 = vdwg.mxu0
      %v299 = vadd.f32 %v241, %v290
      %v300 = vadd.f32 %v243, %v292
      %v301 = vadd.f32 %v246, %v295
      %v302 = vadd.f32 %v248, %v297
      %s303 = scalar_lea.vmem %s1, 48
      %v304 = vld [vmem:[%s303] sm:$0xf]
      %v305 = vld [vmem:[%s303 + $0x4] sm:$0xf]
      %v306 = vld [vmem:[%s303 + $0x8] sm:$0xf]
      %v307 = vld [vmem:[%s303 + $0xc] sm:$0xf]
      %v312 = vunpack.c.l.b16 %v304
      %v313 = vunpack.c.l.b16 %v305
      %v314 = vunpack.c.l.b16 %v306
      %v315 = vunpack.c.l.b16 %v307
      %v316 = vpack.c.b16 %v313, %v312
      %v317 = vpack.c.b16 %v315, %v314
      %318 = vrot.lane.b32.xlu0 %v168, 1
      %v319 = vpop.permute.xlu0 %318
      %320 = vrot.lane.b32.xlu0 %v169, 1
      %v321 = vpop.permute.xlu0 %320
      %vm322 = vcmask 7168
      %v323 = vsel %vm322, %v319, %v321
      %v325 = vsel %vm176, %v316, 0
      %v328 = vsel %vm176, %v317, 0
      %v331 = vsel %vm183, %v323, 0
      %333 = vmatpush.bf16.msra.mxu0 0
      %334 = vmatpush.bf16.msra.mxu0 0
      %335 = vmatpush.bf16.msra.mxu0 0
      %336 = vmatpush.bf16.msra.mxu0 0
      %337 = vmatpush.bf16.msra.mxu0 0
      %338 = vmatpush.bf16.msra.mxu0 0
      %339 = vmatpush.bf16.msra.mxu0 0
      %340 = vmatpush.bf16.msra.mxu0 %v331
      %341 = vmatmul.bf16.gmra.mxu0 %v325
      %v342 = vpop.f32.mrf.mxu0
      %v343 = vadd.f32 0.0, %v342
      %v344 = vpop.f32.mrf.mxu0
      %v345 = vadd.f32 0.0, %v344
      %346 = vmatmul.bf16.gmra.mxu0 %v328
      %v347 = vpop.f32.mrf.mxu0
      %v348 = vadd.f32 0.0, %v347
      %v349 = vpop.f32.mrf.mxu0
      %v350 = vadd.f32 0.0, %v349
      %351 = vdwg.mxu0
      %v352 = vadd.f32 %v299, %v343
      %v353 = vadd.f32 %v300, %v345
      %v354 = vadd.f32 %v301, %v348
      %v355 = vadd.f32 %v302, %v350
      %v356 = vld [vmem:[%s138 + $0x4] sm:$0xf]
      %s357 = scalar_lea.vmem %s1, 64
      %v358 = vld [vmem:[%s357] sm:$0xf]
      %v359 = vld [vmem:[%s357 + $0x4] sm:$0xf]
      %v360 = vld [vmem:[%s357 + $0x8] sm:$0xf]
      %v361 = vld [vmem:[%s357 + $0xc] sm:$0xf]
      %v366 = vunpack.c.l.b16 %v358
      %v367 = vunpack.c.l.b16 %v359
      %v368 = vunpack.c.l.b16 %v360
      %v369 = vunpack.c.l.b16 %v361
      %v370 = vpack.c.b16 %v367, %v366
      %v371 = vpack.c.b16 %v369, %v368
      %v373 = vsel %vm176, %v370, 0
      %v376 = vsel %vm176, %v371, 0
      %v379 = vsel %vm183, %v356, 0
      %381 = vmatpush.bf16.msra.mxu0 0
      %382 = vmatpush.bf16.msra.mxu0 0
      %383 = vmatpush.bf16.msra.mxu0 0
      %384 = vmatpush.bf16.msra.mxu0 0
      %385 = vmatpush.bf16.msra.mxu0 0
      %386 = vmatpush.bf16.msra.mxu0 0
      %387 = vmatpush.bf16.msra.mxu0 0
      %388 = vmatpush.bf16.msra.mxu0 %v379
      %389 = vmatmul.bf16.gmra.mxu0 %v373
      %v390 = vpop.f32.mrf.mxu0
      %v391 = vadd.f32 0.0, %v390
      %v392 = vpop.f32.mrf.mxu0
      %v393 = vadd.f32 0.0, %v392
      %394 = vmatmul.bf16.gmra.mxu0 %v376
      %v395 = vpop.f32.mrf.mxu0
      %v396 = vadd.f32 0.0, %v395
      %v397 = vpop.f32.mrf.mxu0
      %v398 = vadd.f32 0.0, %v397
      %399 = vdwg.mxu0
      %v400 = vadd.f32 %v352, %v391
      %v401 = vadd.f32 %v353, %v393
      %v402 = vadd.f32 %v354, %v396
      %v403 = vadd.f32 %v355, %v398
      %v404 = vld [vmem:[%s138 + $0x4] sm:$0xff]
      %s405 = scalar_lea.vmem %s1, 80
      %v406 = vld [vmem:[%s405] sm:$0xf]
      %v407 = vld [vmem:[%s405 + $0x4] sm:$0xf]
      %v408 = vld [vmem:[%s405 + $0x8] sm:$0xf]
      %v409 = vld [vmem:[%s405 + $0xc] sm:$0xf]
      %v414 = vunpack.c.l.b16 %v406
      %v415 = vunpack.c.l.b16 %v407
      %v416 = vunpack.c.l.b16 %v408
      %v417 = vunpack.c.l.b16 %v409
      %v418 = vpack.c.b16 %v415, %v414
      %v419 = vpack.c.b16 %v417, %v416
      %v421 = vunpack.c.l.b16 %v404
      %v422 = vunpack.c.h.b16 %v404
      %v423 = vpack.c.b16 %v421, %v421
      %v424 = vpack.c.b16 %v422, %v422
      %425 = vrot.lane.b32.xlu0 %v423, 127
      %v426 = vpop.permute.xlu0 %425
      %427 = vrot.lane.b32.xlu0 %v424, 127
      %v428 = vpop.permute.xlu0 %427
      %vm429 = vcmask 1039360
      %v430 = vsel %vm429, %v426, %v428
      %v432 = vsel %vm176, %v418, 0
      %v435 = vsel %vm176, %v419, 0
      %v438 = vsel %vm183, %v430, 0
      %440 = vmatpush.bf16.msra.mxu0 0
      %441 = vmatpush.bf16.msra.mxu0 0
      %442 = vmatpush.bf16.msra.mxu0 0
      %443 = vmatpush.bf16.msra.mxu0 0
      %444 = vmatpush.bf16.msra.mxu0 0
      %445 = vmatpush.bf16.msra.mxu0 0
      %446 = vmatpush.bf16.msra.mxu0 0
      %447 = vmatpush.bf16.msra.mxu0 %v438
      %448 = vmatmul.bf16.gmra.mxu0 %v432
      %v449 = vpop.f32.mrf.mxu0
      %v450 = vadd.f32 0.0, %v449
      %v451 = vpop.f32.mrf.mxu0
      %v452 = vadd.f32 0.0, %v451
      %453 = vmatmul.bf16.gmra.mxu0 %v435
      %v454 = vpop.f32.mrf.mxu0
      %v455 = vadd.f32 0.0, %v454
      %v456 = vpop.f32.mrf.mxu0
      %v457 = vadd.f32 0.0, %v456
      %458 = vdwg.mxu0
      %v459 = vadd.f32 %v400, %v450
      %v460 = vadd.f32 %v401, %v452
      %v461 = vadd.f32 %v402, %v455
      %v462 = vadd.f32 %v403, %v457
      %s463 = scalar_lea.vmem %s1, 96
      %v464 = vld [vmem:[%s463] sm:$0xf]
      %v465 = vld [vmem:[%s463 + $0x4] sm:$0xf]
      %v466 = vld [vmem:[%s463 + $0x8] sm:$0xf]
      %v467 = vld [vmem:[%s463 + $0xc] sm:$0xf]
      %v472 = vunpack.c.l.b16 %v464
      %v473 = vunpack.c.l.b16 %v465
      %v474 = vunpack.c.l.b16 %v466
      %v475 = vunpack.c.l.b16 %v467
      %v476 = vpack.c.b16 %v473, %v472
      %v477 = vpack.c.b16 %v475, %v474
      %478 = vrot.lane.b32.xlu0 %v423, 119
      %v479 = vpop.permute.xlu0 %478
      %480 = vrot.lane.b32.xlu0 %v424, 119
      %v481 = vpop.permute.xlu0 %480
      %vm482 = vcmask 973824
      %v483 = vsel %vm482, %v479, %v481
      %v485 = vsel %vm176, %v476, 0
      %v488 = vsel %vm176, %v477, 0
      %v491 = vsel %vm183, %v483, 0
      %493 = vmatpush.bf16.msra.mxu0 0
      %494 = vmatpush.bf16.msra.mxu0 0
      %495 = vmatpush.bf16.msra.mxu0 0
      %496 = vmatpush.bf16.msra.mxu0 0
      %497 = vmatpush.bf16.msra.mxu0 0
      %498 = vmatpush.bf16.msra.mxu0 0
      %499 = vmatpush.bf16.msra.mxu0 0
      %500 = vmatpush.bf16.msra.mxu0 %v491
      %501 = vmatmul.bf16.gmra.mxu0 %v485
      %v502 = vpop.f32.mrf.mxu0
      %v503 = vadd.f32 0.0, %v502
      %v504 = vpop.f32.mrf.mxu0
      %v505 = vadd.f32 0.0, %v504
      %506 = vmatmul.bf16.gmra.mxu0 %v488
      %v507 = vpop.f32.mrf.mxu0
      %v508 = vadd.f32 0.0, %v507
      %v509 = vpop.f32.mrf.mxu0
      %v510 = vadd.f32 0.0, %v509
      %511 = vdwg.mxu0
      %v512 = vadd.f32 %v459, %v503
      %v513 = vadd.f32 %v460, %v505
      %v514 = vadd.f32 %v461, %v508
      %v515 = vadd.f32 %v462, %v510
      %s516 = scalar_lea.vmem %s1, 112
      %v517 = vld [vmem:[%s516] sm:$0xf]
      %v518 = vld [vmem:[%s516 + $0x4] sm:$0xf]
      %v519 = vld [vmem:[%s516 + $0x8] sm:$0xf]
      %v520 = vld [vmem:[%s516 + $0xc] sm:$0xf]
      %v525 = vunpack.c.l.b16 %v517
      %v526 = vunpack.c.l.b16 %v518
      %v527 = vunpack.c.l.b16 %v519
      %v528 = vunpack.c.l.b16 %v520
      %v529 = vpack.c.b16 %v526, %v525
      %v530 = vpack.c.b16 %v528, %v527
      %531 = vrot.lane.b32.xlu0 %v423, 118
      %v532 = vpop.permute.xlu0 %531
      %533 = vrot.lane.b32.xlu0 %v424, 118
      %v534 = vpop.permute.xlu0 %533
      %vm535 = vcmask 965632
      %v536 = vsel %vm535, %v532, %v534
      %v538 = vsel %vm176, %v529, 0
      %v541 = vsel %vm176, %v530, 0
      %v544 = vsel %vm183, %v536, 0
      %546 = vmatpush.bf16.msra.mxu0 0
      %547 = vmatpush.bf16.msra.mxu0 0
      %548 = vmatpush.bf16.msra.mxu0 0
      %549 = vmatpush.bf16.msra.mxu0 0
      %550 = vmatpush.bf16.msra.mxu0 0
      %551 = vmatpush.bf16.msra.mxu0 0
      %552 = vmatpush.bf16.msra.mxu0 0
      %553 = vmatpush.bf16.msra.mxu0 %v544
      %554 = vmatmul.bf16.gmra.mxu0 %v538
      %v555 = vpop.f32.mrf.mxu0
      %v556 = vadd.f32 0.0, %v555
      %v557 = vpop.f32.mrf.mxu0
      %v558 = vadd.f32 0.0, %v557
      %559 = vmatmul.bf16.gmra.mxu0 %v541
      %v560 = vpop.f32.mrf.mxu0
      %v561 = vadd.f32 0.0, %v560
      %v562 = vpop.f32.mrf.mxu0
      %v563 = vadd.f32 0.0, %v562
      %564 = vdwg.mxu0
      %v565 = vadd.f32 %v512, %v556
      %v566 = vadd.f32 %v513, %v558
      %v567 = vadd.f32 %v514, %v561
      %v568 = vadd.f32 %v515, %v563
      %s569 = scalar_lea.vmem %s1, 128
      %v570 = vld [vmem:[%s569] sm:$0xf]
      %v571 = vld [vmem:[%s569 + $0x4] sm:$0xf]
      %v572 = vld [vmem:[%s569 + $0x8] sm:$0xf]
      %v573 = vld [vmem:[%s569 + $0xc] sm:$0xf]
      %v578 = vunpack.c.l.b16 %v570
      %v579 = vunpack.c.l.b16 %v571
      %v580 = vunpack.c.l.b16 %v572
      %v581 = vunpack.c.l.b16 %v573
      %v582 = vpack.c.b16 %v579, %v578
      %v583 = vpack.c.b16 %v581, %v580
      %584 = vrot.lane.b32.xlu0 %v423, 117
      %v585 = vpop.permute.xlu0 %584
      %586 = vrot.lane.b32.xlu0 %v424, 117
      %v587 = vpop.permute.xlu0 %586
      %vm588 = vcmask 957440
      %v589 = vsel %vm588, %v585, %v587
      %v591 = vsel %vm176, %v582, 0
      %v594 = vsel %vm176, %v583, 0
      %v597 = vsel %vm183, %v589, 0
      %599 = vmatpush.bf16.msra.mxu0 0
      %600 = vmatpush.bf16.msra.mxu0 0
      %601 = vmatpush.bf16.msra.mxu0 0
      %602 = vmatpush.bf16.msra.mxu0 0
      %603 = vmatpush.bf16.msra.mxu0 0
      %604 = vmatpush.bf16.msra.mxu0 0
      %605 = vmatpush.bf16.msra.mxu0 0
      %606 = vmatpush.bf16.msra.mxu0 %v597
      %607 = vmatmul.bf16.gmra.mxu0 %v591
      %v608 = vpop.f32.mrf.mxu0
      %v609 = vadd.f32 0.0, %v608
      %v610 = vpop.f32.mrf.mxu0
      %v611 = vadd.f32 0.0, %v610
      %612 = vmatmul.bf16.gmra.mxu0 %v594
      %v613 = vpop.f32.mrf.mxu0
      %v614 = vadd.f32 0.0, %v613
      %v615 = vpop.f32.mrf.mxu0
      %v616 = vadd.f32 0.0, %v615
      %617 = vdwg.mxu0
      %v618 = vadd.f32 %v565, %v609
      %v619 = vadd.f32 %v566, %v611
      %v620 = vadd.f32 %v567, %v614
      %v621 = vadd.f32 %v568, %v616
      %v622 = vpack.c.bf16 %v618, %v618
      %v623 = vpack.c.bf16 %v619, %v619
      %v624 = vpack.c.bf16 %v620, %v620
      %v625 = vpack.c.bf16 %v621, %v621
      %626 = vst [vmem:[%s143] sm:$0xf] %v622
      %627 = vst [vmem:[%s143 + $0x4] sm:$0xf] %v623
      %628 = vst [vmem:[%s143 + $0x8] sm:$0xf] %v624
      %629 = vst [vmem:[%s143 + $0xc] sm:$0xf] %v625
      %p630 = scmp.lt.s32.totalorder %s13, 1
      %s631 = scalar_select %p630, %s13, 1
      %s632 = smul.addr %s631, 4
      %s633 = smul.addr %s632, 4
      %s634 = scalar_lea.vmem %s2, %s633
      // Predicated region
      $region29: #{refine_block3_1.7} parent=27 // pred_check
        %p635 = pneg %p78
      $region30: #{refine_block3_1.7} parent=27 // pred_check_branch
        %637 = sbr.rel (%p635) target = $region32
      $region31: #{refine_block3_1.7} parent=27 // pred_region
        _
      $region32: #{refine_block3_1.7} parent=27 // pred_fallthru
        _
    $region28: #{refine_block3_1.7} parent=5 // pred_fallthru
      _
    %p638 = scmp.le.s32.totalorder 2, %s8
    // Predicated region
    $region33: #{refine_block3_1.7} parent=5 // pred_check
      %p639 = pneg %p638
    $region34: #{refine_block3_1.7} parent=5 // pred_check_branch
      %641 = sbr.rel (%p639) target = $region36
    $region35: #{refine_block3_1.7} parent=5 // pred_region
      %s642 = ssub.s32 %s8, 2
      // Predicated region
      $region37: #{refine_block3_1.7} parent=35 // pred_check
        %p643 = pneg %p84
      $region38: #{refine_block3_1.7} parent=35 // pred_check_branch
        %645 = sbr.rel (%p643) target = $region40
      $region39: #{refine_block3_1.7} parent=35 // pred_region
        %p646 = scmp.lt.s32.totalorder %s14, 1
        %s647 = scalar_select %p646, %s14, 1
        %s648 = smul.addr %s647, 4
        %s649 = smul.addr %s648, 4
        %s650 = scalar_lea.vmem %s2, %s649
      $region40: #{refine_block3_1.7} parent=35 // pred_fallthru
        _
    $region36: #{refine_block3_1.7} parent=5 // pred_fallthru
      _
  $region6: #{refine_block3_1.7} parent=0 // loop_footer
    %s12 = sadd.s32 1, %s8
  $region7: #{refine_block3_1.7} parent=0 // loop_footer_branch
    %7 = sbr.rel target = $region3
  $region8: #{refine_block3_1.7} parent=0 // loop_exit
    _

// kernel: refine_block3_1.5
$region0: #{refine_block3_1.5}
  #allocation0 [shape = 'u32[]', space=smem, size = 0x4, offset = 0x4, fixed_abs, tag = 'smem constant byte address 0x4 - core index']
  #allocation1 [shape = 'u32[72,128]{1,0:T(1,128)}', space=vmem, size = 0x9000, scoped, tag = 'internal scratch']
  %s0 = inlined_call_operand.vmem [shape: bf16[2,8,384], index: 0, kind: input, shape index: {}]
  %s1 = inlined_call_operand.vmem [shape: bf16[9,8,8], index: 1, kind: input, shape index: {}]
  %s2 = inlined_call_operand.vmem [shape: f32[8,1], index: 2, kind: input, shape index: {}]
  %s3 = inlined_call_operand.vmem [shape: f32[1,128], index: 3, kind: input, shape index: {}]
  %s4 = inlined_call_operand.vmem [shape: bf16[2,8,128], index: 4, kind: output, shape index: {}]
  %s5 = sld [smem:[#allocation0]]
  $region49: #{refine_block3_1.5} parent=0
    _
  %s7 = ssub.s32 1, %s5
  %s8 = scalar_select 0, %s7, %s5
  loop: start=0, step=1, limit=4
  $region2: #{refine_block3_1.5} parent=0 // loop_pre_header
    _
  $region3: #{refine_block3_1.5} parent=0 // loop_header
    %s10 = sphi 0, %s14
    %p11 = scmp.ge.s32.totalorder %s10, 4
    %s20 = sphi 0, %s22
    %s23 = sphi 0, %s20
    %s24 = sphi 0, %s23
    %s40 = sphi 0, %s24
    %s44 = sphi 0, %s44
    %s46 = sphi 0, %s44
    %s47 = sphi 0, %s46
    %s61 = sphi 0, %s47
    %s65 = sphi 0, %s65
    %s67 = sphi 0, %s65
    %s68 = sphi 0, %s67
    %s82 = sphi 0, %s68
    %s86 = sphi 0, %s86
    %s88 = sphi 0, %s86
    %s89 = sphi 0, %s88
    %s103 = sphi 0, %s89
    %s109 = sphi 0, %s111
    %s112 = sphi 0, %s109
    %s113 = sphi 0, %s112
    %s129 = sphi 0, %s113
  $region4: #{refine_block3_1.5} parent=0 // loop_header_branch
    %13 = sbr.rel (%p11) target = $region8
  $region5: #{refine_block3_1.5} parent=0 // loop_body
    %s15 = ssub.s32 %s10, 1
    %s16 = ssub.s32 %s10, 2
    %s17 = sadd.s32 %s10, 1
    %s18 = ssub.s32 %s10, %s17
    %p19 = scmp.eq.s32.totalorder %s18, 0
    %s21 = sadd.s32 %s20, 1
    %s22 = scalar_select %p19, %s20, %s21
    %p25 = pneg %p19
    %p26 = scmp.eq.s32.totalorder %s10, 1
    %p27 = por %p25, %p26
    %p28 = scmp.ne.s32.totalorder %s20, %s23
    %p29 = scmp.eq.s32.totalorder %s10, 0
    %p30 = por %p28, %p29
    %p31 = scmp.ne.s32.totalorder %s20, %s23
    %p32 = scmp.eq.s32.totalorder %s15, 1
    %p33 = por %p31, %p32
    %p34 = scmp.ne.s32.totalorder %s23, %s24
    %p35 = scmp.eq.s32.totalorder %s15, 0
    %p36 = por %p34, %p35
    %p37 = scmp.ne.s32.totalorder %s23, %s24
    %p38 = scmp.eq.s32.totalorder %s16, 1
    %p39 = por %p37, %p38
    %p41 = scmp.ne.s32.totalorder %s24, %s40
    %p42 = scmp.eq.s32.totalorder %s16, 0
    %p43 = por %p41, %p42
    %s45 = sadd.s32 %s44, 1
    %p48 = scmp.eq.s32.totalorder %s10, 1
    %p49 = scmp.ne.s32.totalorder %s44, %s46
    %p50 = scmp.eq.s32.totalorder %s10, 0
    %p51 = por %p49, %p50
    %p52 = scmp.ne.s32.totalorder %s44, %s46
    %p53 = scmp.eq.s32.totalorder %s15, 1
    %p54 = por %p52, %p53
    %p55 = scmp.ne.s32.totalorder %s46, %s47
    %p56 = scmp.eq.s32.totalorder %s15, 0
    %p57 = por %p55, %p56
    %p58 = scmp.ne.s32.totalorder %s46, %s47
    %p59 = scmp.eq.s32.totalorder %s16, 1
    %p60 = por %p58, %p59
    %p62 = scmp.ne.s32.totalorder %s47, %s61
    %p63 = scmp.eq.s32.totalorder %s16, 0
    %p64 = por %p62, %p63
    %s66 = sadd.s32 %s65, 1
    %p69 = scmp.eq.s32.totalorder %s10, 1
    %p70 = scmp.ne.s32.totalorder %s65, %s67
    %p71 = scmp.eq.s32.totalorder %s10, 0
    %p72 = por %p70, %p71
    %p73 = scmp.ne.s32.totalorder %s65, %s67
    %p74 = scmp.eq.s32.totalorder %s15, 1
    %p75 = por %p73, %p74
    %p76 = scmp.ne.s32.totalorder %s67, %s68
    %p77 = scmp.eq.s32.totalorder %s15, 0
    %p78 = por %p76, %p77
    %p79 = scmp.ne.s32.totalorder %s67, %s68
    %p80 = scmp.eq.s32.totalorder %s16, 1
    %p81 = por %p79, %p80
    %p83 = scmp.ne.s32.totalorder %s68, %s82
    %p84 = scmp.eq.s32.totalorder %s16, 0
    %p85 = por %p83, %p84
    %s87 = sadd.s32 %s86, 1
    %p90 = scmp.eq.s32.totalorder %s10, 1
    %p91 = scmp.ne.s32.totalorder %s86, %s88
    %p92 = scmp.eq.s32.totalorder %s10, 0
    %p93 = por %p91, %p92
    %p94 = scmp.ne.s32.totalorder %s86, %s88
    %p95 = scmp.eq.s32.totalorder %s15, 1
    %p96 = por %p94, %p95
    %p97 = scmp.ne.s32.totalorder %s88, %s89
    %p98 = scmp.eq.s32.totalorder %s15, 0
    %p99 = por %p97, %p98
    %p100 = scmp.ne.s32.totalorder %s88, %s89
    %p101 = scmp.eq.s32.totalorder %s16, 1
    %p102 = por %p100, %p101
    %p104 = scmp.ne.s32.totalorder %s89, %s103
    %p105 = scmp.eq.s32.totalorder %s16, 0
    %p106 = por %p104, %p105
    %s107 = ssub.s32 %s10, %s17
    %p108 = scmp.eq.s32.totalorder %s107, 0
    %s110 = sadd.s32 %s109, 1
    %s111 = scalar_select %p108, %s109, %s110
    %p114 = pneg %p108
    %p115 = scmp.eq.s32.totalorder %s10, 1
    %p116 = por %p114, %p115
    %p117 = scmp.ne.s32.totalorder %s109, %s112
    %p118 = scmp.eq.s32.totalorder %s10, 0
    %p119 = por %p117, %p118
    %p120 = scmp.ne.s32.totalorder %s109, %s112
    %p121 = scmp.eq.s32.totalorder %s15, 1
    %p122 = por %p120, %p121
    %p123 = scmp.ne.s32.totalorder %s112, %s113
    %p124 = scmp.eq.s32.totalorder %s15, 0
    %p125 = por %p123, %p124
    %p126 = scmp.ne.s32.totalorder %s112, %s113
    %p127 = scmp.eq.s32.totalorder %s16, 1
    %p128 = por %p126, %p127
    %p130 = scmp.ne.s32.totalorder %s113, %s129
    %p131 = scmp.eq.s32.totalorder %s16, 0
    %p132 = por %p130, %p131
    %p133 = scmp.le.s32.totalorder 1, %s10
    %p134 = scmp.lt.s32.totalorder %s10, 3
    %p135 = pnand %p133, %p134
    %p136 = pneg %p135
    // Predicated region
    $region9: #{refine_block3_1.5} parent=5 // pred_check
      _
    $region10: #{refine_block3_1.5} parent=5 // pred_check_branch
      %138 = sbr.rel (%p135) target = $region12
    $region11: #{refine_block3_1.5} parent=5 // pred_region
      %s139 = ssub.s32 %s10, 1
      // Predicated region
      $region13: #{refine_block3_1.5} parent=11 // pred_check
        %p140 = pneg %p57
      $region14: #{refine_block3_1.5} parent=11 // pred_check_branch
        %142 = sbr.rel (%p140) target = $region16
      $region15: #{refine_block3_1.5} parent=11 // pred_region
        _
      $region16: #{refine_block3_1.5} parent=11 // pred_fallthru
        _
      // Predicated region
      $region17: #{refine_block3_1.5} parent=11 // pred_check
        %p143 = pneg %p78
      $region18: #{refine_block3_1.5} parent=11 // pred_check_branch
        %145 = sbr.rel (%p143) target = $region20
      $region19: #{refine_block3_1.5} parent=11 // pred_region
        _
      $region20: #{refine_block3_1.5} parent=11 // pred_fallthru
        _
      // Predicated region
      $region21: #{refine_block3_1.5} parent=11 // pred_check
        %p146 = pneg %p99
      $region22: #{refine_block3_1.5} parent=11 // pred_check_branch
        %148 = sbr.rel (%p146) target = $region24
      $region23: #{refine_block3_1.5} parent=11 // pred_region
        _
      $region24: #{refine_block3_1.5} parent=11 // pred_fallthru
        _
    $region12: #{refine_block3_1.5} parent=5 // pred_fallthru
      _
    %p149 = scmp.lt.s32.totalorder %s10, 2
    // Predicated region
    $region25: #{refine_block3_1.5} parent=5 // pred_check
      %p150 = pneg %p149
    $region26: #{refine_block3_1.5} parent=5 // pred_check_branch
      %152 = sbr.rel (%p150) target = $region28
    $region27: #{refine_block3_1.5} parent=5 // pred_region
      // Predicated region
      $region29: #{refine_block3_1.5} parent=27 // pred_check
        %p153 = pneg %p30
      $region30: #{refine_block3_1.5} parent=27 // pred_check_branch
        %155 = sbr.rel (%p153) target = $region32
      $region31: #{refine_block3_1.5} parent=27 // pred_region
        %p156 = scmp.lt.s32.totalorder %s10, 1
        %s157 = scalar_select %p156, %s10, 1
        %s158 = smul.addr %s157, 3
        %s159 = smul.addr %s158, 4
        %s160 = scalar_lea.vmem %s0, %s159
      $region32: #{refine_block3_1.5} parent=27 // pred_fallthru
        _
    $region28: #{refine_block3_1.5} parent=5 // pred_fallthru
      _
    %p161 = scmp.le.s32.totalorder 1, %s10
    %p162 = scmp.lt.s32.totalorder %s10, 3
    %p163 = pnand %p161, %p162
    %p164 = pneg %p163
    // Predicated region
    $region33: #{refine_block3_1.5} parent=5 // pred_check
      _
    $region34: #{refine_block3_1.5} parent=5 // pred_check_branch
      %166 = sbr.rel (%p163) target = $region36
    $region35: #{refine_block3_1.5} parent=5 // pred_region
      %s167 = ssub.s32 %s10, 1
      %p168 = scmp.lt.s32.totalorder %s15, 1
      %s169 = scalar_select %p168, %s15, 1
      %s170 = smul.addr %s169, 3
      %s171 = smul.addr %s170, 4
      %s172 = scalar_lea.vmem %s0, %s171
      %p173 = pneg %p36
      %p174 = pneg %p33
      %p175 = pneg %p57
      %p176 = pneg %p54
      %p177 = pneg %p78
      %p178 = pneg %p75
      %p179 = pneg %p99
      %p180 = pneg %p96
      %p181 = pneg %p125
      %p182 = pneg %p122
      %p183 = scmp.lt.s32.totalorder %s15, 1
      %s184 = scalar_select %p183, %s15, 1
      %s185 = smul.addr %s184, 4
      %s186 = scalar_lea.vmem %s4, %s185
      %p187 = scmp.lt.s32.totalorder %s15, 1
      %s188 = scalar_select %p187, %s15, 1
      %s189 = smul.addr %s188, 3
      %s190 = smul.addr %s189, 4
      %s191 = scalar_lea.vmem %s0, %s190
      %p192 = scmp.lt.s32.totalorder %s15, 1
      %s193 = scalar_select %p192, %s15, 1
      %s194 = smul.addr %s193, 4
      %s195 = scalar_lea.vmem %s4, %s194
      %v197 = vld [vmem:[%s191] sm:$0xff]
      %v198 = vld [vmem:[%s1] sm:$0xf]
      %s199 = scalar_lea.vmem %s1, 4
      %v200 = vld [vmem:[%s199] sm:$0xf]
      %v202 = vunpack.c.l.b16 %v197
      %v203 = vunpack.c.h.b16 %v197
      %v204 = vpack.c.b16 %v202, %v202
      %v205 = vpack.c.b16 %v203, %v203
      %206 = vrot.lane.b32.xlu0 %v204, 10
      %v207 = vpop.permute.xlu0 %206
      %208 = vrot.lane.b32.xlu0 %v205, 10
      %v209 = vpop.permute.xlu0 %208
      %vm210 = vcmask 80896
      %v211 = vsel %vm210, %v207, %v209
      %vm212 = vcmask 64512
      %v214 = vsel %vm212, %v200, 0
      %vm216 = vcmask 1043456
      %v218 = vsel %vm216, %v211, 0
      %220 = vmatpush.bf16.msra.mxu0 0
      %221 = vmatpush.bf16.msra.mxu0 0
      %222 = vmatpush.bf16.msra.mxu0 0
      %223 = vmatpush.bf16.msra.mxu0 0
      %224 = vmatpush.bf16.msra.mxu0 0
      %225 = vmatpush.bf16.msra.mxu0 0
      %226 = vmatpush.bf16.msra.mxu0 0
      %227 = vmatpush.bf16.msra.mxu0 %v218
      %228 = vmatmul.bf16.gmra.mxu0 %v214
      %v229 = vpop.f32.mrf.mxu0
      %v230 = vadd.f32 0.0, %v229
      %v231 = vpop.f32.mrf.mxu0
      %232 = vdwg.mxu0
      %233 = vrot.lane.b32.xlu0 %v204, 11
      %v234 = vpop.permute.xlu0 %233
      %235 = vrot.lane.b32.xlu0 %v205, 11
      %v236 = vpop.permute.xlu0 %235
      %vm237 = vcmask 89088
      %v238 = vsel %vm237, %v234, %v236
      %v240 = vsel %vm212, %v198, 0
      %v243 = vsel %vm216, %v238, 0
      %245 = vmatpush.bf16.msra.mxu0 0
      %246 = vmatpush.bf16.msra.mxu0 0
      %247 = vmatpush.bf16.msra.mxu0 0
      %248 = vmatpush.bf16.msra.mxu0 0
      %249 = vmatpush.bf16.msra.mxu0 0
      %250 = vmatpush.bf16.msra.mxu0 0
      %251 = vmatpush.bf16.msra.mxu0 0
      %252 = vmatpush.bf16.msra.mxu0 %v243
      %253 = vmatmul.bf16.gmra.mxu0 %v240
      %v254 = vpop.f32.mrf.mxu0
      %v255 = vadd.f32 %v230, %v254
      %v256 = vpop.f32.mrf.mxu0
      %257 = vdwg.mxu0
      %s258 = scalar_lea.vmem %s1, 8
      %v259 = vld [vmem:[%s258] sm:$0xf]
      %260 = vrot.lane.b32.xlu0 %v204, 9
      %v261 = vpop.permute.xlu0 %260
      %262 = vrot.lane.b32.xlu0 %v205, 9
      %v263 = vpop.permute.xlu0 %262
      %vm264 = vcmask 72704
      %v265 = vsel %vm264, %v261, %v263
      %v267 = vsel %vm212, %v259, 0
      %v270 = vsel %vm216, %v265, 0
      %272 = vmatpush.bf16.msra.mxu0 0
      %273 = vmatpush.bf16.msra.mxu0 0
      %274 = vmatpush.bf16.msra.mxu0 0
      %275 = vmatpush.bf16.msra.mxu0 0
      %276 = vmatpush.bf16.msra.mxu0 0
      %277 = vmatpush.bf16.msra.mxu0 0
      %278 = vmatpush.bf16.msra.mxu0 0
      %279 = vmatpush.bf16.msra.mxu0 %v270
      %280 = vmatmul.bf16.gmra.mxu0 %v267
      %v281 = vpop.f32.mrf.mxu0
      %v282 = vadd.f32 0.0, %v281
      %v283 = vpop.f32.mrf.mxu0
      %284 = vdwg.mxu0
      %v285 = vadd.f32 %v255, %v282
      %s286 = scalar_lea.vmem %s1, 12
      %v287 = vld [vmem:[%s286] sm:$0xf]
      %288 = vrot.lane.b32.xlu0 %v204, 1
      %v289 = vpop.permute.xlu0 %288
      %290 = vrot.lane.b32.xlu0 %v205, 1
      %v291 = vpop.permute.xlu0 %290
      %vm292 = vcmask 7168
      %v293 = vsel %vm292, %v289, %v291
      %v295 = vsel %vm212, %v287, 0
      %v298 = vsel %vm216, %v293, 0
      %300 = vmatpush.bf16.msra.mxu0 0
      %301 = vmatpush.bf16.msra.mxu0 0
      %302 = vmatpush.bf16.msra.mxu0 0
      %303 = vmatpush.bf16.msra.mxu0 0
      %304 = vmatpush.bf16.msra.mxu0 0
      %305 = vmatpush.bf16.msra.mxu0 0
      %306 = vmatpush.bf16.msra.mxu0 0
      %307 = vmatpush.bf16.msra.mxu0 %v298
      %308 = vmatmul.bf16.gmra.mxu0 %v295
      %v309 = vpop.f32.mrf.mxu0
      %v310 = vadd.f32 0.0, %v309
      %v311 = vpop.f32.mrf.mxu0
      %312 = vdwg.mxu0
      %v313 = vadd.f32 %v285, %v310
      %v314 = vld [vmem:[%s191 + $0x4] sm:$0xf]
      %s315 = scalar_lea.vmem %s1, 16
      %v316 = vld [vmem:[%s315] sm:$0xf]
      %v318 = vsel %vm212, %v316, 0
      %v321 = vsel %vm216, %v314, 0
      %323 = vmatpush.bf16.msra.mxu0 0
      %324 = vmatpush.bf16.msra.mxu0 0
      %325 = vmatpush.bf16.msra.mxu0 0
      %326 = vmatpush.bf16.msra.mxu0 0
      %327 = vmatpush.bf16.msra.mxu0 0
      %328 = vmatpush.bf16.msra.mxu0 0
      %329 = vmatpush.bf16.msra.mxu0 0
      %330 = vmatpush.bf16.msra.mxu0 %v321
      %331 = vmatmul.bf16.gmra.mxu0 %v318
      %v332 = vpop.f32.mrf.mxu0
      %v333 = vadd.f32 0.0, %v332
      %v334 = vpop.f32.mrf.mxu0
      %335 = vdwg.mxu0
      %v336 = vadd.f32 %v313, %v333
      %v337 = vld [vmem:[%s191 + $0x4] sm:$0xff]
      %s338 = scalar_lea.vmem %s1, 20
      %v339 = vld [vmem:[%s338] sm:$0xf]
      %v341 = vunpack.c.l.b16 %v337
      %v342 = vunpack.c.h.b16 %v337
      %v343 = vpack.c.b16 %v341, %v341
      %v344 = vpack.c.b16 %v342, %v342
      %345 = vrot.lane.b32.xlu0 %v343, 127
      %v346 = vpop.permute.xlu0 %345
      %347 = vrot.lane.b32.xlu0 %v344, 127
      %v348 = vpop.permute.xlu0 %347
      %vm349 = vcmask 1039360
      %v350 = vsel %vm349, %v346, %v348
      %v352 = vsel %vm212, %v339, 0
      %v355 = vsel %vm216, %v350, 0
      %357 = vmatpush.bf16.msra.mxu0 0
      %358 = vmatpush.bf16.msra.mxu0 0
      %359 = vmatpush.bf16.msra.mxu0 0
      %360 = vmatpush.bf16.msra.mxu0 0
      %361 = vmatpush.bf16.msra.mxu0 0
      %362 = vmatpush.bf16.msra.mxu0 0
      %363 = vmatpush.bf16.msra.mxu0 0
      %364 = vmatpush.bf16.msra.mxu0 %v355
      %365 = vmatmul.bf16.gmra.mxu0 %v352
      %v366 = vpop.f32.mrf.mxu0
      %v367 = vadd.f32 0.0, %v366
      %v368 = vpop.f32.mrf.mxu0
      %369 = vdwg.mxu0
      %v370 = vadd.f32 %v336, %v367
      %s371 = scalar_lea.vmem %s1, 24
      %v372 = vld [vmem:[%s371] sm:$0xf]
      %373 = vrot.lane.b32.xlu0 %v343, 119
      %v374 = vpop.permute.xlu0 %373
      %375 = vrot.lane.b32.xlu0 %v344, 119
      %v376 = vpop.permute.xlu0 %375
      %vm377 = vcmask 973824
      %v378 = vsel %vm377, %v374, %v376
      %v380 = vsel %vm212, %v372, 0
      %v383 = vsel %vm216, %v378, 0
      %385 = vmatpush.bf16.msra.mxu0 0
      %386 = vmatpush.bf16.msra.mxu0 0
      %387 = vmatpush.bf16.msra.mxu0 0
      %388 = vmatpush.bf16.msra.mxu0 0
      %389 = vmatpush.bf16.msra.mxu0 0
      %390 = vmatpush.bf16.msra.mxu0 0
      %391 = vmatpush.bf16.msra.mxu0 0
      %392 = vmatpush.bf16.msra.mxu0 %v383
      %393 = vmatmul.bf16.gmra.mxu0 %v380
      %v394 = vpop.f32.mrf.mxu0
      %v395 = vadd.f32 0.0, %v394
      %v396 = vpop.f32.mrf.mxu0
      %397 = vdwg.mxu0
      %v398 = vadd.f32 %v370, %v395
      %s399 = scalar_lea.vmem %s1, 28
      %v400 = vld [vmem:[%s399] sm:$0xf]
      %401 = vrot.lane.b32.xlu0 %v343, 118
      %v402 = vpop.permute.xlu0 %401
      %403 = vrot.lane.b32.xlu0 %v344, 118
      %v404 = vpop.permute.xlu0 %403
      %vm405 = vcmask 965632
      %v406 = vsel %vm405, %v402, %v404
      %v408 = vsel %vm212, %v400, 0
      %v411 = vsel %vm216, %v406, 0
      %413 = vmatpush.bf16.msra.mxu0 0
      %414 = vmatpush.bf16.msra.mxu0 0
      %415 = vmatpush.bf16.msra.mxu0 0
      %416 = vmatpush.bf16.msra.mxu0 0
      %417 = vmatpush.bf16.msra.mxu0 0
      %418 = vmatpush.bf16.msra.mxu0 0
      %419 = vmatpush.bf16.msra.mxu0 0
      %420 = vmatpush.bf16.msra.mxu0 %v411
      %421 = vmatmul.bf16.gmra.mxu0 %v408
      %v422 = vpop.f32.mrf.mxu0
      %v423 = vadd.f32 0.0, %v422
      %v424 = vpop.f32.mrf.mxu0
      %425 = vdwg.mxu0
      %v426 = vadd.f32 %v398, %v423
      %s427 = scalar_lea.vmem %s1, 32
      %v428 = vld [vmem:[%s427] sm:$0xf]
      %429 = vrot.lane.b32.xlu0 %v343, 117
      %v430 = vpop.permute.xlu0 %429
      %431 = vrot.lane.b32.xlu0 %v344, 117
      %v432 = vpop.permute.xlu0 %431
      %vm433 = vcmask 957440
      %v434 = vsel %vm433, %v430, %v432
      %v436 = vsel %vm212, %v428, 0
      %v439 = vsel %vm216, %v434, 0
      %441 = vmatpush.bf16.msra.mxu0 0
      %442 = vmatpush.bf16.msra.mxu0 0
      %443 = vmatpush.bf16.msra.mxu0 0
      %444 = vmatpush.bf16.msra.mxu0 0
      %445 = vmatpush.bf16.msra.mxu0 0
      %446 = vmatpush.bf16.msra.mxu0 0
      %447 = vmatpush.bf16.msra.mxu0 0
      %448 = vmatpush.bf16.msra.mxu0 %v439
      %449 = vmatmul.bf16.gmra.mxu0 %v436
      %v450 = vpop.f32.mrf.mxu0
      %v451 = vadd.f32 0.0, %v450
      %v452 = vpop.f32.mrf.mxu0
      %453 = vdwg.mxu0
      %v454 = vadd.f32 %v426, %v451
      %v455 = vld [vmem:[%s2] sm:$0xff]
      %457 = vset.pattern.permute.xlu0 0
      %458 = vperm.xlu0 %457, %v455
      %v459 = vpop.permute.xlu0 %458
      %v461 = vadd.f32 %v454, %v459
      %v462 = vmax.f32 %v461, 0.0
      %v463 = vld [vmem:[%s3] sm:$0x1]
      %v465 = vperm.slane %v463, 0
      %v467 = vmul.f32 %v462, %v465
      %v468 = vpack.c.bf16 %v467, %v467
      %469 = vst [vmem:[%s195] sm:$0xf] %v468
      %p470 = scmp.lt.s32.totalorder %s15, 1
      %s471 = scalar_select %p470, %s15, 1
      %s472 = smul.addr %s471, 4
      %s473 = scalar_lea.vmem %s4, %s472
      // Predicated region
      $region37: #{refine_block3_1.5} parent=35 // pred_check
        %p474 = pneg %p122
      $region38: #{refine_block3_1.5} parent=35 // pred_check_branch
        %476 = sbr.rel (%p474) target = $region40
      $region39: #{refine_block3_1.5} parent=35 // pred_region
        _
      $region40: #{refine_block3_1.5} parent=35 // pred_fallthru
        _
    $region36: #{refine_block3_1.5} parent=5 // pred_fallthru
      _
    %p477 = scmp.le.s32.totalorder 2, %s10
    // Predicated region
    $region41: #{refine_block3_1.5} parent=5 // pred_check
      %p478 = pneg %p477
    $region42: #{refine_block3_1.5} parent=5 // pred_check_branch
      %480 = sbr.rel (%p478) target = $region44
    $region43: #{refine_block3_1.5} parent=5 // pred_region
      %s481 = ssub.s32 %s10, 2
      // Predicated region
      $region45: #{refine_block3_1.5} parent=43 // pred_check
        %p482 = pneg %p128
      $region46: #{refine_block3_1.5} parent=43 // pred_check_branch
        %484 = sbr.rel (%p482) target = $region48
      $region47: #{refine_block3_1.5} parent=43 // pred_region
        %p485 = scmp.lt.s32.totalorder %s16, 1
        %s486 = scalar_select %p485, %s16, 1
        %s487 = smul.addr %s486, 4
        %s488 = scalar_lea.vmem %s4, %s487
      $region48: #{refine_block3_1.5} parent=43 // pred_fallthru
        _
    $region44: #{refine_block3_1.5} parent=5 // pred_fallthru
      _
  $region6: #{refine_block3_1.5} parent=0 // loop_footer
    %s14 = sadd.s32 1, %s10
  $region7: #{refine_block3_1.5} parent=0 // loop_footer_branch
    %9 = sbr.rel target = $region3
  $region8: #{refine_block3_1.5} parent=0 // loop_exit
    _

// kernel: refine_block3_1.9
$region0: #{refine_block3_1.9}
  #allocation0 [shape = 'u32[]', space=smem, size = 0x4, offset = 0x4, fixed_abs, tag = 'smem constant byte address 0x4 - core index']
  #allocation1 [shape = 'u32[72,128]{1,0:T(1,128)}', space=vmem, size = 0x9000, scoped, tag = 'internal scratch']
  %s0 = inlined_call_operand.vmem [shape: bf16[2,8,640], index: 0, kind: input, shape index: {}]
  %s1 = inlined_call_operand.vmem [shape: bf16[9,8,8], index: 1, kind: input, shape index: {}]
  %s2 = inlined_call_operand.vmem [shape: f32[8,1], index: 2, kind: input, shape index: {}]
  %s3 = inlined_call_operand.vmem [shape: bf16[2,8,384], index: 3, kind: input, shape index: {}]
  %s4 = inlined_call_operand.vmem [shape: bf16[2,8,384], index: 4, kind: input, shape index: {}]
  %s5 = inlined_call_operand.vmem [shape: f32[2,8,384], index: 5, kind: output, shape index: {}]
  %s6 = sld [smem:[#allocation0]]
  $region53: #{refine_block3_1.9} parent=0
    _
  %s8 = ssub.s32 1, %s6
  %s9 = scalar_select 0, %s8, %s6
  loop: start=0, step=1, limit=4
  $region2: #{refine_block3_1.9} parent=0 // loop_pre_header
    _
  $region3: #{refine_block3_1.9} parent=0 // loop_header
    %s11 = sphi 0, %s15
    %p12 = scmp.ge.s32.totalorder %s11, 4
    %s21 = sphi 0, %s23
    %s24 = sphi 0, %s21
    %s25 = sphi 0, %s24
    %s41 = sphi 0, %s25
    %s45 = sphi 0, %s45
    %s47 = sphi 0, %s45
    %s48 = sphi 0, %s47
    %s62 = sphi 0, %s48
    %s66 = sphi 0, %s66
    %s68 = sphi 0, %s66
    %s69 = sphi 0, %s68
    %s83 = sphi 0, %s69
    %s89 = sphi 0, %s91
    %s92 = sphi 0, %s89
    %s93 = sphi 0, %s92
    %s109 = sphi 0, %s93
    %s115 = sphi 0, %s117
    %s118 = sphi 0, %s115
    %s119 = sphi 0, %s118
    %s135 = sphi 0, %s119
    %s141 = sphi 0, %s143
    %s144 = sphi 0, %s141
    %s145 = sphi 0, %s144
    %s161 = sphi 0, %s145
  $region4: #{refine_block3_1.9} parent=0 // loop_header_branch
    %14 = sbr.rel (%p12) target = $region8
  $region5: #{refine_block3_1.9} parent=0 // loop_body
    %s16 = ssub.s32 %s11, 1
    %s17 = ssub.s32 %s11, 2
    %s18 = sadd.s32 %s11, 1
    %s19 = ssub.s32 %s11, %s18
    %p20 = scmp.eq.s32.totalorder %s19, 0
    %s22 = sadd.s32 %s21, 1
    %s23 = scalar_select %p20, %s21, %s22
    %p26 = pneg %p20
    %p27 = scmp.eq.s32.totalorder %s11, 1
    %p28 = por %p26, %p27
    %p29 = scmp.ne.s32.totalorder %s21, %s24
    %p30 = scmp.eq.s32.totalorder %s11, 0
    %p31 = por %p29, %p30
    %p32 = scmp.ne.s32.totalorder %s21, %s24
    %p33 = scmp.eq.s32.totalorder %s16, 1
    %p34 = por %p32, %p33
    %p35 = scmp.ne.s32.totalorder %s24, %s25
    %p36 = scmp.eq.s32.totalorder %s16, 0
    %p37 = por %p35, %p36
    %p38 = scmp.ne.s32.totalorder %s24, %s25
    %p39 = scmp.eq.s32.totalorder %s17, 1
    %p40 = por %p38, %p39
    %p42 = scmp.ne.s32.totalorder %s25, %s41
    %p43 = scmp.eq.s32.totalorder %s17, 0
    %p44 = por %p42, %p43
    %s46 = sadd.s32 %s45, 1
    %p49 = scmp.eq.s32.totalorder %s11, 1
    %p50 = scmp.ne.s32.totalorder %s45, %s47
    %p51 = scmp.eq.s32.totalorder %s11, 0
    %p52 = por %p50, %p51
    %p53 = scmp.ne.s32.totalorder %s45, %s47
    %p54 = scmp.eq.s32.totalorder %s16, 1
    %p55 = por %p53, %p54
    %p56 = scmp.ne.s32.totalorder %s47, %s48
    %p57 = scmp.eq.s32.totalorder %s16, 0
    %p58 = por %p56, %p57
    %p59 = scmp.ne.s32.totalorder %s47, %s48
    %p60 = scmp.eq.s32.totalorder %s17, 1
    %p61 = por %p59, %p60
    %p63 = scmp.ne.s32.totalorder %s48, %s62
    %p64 = scmp.eq.s32.totalorder %s17, 0
    %p65 = por %p63, %p64
    %s67 = sadd.s32 %s66, 1
    %p70 = scmp.eq.s32.totalorder %s11, 1
    %p71 = scmp.ne.s32.totalorder %s66, %s68
    %p72 = scmp.eq.s32.totalorder %s11, 0
    %p73 = por %p71, %p72
    %p74 = scmp.ne.s32.totalorder %s66, %s68
    %p75 = scmp.eq.s32.totalorder %s16, 1
    %p76 = por %p74, %p75
    %p77 = scmp.ne.s32.totalorder %s68, %s69
    %p78 = scmp.eq.s32.totalorder %s16, 0
    %p79 = por %p77, %p78
    %p80 = scmp.ne.s32.totalorder %s68, %s69
    %p81 = scmp.eq.s32.totalorder %s17, 1
    %p82 = por %p80, %p81
    %p84 = scmp.ne.s32.totalorder %s69, %s83
    %p85 = scmp.eq.s32.totalorder %s17, 0
    %p86 = por %p84, %p85
    %s87 = ssub.s32 %s11, %s18
    %p88 = scmp.eq.s32.totalorder %s87, 0
    %s90 = sadd.s32 %s89, 1
    %s91 = scalar_select %p88, %s89, %s90
    %p94 = pneg %p88
    %p95 = scmp.eq.s32.totalorder %s11, 1
    %p96 = por %p94, %p95
    %p97 = scmp.ne.s32.totalorder %s89, %s92
    %p98 = scmp.eq.s32.totalorder %s11, 0
    %p99 = por %p97, %p98
    %p100 = scmp.ne.s32.totalorder %s89, %s92
    %p101 = scmp.eq.s32.totalorder %s16, 1
    %p102 = por %p100, %p101
    %p103 = scmp.ne.s32.totalorder %s92, %s93
    %p104 = scmp.eq.s32.totalorder %s16, 0
    %p105 = por %p103, %p104
    %p106 = scmp.ne.s32.totalorder %s92, %s93
    %p107 = scmp.eq.s32.totalorder %s17, 1
    %p108 = por %p106, %p107
    %p110 = scmp.ne.s32.totalorder %s93, %s109
    %p111 = scmp.eq.s32.totalorder %s17, 0
    %p112 = por %p110, %p111
    %s113 = ssub.s32 %s11, %s18
    %p114 = scmp.eq.s32.totalorder %s113, 0
    %s116 = sadd.s32 %s115, 1
    %s117 = scalar_select %p114, %s115, %s116
    %p120 = pneg %p114
    %p121 = scmp.eq.s32.totalorder %s11, 1
    %p122 = por %p120, %p121
    %p123 = scmp.ne.s32.totalorder %s115, %s118
    %p124 = scmp.eq.s32.totalorder %s11, 0
    %p125 = por %p123, %p124
    %p126 = scmp.ne.s32.totalorder %s115, %s118
    %p127 = scmp.eq.s32.totalorder %s16, 1
    %p128 = por %p126, %p127
    %p129 = scmp.ne.s32.totalorder %s118, %s119
    %p130 = scmp.eq.s32.totalorder %s16, 0
    %p131 = por %p129, %p130
    %p132 = scmp.ne.s32.totalorder %s118, %s119
    %p133 = scmp.eq.s32.totalorder %s17, 1
    %p134 = por %p132, %p133
    %p136 = scmp.ne.s32.totalorder %s119, %s135
    %p137 = scmp.eq.s32.totalorder %s17, 0
    %p138 = por %p136, %p137
    %s139 = ssub.s32 %s11, %s18
    %p140 = scmp.eq.s32.totalorder %s139, 0
    %s142 = sadd.s32 %s141, 1
    %s143 = scalar_select %p140, %s141, %s142
    %p146 = pneg %p140
    %p147 = scmp.eq.s32.totalorder %s11, 1
    %p148 = por %p146, %p147
    %p149 = scmp.ne.s32.totalorder %s141, %s144
    %p150 = scmp.eq.s32.totalorder %s11, 0
    %p151 = por %p149, %p150
    %p152 = scmp.ne.s32.totalorder %s141, %s144
    %p153 = scmp.eq.s32.totalorder %s16, 1
    %p154 = por %p152, %p153
    %p155 = scmp.ne.s32.totalorder %s144, %s145
    %p156 = scmp.eq.s32.totalorder %s16, 0
    %p157 = por %p155, %p156
    %p158 = scmp.ne.s32.totalorder %s144, %s145
    %p159 = scmp.eq.s32.totalorder %s17, 1
    %p160 = por %p158, %p159
    %p162 = scmp.ne.s32.totalorder %s145, %s161
    %p163 = scmp.eq.s32.totalorder %s17, 0
    %p164 = por %p162, %p163
    %p165 = scmp.le.s32.totalorder 1, %s11
    %p166 = scmp.lt.s32.totalorder %s11, 3
    %p167 = pnand %p165, %p166
    %p168 = pneg %p167
    // Predicated region
    $region9: #{refine_block3_1.9} parent=5 // pred_check
      _
    $region10: #{refine_block3_1.9} parent=5 // pred_check_branch
      %170 = sbr.rel (%p167) target = $region12
    $region11: #{refine_block3_1.9} parent=5 // pred_region
      %s171 = ssub.s32 %s11, 1
      // Predicated region
      $region13: #{refine_block3_1.9} parent=11 // pred_check
        %p172 = pneg %p58
      $region14: #{refine_block3_1.9} parent=11 // pred_check_branch
        %174 = sbr.rel (%p172) target = $region16
      $region15: #{refine_block3_1.9} parent=11 // pred_region
        _
      $region16: #{refine_block3_1.9} parent=11 // pred_fallthru
        _
      // Predicated region
      $region17: #{refine_block3_1.9} parent=11 // pred_check
        %p175 = pneg %p79
      $region18: #{refine_block3_1.9} parent=11 // pred_check_branch
        %177 = sbr.rel (%p175) target = $region20
      $region19: #{refine_block3_1.9} parent=11 // pred_region
        _
      $region20: #{refine_block3_1.9} parent=11 // pred_fallthru
        _
    $region12: #{refine_block3_1.9} parent=5 // pred_fallthru
      _
    %p178 = scmp.lt.s32.totalorder %s11, 2
    // Predicated region
    $region21: #{refine_block3_1.9} parent=5 // pred_check
      %p179 = pneg %p178
    $region22: #{refine_block3_1.9} parent=5 // pred_check_branch
      %181 = sbr.rel (%p179) target = $region24
    $region23: #{refine_block3_1.9} parent=5 // pred_region
      // Predicated region
      $region25: #{refine_block3_1.9} parent=23 // pred_check
        %p182 = pneg %p31
      $region26: #{refine_block3_1.9} parent=23 // pred_check_branch
        %184 = sbr.rel (%p182) target = $region28
      $region27: #{refine_block3_1.9} parent=23 // pred_region
        %p185 = scmp.lt.s32.totalorder %s11, 1
        %s186 = scalar_select %p185, %s11, 1
        %s187 = smul.addr %s186, 5
        %s188 = smul.addr %s187, 4
        %s189 = scalar_lea.vmem %s0, %s188
      $region28: #{refine_block3_1.9} parent=23 // pred_fallthru
        _
      // Predicated region
      $region29: #{refine_block3_1.9} parent=23 // pred_check
        %p190 = pneg %p99
      $region30: #{refine_block3_1.9} parent=23 // pred_check_branch
        %192 = sbr.rel (%p190) target = $region32
      $region31: #{refine_block3_1.9} parent=23 // pred_region
        %p193 = scmp.lt.s32.totalorder %s11, 1
        %s194 = scalar_select %p193, %s11, 1
        %s195 = smul.addr %s194, 3
        %s196 = smul.addr %s195, 4
        %s197 = scalar_lea.vmem %s3, %s196
      $region32: #{refine_block3_1.9} parent=23 // pred_fallthru
        _
      // Predicated region
      $region33: #{refine_block3_1.9} parent=23 // pred_check
        %p198 = pneg %p125
      $region34: #{refine_block3_1.9} parent=23 // pred_check_branch
        %200 = sbr.rel (%p198) target = $region36
      $region35: #{refine_block3_1.9} parent=23 // pred_region
        %p201 = scmp.lt.s32.totalorder %s11, 1
        %s202 = scalar_select %p201, %s11, 1
        %s203 = smul.addr %s202, 3
        %s204 = smul.addr %s203, 4
        %s205 = scalar_lea.vmem %s4, %s204
      $region36: #{refine_block3_1.9} parent=23 // pred_fallthru
        _
    $region24: #{refine_block3_1.9} parent=5 // pred_fallthru
      _
    %p206 = scmp.le.s32.totalorder 1, %s11
    %p207 = scmp.lt.s32.totalorder %s11, 3
    %p208 = pnand %p206, %p207
    %p209 = pneg %p208
    // Predicated region
    $region37: #{refine_block3_1.9} parent=5 // pred_check
      _
    $region38: #{refine_block3_1.9} parent=5 // pred_check_branch
      %211 = sbr.rel (%p208) target = $region40
    $region39: #{refine_block3_1.9} parent=5 // pred_region
      %s212 = ssub.s32 %s11, 1
      %p213 = scmp.lt.s32.totalorder %s16, 1
      %s214 = scalar_select %p213, %s16, 1
      %s215 = smul.addr %s214, 5
      %s216 = smul.addr %s215, 4
      %s217 = scalar_lea.vmem %s0, %s216
      %p218 = pneg %p37
      %p219 = pneg %p34
      %p220 = pneg %p58
      %p221 = pneg %p55
      %p222 = pneg %p79
      %p223 = pneg %p76
      %p224 = scmp.lt.s32.totalorder %s16, 1
      %s225 = scalar_select %p224, %s16, 1
      %s226 = smul.addr %s225, 3
      %s227 = smul.addr %s226, 4
      %s228 = scalar_lea.vmem %s3, %s227
      %p229 = pneg %p105
      %p230 = pneg %p102
      %p231 = scmp.lt.s32.totalorder %s16, 1
      %s232 = scalar_select %p231, %s16, 1
      %s233 = smul.addr %s232, 3
      %s234 = smul.addr %s233, 4
      %s235 = scalar_lea.vmem %s4, %s234
      %p236 = pneg %p131
      %p237 = pneg %p128
      %p238 = pneg %p157
      %p239 = pneg %p154
      %p240 = scmp.lt.s32.totalorder %s16, 1
      %s241 = scalar_select %p240, %s16, 1
      %s242 = smul.addr %s241, 3
      %s243 = smul.addr %s242, 8
      %s244 = scalar_lea.vmem %s5, %s243
      %p245 = scmp.lt.s32.totalorder %s16, 1
      %s246 = scalar_select %p245, %s16, 1
      %s247 = smul.addr %s246, 5
      %s248 = smul.addr %s247, 4
      %s249 = scalar_lea.vmem %s0, %s248
      %p250 = scmp.lt.s32.totalorder %s16, 1
      %s251 = scalar_select %p250, %s16, 1
      %s252 = smul.addr %s251, 3
      %s253 = smul.addr %s252, 4
      %s254 = scalar_lea.vmem %s3, %s253
      %p255 = scmp.lt.s32.totalorder %s16, 1
      %s256 = scalar_select %p255, %s16, 1
      %s257 = smul.addr %s256, 3
      %s258 = smul.addr %s257, 4
      %s259 = scalar_lea.vmem %s4, %s258
      %p260 = scmp.lt.s32.totalorder %s16, 1
      %s261 = scalar_select %p260, %s16, 1
      %s262 = smul.addr %s261, 3
      %s263 = smul.addr %s262, 8
      %s264 = scalar_lea.vmem %s5, %s263
      %v266 = vld [vmem:[%s249] sm:$0xff]
      %v267 = vld [vmem:[%s249 + $0x8] sm:$0xff]
      %v268 = vld [vmem:[%s1] sm:$0xf]
      %s269 = scalar_lea.vmem %s1, 4
      %v270 = vld [vmem:[%s269] sm:$0xf]
      %v273 = vunpack.c.l.b16 %v266
      %v274 = vunpack.c.h.b16 %v266
      %v275 = vunpack.c.l.b16 %v267
      %v276 = vunpack.c.h.b16 %v267
      %v277 = vpack.c.b16 %v273, %v273
      %v278 = vpack.c.b16 %v274, %v274
      %v279 = vpack.c.b16 %v275, %v275
      %v280 = vpack.c.b16 %v276, %v276
      %281 = vrot.lane.b32.xlu0 %v277, 18
      %v282 = vpop.permute.xlu0 %281
      %283 = vrot.lane.b32.xlu0 %v278, 18
      %v284 = vpop.permute.xlu0 %283
      %285 = vrot.lane.b32.xlu0 %v279, 18
      %v286 = vpop.permute.xlu0 %285
      %287 = vrot.lane.b32.xlu0 %v280, 18
      %v288 = vpop.permute.xlu0 %287
      %vm289 = vcmask 146432
      %v290 = vsel %vm289, %v282, %v284
      %v291 = vsel %vm289, %v284, %v286
      %v292 = vsel %vm289, %v286, %v288
      %vm293 = vcmask 64512
      %v295 = vsel %vm293, %v270, 0
      %vm297 = vcmask 1043456
      %v299 = vsel %vm297, %v290, 0
      %v302 = vsel %vm297, %v291, 0
      %v305 = vsel %vm297, %v292, 0
      %307 = vmatpush.bf16.msra.mxu0 0
      %308 = vmatpush.bf16.msra.mxu0 0
      %309 = vmatpush.bf16.msra.mxu0 0
      %310 = vmatpush.bf16.msra.mxu0 0
      %311 = vmatpush.bf16.msra.mxu0 0
      %312 = vmatpush.bf16.msra.mxu0 0
      %313 = vmatpush.bf16.msra.mxu0 0
      %314 = vmatpush.bf16.msra.mxu0 %v299
      %315 = vmatmul.bf16.gmra.mxu0 %v295
      %v316 = vpop.f32.mrf.mxu0
      %v317 = vadd.f32 0.0, %v316
      %v318 = vpop.f32.mrf.mxu0
      %319 = vdwg.mxu0
      %320 = vmatpush.bf16.msra.mxu0 0
      %321 = vmatpush.bf16.msra.mxu0 0
      %322 = vmatpush.bf16.msra.mxu0 0
      %323 = vmatpush.bf16.msra.mxu0 0
      %324 = vmatpush.bf16.msra.mxu0 0
      %325 = vmatpush.bf16.msra.mxu0 0
      %326 = vmatpush.bf16.msra.mxu0 0
      %327 = vmatpush.bf16.msra.mxu0 %v302
      %328 = vmatmul.bf16.gmra.mxu0 %v295
      %v329 = vpop.f32.mrf.mxu0
      %v330 = vadd.f32 0.0, %v329
      %v331 = vpop.f32.mrf.mxu0
      %332 = vdwg.mxu0
      %333 = vmatpush.bf16.msra.mxu0 0
      %334 = vmatpush.bf16.msra.mxu0 0
      %335 = vmatpush.bf16.msra.mxu0 0
      %336 = vmatpush.bf16.msra.mxu0 0
      %337 = vmatpush.bf16.msra.mxu0 0
      %338 = vmatpush.bf16.msra.mxu0 0
      %339 = vmatpush.bf16.msra.mxu0 0
      %340 = vmatpush.bf16.msra.mxu0 %v305
      %341 = vmatmul.bf16.gmra.mxu0 %v295
      %v342 = vpop.f32.mrf.mxu0
      %v343 = vadd.f32 0.0, %v342
      %v344 = vpop.f32.mrf.mxu0
      %345 = vdwg.mxu0
      %346 = vrot.lane.b32.xlu0 %v277, 19
      %v347 = vpop.permute.xlu0 %346
      %348 = vrot.lane.b32.xlu0 %v278, 19
      %v349 = vpop.permute.xlu0 %348
      %350 = vrot.lane.b32.xlu0 %v279, 19
      %v351 = vpop.permute.xlu0 %350
      %352 = vrot.lane.b32.xlu0 %v280, 19
      %v353 = vpop.permute.xlu0 %352
      %vm354 = vcmask 154624
      %v355 = vsel %vm354, %v347, %v349
      %v356 = vsel %vm354, %v349, %v351
      %v357 = vsel %vm354, %v351, %v353
      %v359 = vsel %vm293, %v268, 0
      %v362 = vsel %vm297, %v355, 0
      %v365 = vsel %vm297, %v356, 0
      %v368 = vsel %vm297, %v357, 0
      %370 = vmatpush.bf16.msra.mxu0 0
      %371 = vmatpush.bf16.msra.mxu0 0
      %372 = vmatpush.bf16.msra.mxu0 0
      %373 = vmatpush.bf16.msra.mxu0 0
      %374 = vmatpush.bf16.msra.mxu0 0
      %375 = vmatpush.bf16.msra.mxu0 0
      %376 = vmatpush.bf16.msra.mxu0 0
      %377 = vmatpush.bf16.msra.mxu0 %v362
      %378 = vmatmul.bf16.gmra.mxu0 %v359
      %v379 = vpop.f32.mrf.mxu0
      %v380 = vadd.f32 %v317, %v379
      %v381 = vpop.f32.mrf.mxu0
      %382 = vdwg.mxu0
      %383 = vmatpush.bf16.msra.mxu0 0
      %384 = vmatpush.bf16.msra.mxu0 0
      %385 = vmatpush.bf16.msra.mxu0 0
      %386 = vmatpush.bf16.msra.mxu0 0
      %387 = vmatpush.bf16.msra.mxu0 0
      %388 = vmatpush.bf16.msra.mxu0 0
      %389 = vmatpush.bf16.msra.mxu0 0
      %390 = vmatpush.bf16.msra.mxu0 %v365
      %391 = vmatmul.bf16.gmra.mxu0 %v359
      %v392 = vpop.f32.mrf.mxu0
      %v393 = vadd.f32 %v330, %v392
      %v394 = vpop.f32.mrf.mxu0
      %395 = vdwg.mxu0
      %396 = vmatpush.bf16.msra.mxu0 0
      %397 = vmatpush.bf16.msra.mxu0 0
      %398 = vmatpush.bf16.msra.mxu0 0
      %399 = vmatpush.bf16.msra.mxu0 0
      %400 = vmatpush.bf16.msra.mxu0 0
      %401 = vmatpush.bf16.msra.mxu0 0
      %402 = vmatpush.bf16.msra.mxu0 0
      %403 = vmatpush.bf16.msra.mxu0 %v368
      %404 = vmatmul.bf16.gmra.mxu0 %v359
      %v405 = vpop.f32.mrf.mxu0
      %v406 = vadd.f32 %v343, %v405
      %v407 = vpop.f32.mrf.mxu0
      %408 = vdwg.mxu0
      %s409 = scalar_lea.vmem %s1, 8
      %v410 = vld [vmem:[%s409] sm:$0xf]
      %411 = vrot.lane.b32.xlu0 %v277, 17
      %v412 = vpop.permute.xlu0 %411
      %413 = vrot.lane.b32.xlu0 %v278, 17
      %v414 = vpop.permute.xlu0 %413
      %415 = vrot.lane.b32.xlu0 %v279, 17
      %v416 = vpop.permute.xlu0 %415
      %417 = vrot.lane.b32.xlu0 %v280, 17
      %v418 = vpop.permute.xlu0 %417
      %vm419 = vcmask 138240
      %v420 = vsel %vm419, %v412, %v414
      %v421 = vsel %vm419, %v414, %v416
      %v422 = vsel %vm419, %v416, %v418
      %v424 = vsel %vm293, %v410, 0
      %v427 = vsel %vm297, %v420, 0
      %v430 = vsel %vm297, %v421, 0
      %v433 = vsel %vm297, %v422, 0
      %435 = vmatpush.bf16.msra.mxu0 0
      %436 = vmatpush.bf16.msra.mxu0 0
      %437 = vmatpush.bf16.msra.mxu0 0
      %438 = vmatpush.bf16.msra.mxu0 0
      %439 = vmatpush.bf16.msra.mxu0 0
      %440 = vmatpush.bf16.msra.mxu0 0
      %441 = vmatpush.bf16.msra.mxu0 0
      %442 = vmatpush.bf16.msra.mxu0 %v427
      %443 = vmatmul.bf16.gmra.mxu0 %v424
      %v444 = vpop.f32.mrf.mxu0
      %v445 = vadd.f32 0.0, %v444
      %v446 = vpop.f32.mrf.mxu0
      %447 = vdwg.mxu0
      %448 = vmatpush.bf16.msra.mxu0 0
      %449 = vmatpush.bf16.msra.mxu0 0
      %450 = vmatpush.bf16.msra.mxu0 0
      %451 = vmatpush.bf16.msra.mxu0 0
      %452 = vmatpush.bf16.msra.mxu0 0
      %453 = vmatpush.bf16.msra.mxu0 0
      %454 = vmatpush.bf16.msra.mxu0 0
      %455 = vmatpush.bf16.msra.mxu0 %v430
      %456 = vmatmul.bf16.gmra.mxu0 %v424
      %v457 = vpop.f32.mrf.mxu0
      %v458 = vadd.f32 0.0, %v457
      %v459 = vpop.f32.mrf.mxu0
      %460 = vdwg.mxu0
      %461 = vmatpush.bf16.msra.mxu0 0
      %462 = vmatpush.bf16.msra.mxu0 0
      %463 = vmatpush.bf16.msra.mxu0 0
      %464 = vmatpush.bf16.msra.mxu0 0
      %465 = vmatpush.bf16.msra.mxu0 0
      %466 = vmatpush.bf16.msra.mxu0 0
      %467 = vmatpush.bf16.msra.mxu0 0
      %468 = vmatpush.bf16.msra.mxu0 %v433
      %469 = vmatmul.bf16.gmra.mxu0 %v424
      %v470 = vpop.f32.mrf.mxu0
      %v471 = vadd.f32 0.0, %v470
      %v472 = vpop.f32.mrf.mxu0
      %473 = vdwg.mxu0
      %v474 = vadd.f32 %v380, %v445
      %v475 = vadd.f32 %v393, %v458
      %v476 = vadd.f32 %v406, %v471
      %s477 = scalar_lea.vmem %s1, 12
      %v478 = vld [vmem:[%s477] sm:$0xf]
      %479 = vrot.lane.b32.xlu0 %v277, 1
      %v480 = vpop.permute.xlu0 %479
      %481 = vrot.lane.b32.xlu0 %v278, 1
      %v482 = vpop.permute.xlu0 %481
      %483 = vrot.lane.b32.xlu0 %v279, 1
      %v484 = vpop.permute.xlu0 %483
      %485 = vrot.lane.b32.xlu0 %v280, 1
      %v486 = vpop.permute.xlu0 %485
      %vm487 = vcmask 7168
      %v488 = vsel %vm487, %v480, %v482
      %v489 = vsel %vm487, %v482, %v484
      %v490 = vsel %vm487, %v484, %v486
      %v492 = vsel %vm293, %v478, 0
      %v495 = vsel %vm297, %v488, 0
      %v498 = vsel %vm297, %v489, 0
      %v501 = vsel %vm297, %v490, 0
      %503 = vmatpush.bf16.msra.mxu0 0
      %504 = vmatpush.bf16.msra.mxu0 0
      %505 = vmatpush.bf16.msra.mxu0 0
      %506 = vmatpush.bf16.msra.mxu0 0
      %507 = vmatpush.bf16.msra.mxu0 0
      %508 = vmatpush.bf16.msra.mxu0 0
      %509 = vmatpush.bf16.msra.mxu0 0
      %510 = vmatpush.bf16.msra.mxu0 %v495
      %511 = vmatmul.bf16.gmra.mxu0 %v492
      %v512 = vpop.f32.mrf.mxu0
      %v513 = vadd.f32 0.0, %v512
      %v514 = vpop.f32.mrf.mxu0
      %515 = vdwg.mxu0
      %516 = vmatpush.bf16.msra.mxu0 0
      %517 = vmatpush.bf16.msra.mxu0 0
      %518 = vmatpush.bf16.msra.mxu0 0
      %519 = vmatpush.bf16.msra.mxu0 0
      %520 = vmatpush.bf16.msra.mxu0 0
      %521 = vmatpush.bf16.msra.mxu0 0
      %522 = vmatpush.bf16.msra.mxu0 0
      %523 = vmatpush.bf16.msra.mxu0 %v498
      %524 = vmatmul.bf16.gmra.mxu0 %v492
      %v525 = vpop.f32.mrf.mxu0
      %v526 = vadd.f32 0.0, %v525
      %v527 = vpop.f32.mrf.mxu0
      %528 = vdwg.mxu0
      %529 = vmatpush.bf16.msra.mxu0 0
      %530 = vmatpush.bf16.msra.mxu0 0
      %531 = vmatpush.bf16.msra.mxu0 0
      %532 = vmatpush.bf16.msra.mxu0 0
      %533 = vmatpush.bf16.msra.mxu0 0
      %534 = vmatpush.bf16.msra.mxu0 0
      %535 = vmatpush.bf16.msra.mxu0 0
      %536 = vmatpush.bf16.msra.mxu0 %v501
      %537 = vmatmul.bf16.gmra.mxu0 %v492
      %v538 = vpop.f32.mrf.mxu0
      %v539 = vadd.f32 0.0, %v538
      %v540 = vpop.f32.mrf.mxu0
      %541 = vdwg.mxu0
      %v542 = vadd.f32 %v474, %v513
      %v543 = vadd.f32 %v475, %v526
      %v544 = vadd.f32 %v476, %v539
      %v545 = vld [vmem:[%s249 + $0x4] sm:$0xff]
      %v546 = vld [vmem:[%s249 + $0xc] sm:$0xf]
      %s547 = scalar_lea.vmem %s1, 16
      %v548 = vld [vmem:[%s547] sm:$0xf]
      %v551 = vunpack.c.l.b16 %v545
      %v552 = vunpack.c.h.b16 %v545
      %v553 = vunpack.c.l.b16 %v546
      %v554 = vpack.c.b16 %v551, %v551
      %v555 = vpack.c.b16 %v552, %v552
      %v556 = vpack.c.b16 %v553, %v553
      %v558 = vsel %vm293, %v548, 0
      %v561 = vsel %vm297, %v554, 0
      %v564 = vsel %vm297, %v555, 0
      %v567 = vsel %vm297, %v556, 0
      %569 = vmatpush.bf16.msra.mxu0 0
      %570 = vmatpush.bf16.msra.mxu0 0
      %571 = vmatpush.bf16.msra.mxu0 0
      %572 = vmatpush.bf16.msra.mxu0 0
      %573 = vmatpush.bf16.msra.mxu0 0
      %574 = vmatpush.bf16.msra.mxu0 0
      %575 = vmatpush.bf16.msra.mxu0 0
      %576 = vmatpush.bf16.msra.mxu0 %v561
      %577 = vmatmul.bf16.gmra.mxu0 %v558
      %v578 = vpop.f32.mrf.mxu0
      %v579 = vadd.f32 0.0, %v578
      %v580 = vpop.f32.mrf.mxu0
      %581 = vdwg.mxu0
      %582 = vmatpush.bf16.msra.mxu0 0
      %583 = vmatpush.bf16.msra.mxu0 0
      %584 = vmatpush.bf16.msra.mxu0 0
      %585 = vmatpush.bf16.msra.mxu0 0
      %586 = vmatpush.bf16.msra.mxu0 0
      %587 = vmatpush.bf16.msra.mxu0 0
      %588 = vmatpush.bf16.msra.mxu0 0
      %589 = vmatpush.bf16.msra.mxu0 %v564
      %590 = vmatmul.bf16.gmra.mxu0 %v558
      %v591 = vpop.f32.mrf.mxu0
      %v592 = vadd.f32 0.0, %v591
      %v593 = vpop.f32.mrf.mxu0
      %594 = vdwg.mxu0
      %595 = vmatpush.bf16.msra.mxu0 0
      %596 = vmatpush.bf16.msra.mxu0 0
      %597 = vmatpush.bf16.msra.mxu0 0
      %598 = vmatpush.bf16.msra.mxu0 0
      %599 = vmatpush.bf16.msra.mxu0 0
      %600 = vmatpush.bf16.msra.mxu0 0
      %601 = vmatpush.bf16.msra.mxu0 0
      %602 = vmatpush.bf16.msra.mxu0 %v567
      %603 = vmatmul.bf16.gmra.mxu0 %v558
      %v604 = vpop.f32.mrf.mxu0
      %v605 = vadd.f32 0.0, %v604
      %v606 = vpop.f32.mrf.mxu0
      %607 = vdwg.mxu0
      %v608 = vadd.f32 %v542, %v579
      %v609 = vadd.f32 %v543, %v592
      %v610 = vadd.f32 %v544, %v605
      %v611 = vld [vmem:[%s249 + $0x4] sm:$0xff]
      %v612 = vld [vmem:[%s249 + $0xc] sm:$0xff]
      %s613 = scalar_lea.vmem %s1, 20
      %v614 = vld [vmem:[%s613] sm:$0xf]
      %v617 = vunpack.c.l.b16 %v611
      %v618 = vunpack.c.h.b16 %v611
      %v619 = vunpack.c.l.b16 %v612
      %v620 = vunpack.c.h.b16 %v612
      %v621 = vpack.c.b16 %v617, %v617
      %v622 = vpack.c.b16 %v618, %v618
      %v623 = vpack.c.b16 %v619, %v619
      %v624 = vpack.c.b16 %v620, %v620
      %625 = vrot.lane.b32.xlu0 %v621, 127
      %v626 = vpop.permute.xlu0 %625
      %627 = vrot.lane.b32.xlu0 %v622, 127
      %v628 = vpop.permute.xlu0 %627
      %629 = vrot.lane.b32.xlu0 %v623, 127
      %v630 = vpop.permute.xlu0 %629
      %631 = vrot.lane.b32.xlu0 %v624, 127
      %v632 = vpop.permute.xlu0 %631
      %vm633 = vcmask 1039360
      %v634 = vsel %vm633, %v626, %v628
      %v635 = vsel %vm633, %v628, %v630
      %v636 = vsel %vm633, %v630, %v632
      %v638 = vsel %vm293, %v614, 0
      %v641 = vsel %vm297, %v634, 0
      %v644 = vsel %vm297, %v635, 0
      %v647 = vsel %vm297, %v636, 0
      %649 = vmatpush.bf16.msra.mxu0 0
      %650 = vmatpush.bf16.msra.mxu0 0
      %651 = vmatpush.bf16.msra.mxu0 0
      %652 = vmatpush.bf16.msra.mxu0 0
      %653 = vmatpush.bf16.msra.mxu0 0
      %654 = vmatpush.bf16.msra.mxu0 0
      %655 = vmatpush.bf16.msra.mxu0 0
      %656 = vmatpush.bf16.msra.mxu0 %v641
      %657 = vmatmul.bf16.gmra.mxu0 %v638
      %v658 = vpop.f32.mrf.mxu0
      %v659 = vadd.f32 0.0, %v658
      %v660 = vpop.f32.mrf.mxu0
      %661 = vdwg.mxu0
      %662 = vmatpush.bf16.msra.mxu0 0
      %663 = vmatpush.bf16.msra.mxu0 0
      %664 = vmatpush.bf16.msra.mxu0 0
      %665 = vmatpush.bf16.msra.mxu0 0
      %666 = vmatpush.bf16.msra.mxu0 0
      %667 = vmatpush.bf16.msra.mxu0 0
      %668 = vmatpush.bf16.msra.mxu0 0
      %669 = vmatpush.bf16.msra.mxu0 %v644
      %670 = vmatmul.bf16.gmra.mxu0 %v638
      %v671 = vpop.f32.mrf.mxu0
      %v672 = vadd.f32 0.0, %v671
      %v673 = vpop.f32.mrf.mxu0
      %674 = vdwg.mxu0
      %675 = vmatpush.bf16.msra.mxu0 0
      %676 = vmatpush.bf16.msra.mxu0 0
      %677 = vmatpush.bf16.msra.mxu0 0
      %678 = vmatpush.bf16.msra.mxu0 0
      %679 = vmatpush.bf16.msra.mxu0 0
      %680 = vmatpush.bf16.msra.mxu0 0
      %681 = vmatpush.bf16.msra.mxu0 0
      %682 = vmatpush.bf16.msra.mxu0 %v647
      %683 = vmatmul.bf16.gmra.mxu0 %v638
      %v684 = vpop.f32.mrf.mxu0
      %v685 = vadd.f32 0.0, %v684
      %v686 = vpop.f32.mrf.mxu0
      %687 = vdwg.mxu0
      %v688 = vadd.f32 %v608, %v659
      %v689 = vadd.f32 %v609, %v672
      %v690 = vadd.f32 %v610, %v685
      %s691 = scalar_lea.vmem %s1, 24
      %v692 = vld [vmem:[%s691] sm:$0xf]
      %693 = vrot.lane.b32.xlu0 %v621, 111
      %v694 = vpop.permute.xlu0 %693
      %695 = vrot.lane.b32.xlu0 %v622, 111
      %v696 = vpop.permute.xlu0 %695
      %697 = vrot.lane.b32.xlu0 %v623, 111
      %v698 = vpop.permute.xlu0 %697
      %699 = vrot.lane.b32.xlu0 %v624, 111
      %v700 = vpop.permute.xlu0 %699
      %vm701 = vcmask 908288
      %v702 = vsel %vm701, %v694, %v696
      %v703 = vsel %vm701, %v696, %v698
      %v704 = vsel %vm701, %v698, %v700
      %v706 = vsel %vm293, %v692, 0
      %v709 = vsel %vm297, %v702, 0
      %v712 = vsel %vm297, %v703, 0
      %v715 = vsel %vm297, %v704, 0
      %717 = vmatpush.bf16.msra.mxu0 0
      %718 = vmatpush.bf16.msra.mxu0 0
      %719 = vmatpush.bf16.msra.mxu0 0
      %720 = vmatpush.bf16.msra.mxu0 0
      %721 = vmatpush.bf16.msra.mxu0 0
      %722 = vmatpush.bf16.msra.mxu0 0
      %723 = vmatpush.bf16.msra.mxu0 0
      %724 = vmatpush.bf16.msra.mxu0 %v709
      %725 = vmatmul.bf16.gmra.mxu0 %v706
      %v726 = vpop.f32.mrf.mxu0
      %v727 = vadd.f32 0.0, %v726
      %v728 = vpop.f32.mrf.mxu0
      %729 = vdwg.mxu0
      %730 = vmatpush.bf16.msra.mxu0 0
      %731 = vmatpush.bf16.msra.mxu0 0
      %732 = vmatpush.bf16.msra.mxu0 0
      %733 = vmatpush.bf16.msra.mxu0 0
      %734 = vmatpush.bf16.msra.mxu0 0
      %735 = vmatpush.bf16.msra.mxu0 0
      %736 = vmatpush.bf16.msra.mxu0 0
      %737 = vmatpush.bf16.msra.mxu0 %v712
      %738 = vmatmul.bf16.gmra.mxu0 %v706
      %v739 = vpop.f32.mrf.mxu0
      %v740 = vadd.f32 0.0, %v739
      %v741 = vpop.f32.mrf.mxu0
      %742 = vdwg.mxu0
      %743 = vmatpush.bf16.msra.mxu0 0
      %744 = vmatpush.bf16.msra.mxu0 0
      %745 = vmatpush.bf16.msra.mxu0 0
      %746 = vmatpush.bf16.msra.mxu0 0
      %747 = vmatpush.bf16.msra.mxu0 0
      %748 = vmatpush.bf16.msra.mxu0 0
      %749 = vmatpush.bf16.msra.mxu0 0
      %750 = vmatpush.bf16.msra.mxu0 %v715
      %751 = vmatmul.bf16.gmra.mxu0 %v706
      %v752 = vpop.f32.mrf.mxu0
      %v753 = vadd.f32 0.0, %v752
      %v754 = vpop.f32.mrf.mxu0
      %755 = vdwg.mxu0
      %v756 = vadd.f32 %v688, %v727
      %v757 = vadd.f32 %v689, %v740
      %v758 = vadd.f32 %v690, %v753
      %s759 = scalar_lea.vmem %s1, 28
      %v760 = vld [vmem:[%s759] sm:$0xf]
      %761 = vrot.lane.b32.xlu0 %v621, 110
      %v762 = vpop.permute.xlu0 %761
      %763 = vrot.lane.b32.xlu0 %v622, 110
      %v764 = vpop.permute.xlu0 %763
      %765 = vrot.lane.b32.xlu0 %v623, 110
      %v766 = vpop.permute.xlu0 %765
      %767 = vrot.lane.b32.xlu0 %v624, 110
      %v768 = vpop.permute.xlu0 %767
      %vm769 = vcmask 900096
      %v770 = vsel %vm769, %v762, %v764
      %v771 = vsel %vm769, %v764, %v766
      %v772 = vsel %vm769, %v766, %v768
      %v774 = vsel %vm293, %v760, 0
      %v777 = vsel %vm297, %v770, 0
      %v780 = vsel %vm297, %v771, 0
      %v783 = vsel %vm297, %v772, 0
      %785 = vmatpush.bf16.msra.mxu0 0
      %786 = vmatpush.bf16.msra.mxu0 0
      %787 = vmatpush.bf16.msra.mxu0 0
      %788 = vmatpush.bf16.msra.mxu0 0
      %789 = vmatpush.bf16.msra.mxu0 0
      %790 = vmatpush.bf16.msra.mxu0 0
      %791 = vmatpush.bf16.msra.mxu0 0
      %792 = vmatpush.bf16.msra.mxu0 %v777
      %793 = vmatmul.bf16.gmra.mxu0 %v774
      %v794 = vpop.f32.mrf.mxu0
      %v795 = vadd.f32 0.0, %v794
      %v796 = vpop.f32.mrf.mxu0
      %797 = vdwg.mxu0
      %798 = vmatpush.bf16.msra.mxu0 0
      %799 = vmatpush.bf16.msra.mxu0 0
      %800 = vmatpush.bf16.msra.mxu0 0
      %801 = vmatpush.bf16.msra.mxu0 0
      %802 = vmatpush.bf16.msra.mxu0 0
      %803 = vmatpush.bf16.msra.mxu0 0
      %804 = vmatpush.bf16.msra.mxu0 0
      %805 = vmatpush.bf16.msra.mxu0 %v780
      %806 = vmatmul.bf16.gmra.mxu0 %v774
      %v807 = vpop.f32.mrf.mxu0
      %v808 = vadd.f32 0.0, %v807
      %v809 = vpop.f32.mrf.mxu0
      %810 = vdwg.mxu0
      %811 = vmatpush.bf16.msra.mxu0 0
      %812 = vmatpush.bf16.msra.mxu0 0
      %813 = vmatpush.bf16.msra.mxu0 0
      %814 = vmatpush.bf16.msra.mxu0 0
      %815 = vmatpush.bf16.msra.mxu0 0
      %816 = vmatpush.bf16.msra.mxu0 0
      %817 = vmatpush.bf16.msra.mxu0 0
      %818 = vmatpush.bf16.msra.mxu0 %v783
      %819 = vmatmul.bf16.gmra.mxu0 %v774
      %v820 = vpop.f32.mrf.mxu0
      %v821 = vadd.f32 0.0, %v820
      %v822 = vpop.f32.mrf.mxu0
      %823 = vdwg.mxu0
      %v824 = vadd.f32 %v756, %v795
      %v825 = vadd.f32 %v757, %v808
      %v826 = vadd.f32 %v758, %v821
      %s827 = scalar_lea.vmem %s1, 32
      %v828 = vld [vmem:[%s827] sm:$0xf]
      %829 = vrot.lane.b32.xlu0 %v621, 109
      %v830 = vpop.permute.xlu0 %829
      %831 = vrot.lane.b32.xlu0 %v622, 109
      %v832 = vpop.permute.xlu0 %831
      %833 = vrot.lane.b32.xlu0 %v623, 109
      %v834 = vpop.permute.xlu0 %833
      %835 = vrot.lane.b32.xlu0 %v624, 109
      %v836 = vpop.permute.xlu0 %835
      %vm837 = vcmask 891904
      %v838 = vsel %vm837, %v830, %v832
      %v839 = vsel %vm837, %v832, %v834
      %v840 = vsel %vm837, %v834, %v836
      %v842 = vsel %vm293, %v828, 0
      %v845 = vsel %vm297, %v838, 0
      %v848 = vsel %vm297, %v839, 0
      %v851 = vsel %vm297, %v840, 0
      %853 = vmatpush.bf16.msra.mxu0 0
      %854 = vmatpush.bf16.msra.mxu0 0
      %855 = vmatpush.bf16.msra.mxu0 0
      %856 = vmatpush.bf16.msra.mxu0 0
      %857 = vmatpush.bf16.msra.mxu0 0
      %858 = vmatpush.bf16.msra.mxu0 0
      %859 = vmatpush.bf16.msra.mxu0 0
      %860 = vmatpush.bf16.msra.mxu0 %v845
      %861 = vmatmul.bf16.gmra.mxu0 %v842
      %v862 = vpop.f32.mrf.mxu0
      %v863 = vadd.f32 0.0, %v862
      %v864 = vpop.f32.mrf.mxu0
      %865 = vdwg.mxu0
      %866 = vmatpush.bf16.msra.mxu0 0
      %867 = vmatpush.bf16.msra.mxu0 0
      %868 = vmatpush.bf16.msra.mxu0 0
      %869 = vmatpush.bf16.msra.mxu0 0
      %870 = vmatpush.bf16.msra.mxu0 0
      %871 = vmatpush.bf16.msra.mxu0 0
      %872 = vmatpush.bf16.msra.mxu0 0
      %873 = vmatpush.bf16.msra.mxu0 %v848
      %874 = vmatmul.bf16.gmra.mxu0 %v842
      %v875 = vpop.f32.mrf.mxu0
      %v876 = vadd.f32 0.0, %v875
      %v877 = vpop.f32.mrf.mxu0
      %878 = vdwg.mxu0
      %879 = vmatpush.bf16.msra.mxu0 0
      %880 = vmatpush.bf16.msra.mxu0 0
      %881 = vmatpush.bf16.msra.mxu0 0
      %882 = vmatpush.bf16.msra.mxu0 0
      %883 = vmatpush.bf16.msra.mxu0 0
      %884 = vmatpush.bf16.msra.mxu0 0
      %885 = vmatpush.bf16.msra.mxu0 0
      %886 = vmatpush.bf16.msra.mxu0 %v851
      %887 = vmatmul.bf16.gmra.mxu0 %v842
      %v888 = vpop.f32.mrf.mxu0
      %v889 = vadd.f32 0.0, %v888
      %v890 = vpop.f32.mrf.mxu0
      %891 = vdwg.mxu0
      %v892 = vadd.f32 %v824, %v863
      %v893 = vadd.f32 %v825, %v876
      %v894 = vadd.f32 %v826, %v889
      %v895 = vld [vmem:[%s2] sm:$0xff]
      %897 = vset.pattern.permute.xlu0 0
      %898 = vperm.xlu0 %897, %v895
      %v899 = vpop.permute.xlu0 %898
      %v901 = vadd.f32 %v892, %v899
      %v902 = vadd.f32 %v893, %v899
      %v903 = vadd.f32 %v894, %v899
      %v904 = vmax.f32 %v901, 0.0
      %v905 = vmax.f32 %v902, 0.0
      %v906 = vmax.f32 %v903, 0.0
      %v907 = vld [vmem:[%s254] sm:$0xff]
      %v908 = vld [vmem:[%s254 + $0x8] sm:$0xf]
      %v909 = vunpack.c.l.bf16 %v907
      %v910 = vunpack.c.h.bf16 %v907
      %v911 = vunpack.c.l.bf16 %v908
      %v912 = vadd.f32 %v904, %v909
      %v913 = vadd.f32 %v905, %v910
      %v914 = vadd.f32 %v906, %v911
      %v915 = vld [vmem:[%s259] sm:$0xff]
      %v916 = vld [vmem:[%s259 + $0x8] sm:$0xf]
      %v917 = vunpack.c.l.bf16 %v915
      %v918 = vunpack.c.h.bf16 %v915
      %v919 = vunpack.c.l.bf16 %v916
      %v920 = vadd.f32 %v912, %v917
      %v921 = vadd.f32 %v913, %v918
      %v922 = vadd.f32 %v914, %v919
      %923 = vst [vmem:[%s264] sm:$0xff] %v920
      %924 = vst [vmem:[%s264 + $0x8] sm:$0xff] %v921
      %925 = vst [vmem:[%s264 + $0x10] sm:$0xff] %v922
      %p926 = scmp.lt.s32.totalorder %s16, 1
      %s927 = scalar_select %p926, %s16, 1
      %s928 = smul.addr %s927, 3
      %s929 = smul.addr %s928, 8
      %s930 = scalar_lea.vmem %s5, %s929
      // Predicated region
      $region41: #{refine_block3_1.9} parent=39 // pred_check
        %p931 = pneg %p154
      $region42: #{refine_block3_1.9} parent=39 // pred_check_branch
        %933 = sbr.rel (%p931) target = $region44
      $region43: #{refine_block3_1.9} parent=39 // pred_region
        _
      $region44: #{refine_block3_1.9} parent=39 // pred_fallthru
        _
    $region40: #{refine_block3_1.9} parent=5 // pred_fallthru
      _
    %p934 = scmp.le.s32.totalorder 2, %s11
    // Predicated region
    $region45: #{refine_block3_1.9} parent=5 // pred_check
      %p935 = pneg %p934
    $region46: #{refine_block3_1.9} parent=5 // pred_check_branch
      %937 = sbr.rel (%p935) target = $region48
    $region47: #{refine_block3_1.9} parent=5 // pred_region
      %s938 = ssub.s32 %s11, 2
      // Predicated region
      $region49: #{refine_block3_1.9} parent=47 // pred_check
        %p939 = pneg %p160
      $region50: #{refine_block3_1.9} parent=47 // pred_check_branch
        %941 = sbr.rel (%p939) target = $region52
      $region51: #{refine_block3_1.9} parent=47 // pred_region
        %p942 = scmp.lt.s32.totalorder %s17, 1
        %s943 = scalar_select %p942, %s17, 1
        %s944 = smul.addr %s943, 3
        %s945 = smul.addr %s944, 8
        %s946 = scalar_lea.vmem %s5, %s945
      $region52: #{refine_block3_1.9} parent=47 // pred_fallthru
        _
    $region48: #{refine_block3_1.9} parent=5 // pred_fallthru
      _
  $region6: #{refine_block3_1.9} parent=0 // loop_footer
    %s15 = sadd.s32 1, %s11
  $region7: #{refine_block3_1.9} parent=0 // loop_footer_branch
    %10 = sbr.rel target = $region3
  $region8: #{refine_block3_1.9} parent=0 // loop_exit
    _

</llo_original>
